<compile_context>
chip_gen: v5e
topology: v5e:2x2
jax: 0.10.0
libtpu: 0.0.40
codegen_flags: <defaults>
</compile_context>

<pallas_src>
import functools
import math

import numpy as np
import jax
import jax.numpy as jnp
from jax import lax
from jax.experimental import pallas as pl
from jax.experimental.pallas import tpu as pltpu

# ----------------------------- small synthetic config -----------------------------
NUM_IMAGES = 2
IN_CHANNELS = 32          # res4 channels == out_channels // 2
BOTTLENECK = 16           # num_groups * width_per_group * 8  (scaled down)
OUT_CHANNELS = 64         # RES2_OUT_CHANNELS * 8             (scaled down)
FEAT_H = FEAT_W = 16
STRIDE = 16               # feature stride of the single in_feature ("res4")
POOLER_RES = 4            # cfg.MODEL.ROI_BOX_HEAD.POOLER_RESOLUTION (scaled down)
NUM_CLASSES = 8

NC1 = NUM_CLASSES + 1     # cls head width
NBOX = NUM_CLASSES * 4    # bbox head width
HEAD_PAD = 128            # lane-dense packed head width (cls | bbox | zero pad)

VMEM_LIMIT = 32 * 1024 * 1024   # explicit budget; all resident buffers here are < 1 MiB


def _round_up(x, m):
    return (x + m - 1) // m * m


# ================================= fused Pallas kernel =================================
def _res5_head_kernel(samp_ref, feat_ref, shifts_ref, mean_ref,
                      w1a, b1a, w2a, b2a, w3a, b3a, wsa, bsa,
                      w1b, b1b, w2b, b2b, w3b, b3b,
                      w1c, b1c, w2c, b2c, w3c, b3c,
                      wh, bh,
                      head_ref, prob_ref,
                      *, tp, cb, nc1):
    # ---- ROIAlign for the whole ROI tile: one MXU matmul (image select folded into samp) ----
    xs = jnp.dot(samp_ref[...], feat_ref[...],
                 preferred_element_type=jnp.float32)          # (TP, Cin) f32
    xs = xs.astype(jnp.bfloat16)

    def bottleneck(x_bf, w1, b1, w2, b2, w3, b3, shortcut_f32):
        # conv1 1x1 (+folded FrozenBN) + ReLU
        y1 = jnp.dot(x_bf, w1[...], preferred_element_type=jnp.float32) + b1[...]
        y1 = jnp.maximum(y1, 0.0).astype(jnp.bfloat16)        # (TP, CB)
        # conv2 3x3 pad=1: 9 taps, each = (block-diag spatial shift) @ y1 @ W_tap.
        # The shift matmul only copies/zeros rows (0/1 matrix), so the bf16 round-trip is lossless.
        acc = jnp.zeros((tp, cb), jnp.float32)
        for k in range(9):                                    # static unroll, MXU only
            win = jnp.dot(shifts_ref[k], y1, preferred_element_type=jnp.float32)
            acc = acc + jnp.dot(win.astype(jnp.bfloat16), w2[k],
                                preferred_element_type=jnp.float32)
        y2 = jnp.maximum(acc + b2[...], 0.0).astype(jnp.bfloat16)
        # conv3 1x1 + residual + ReLU
        y3 = jnp.dot(y2, w3[...], preferred_element_type=jnp.float32) + b3[...] + shortcut_f32
        return jnp.maximum(y3, 0.0)                           # (TP, Cout) f32

    # block0: projection shortcut (1x1, stride folded into the sampling grid)
    sc0 = jnp.dot(xs, wsa[...], preferred_element_type=jnp.float32) + bsa[...]
    x0 = bottleneck(xs, w1a, b1a, w2a, b2a, w3a, b3a, sc0).astype(jnp.bfloat16)
    # blocks 1 & 2: identity shortcut
    x1 = bottleneck(x0, w1b, b1b, w2b, b2b, w3b, b3b, x0.astype(jnp.float32)).astype(jnp.bfloat16)
    x2 = bottleneck(x1, w1c, b1c, w2c, b2c, w3c, b3c, x1.astype(jnp.float32))   # (TP, Cout) f32

    # ---- spatial mean as an MXU matmul (block-diag averaging matrix), fused in-kernel ----
    pooled = jnp.dot(mean_ref[...], x2, preferred_element_type=jnp.float32)     # (T, Cout) f32

    # ---- packed (cls | bbox) linear head in f32, lane-dense output ----
    y = jnp.dot(pooled, wh[...], preferred_element_type=jnp.float32) + bh[...]  # (T, 128)
    head_ref[...] = y

    # masked softmax over the cls lanes only
    lanes = lax.broadcasted_iota(jnp.int32, y.shape, 1)
    ym = jnp.where(lanes < nc1, y, jnp.full_like(y, -jnp.inf))
    m = jnp.max(ym, axis=-1, keepdims=True)
    e = jnp.exp(ym - m)                                       # masked lanes -> exp(-inf) = 0
    prob_ref[...] = e / jnp.sum(e, axis=-1, keepdims=True)


# ============================ Pallas wrapper (pallas_call) ========================
def fused_res5_head(samp, feat_2d, shifts, mean_mat, p, roi_tile, p2, r_pad):
    tp = roi_tile * p2 * p2
    nhw, _ = feat_2d.shape
    cb = p["block0"]["w1"].shape[1]
    b0, b1, b2 = p["block0"], p["block1"], p["block2"]

    def cspec(shape):
        nd = len(shape)
        return pl.BlockSpec(shape, lambda i, _nd=nd: (0,) * _nd)   # constant -> VMEM resident

    kernel = functools.partial(_res5_head_kernel, tp=tp, cb=cb, nc1=NC1)
    grid_spec = pltpu.PrefetchScalarGridSpec(
        num_scalar_prefetch=0,
        grid=(r_pad // roi_tile,),
        in_specs=[
            pl.BlockSpec((tp, nhw), lambda i: (i, 0)),         # per-tile sampling matrix
            cspec(feat_2d.shape),                              # feature map, resident
            cspec(shifts.shape),                               # (9, TP, TP) shift matrices
            cspec(mean_mat.shape),                             # (T, TP) averaging matrix
            cspec(b0["w1"].shape), cspec(b0["b1"].shape), cspec(b0["w2"].shape), cspec(b0["b2"].shape),
            cspec(b0["w3"].shape), cspec(b0["b3"].shape), cspec(b0["ws"].shape), cspec(b0["bs"].shape),
            cspec(b1["w1"].shape), cspec(b1["b1"].shape), cspec(b1["w2"].shape), cspec(b1["b2"].shape),
            cspec(b1["w3"].shape), cspec(b1["b3"].shape),
            cspec(b2["w1"].shape), cspec(b2["b1"].shape), cspec(b2["w2"].shape), cspec(b2["b2"].shape),
            cspec(b2["w3"].shape), cspec(b2["b3"].shape),
            cspec(p["head_w"].shape), cspec(p["head_b"].shape),
        ],
        out_specs=[
            pl.BlockSpec((roi_tile, HEAD_PAD), lambda i: (i, 0)),
            pl.BlockSpec((roi_tile, HEAD_PAD), lambda i: (i, 0)),
        ],
    )
    return pl.pallas_call(
        kernel,
        out_shape=(jax.ShapeDtypeStruct((r_pad, HEAD_PAD), jnp.float32),
                   jax.ShapeDtypeStruct((r_pad, HEAD_PAD), jnp.float32)),
        grid_spec=grid_spec,
        compiler_params=pltpu.CompilerParams(
            dimension_semantics=("parallel",),                 # shard ROI tiles across TCs (v7x)
            vmem_limit_bytes=VMEM_LIMIT),
    )(samp, feat_2d, shifts, mean_mat,
      b0["w1"], b0["b1"], b0["w2"], b0["b2"], b0["w3"], b0["b3"], b0["ws"], b0["bs"],
      b1["w1"], b1["b1"], b1["w2"], b1["b2"], b1["w3"], b1["b3"],
      b2["w1"], b2["b1"], b2["w2"], b2["b2"], b2["w3"], b2["b3"],
      p["head_w"], p["head_b"])


# =========================== ROIAlign sampling-matrix glue =========================
def _roi_sample_coords(boxes, pooler_res, spatial_scale, conv_stride):
    # Aligned ROIAlign (ROIAlignV2, -0.5 offset), one bin-center sample per bin.
    # conv_stride folds the stride-2 of block0's conv1/shortcut into the sampling grid.
    p2 = (pooler_res + conv_stride - 1) // conv_stride
    x1 = boxes[:, 0] * spatial_scale - 0.5
    y1 = boxes[:, 1] * spatial_scale - 0.5
    x2 = boxes[:, 2] * spatial_scale - 0.5
    y2 = boxes[:, 3] * spatial_scale - 0.5
    bin_w = (x2 - x1) / pooler_res
    bin_h = (y2 - y1) / pooler_res
    centers = jnp.arange(p2, dtype=jnp.float32) * conv_stride + 0.5
    xs = x1[:, None] + centers[None, :] * bin_w[:, None]      # (R, P2)
    ys = y1[:, None] + centers[None, :] * bin_h[:, None]      # (R, P2)
    return ys, xs


def _interp_matrix(coords, size):
    # (R, P2) sample coordinates -> (R, P2, size) bilinear interpolation weights.
    # detectron2 skips samples only when coord < -1 or coord > size (>= -1 is valid).
    valid = (coords >= -1.0) & (coords <= size)
    c = jnp.clip(coords, 0.0, size - 1)
    c0 = jnp.floor(c)
    frac = c - c0
    i0 = c0.astype(jnp.int32)
    i1 = jnp.minimum(i0 + 1, size - 1)
    grid = jnp.arange(size, dtype=jnp.int32)
    w0 = (grid[None, None, :] == i0[:, :, None]).astype(jnp.float32) * (1.0 - frac)[:, :, None]
    w1 = (grid[None, None, :] == i1[:, :, None]).astype(jnp.float32) * frac[:, :, None]
    return (w0 + w1) * valid[:, :, None].astype(jnp.float32)


def _make_shift_mats(roi_tile, p2):
    # 9 block-diagonal 0/1 matrices implementing the 3x3 pad=1 spatial shifts for a tile of ROIs:
    # (shift_k @ y1)[(r,y,x)] = y1[(r, y+kh-1, x+kw-1)] if in range else 0.
    tp = roi_tile * p2 * p2
    mats = np.zeros((9, tp, tp), np.float32)
    for kh in range(3):
        for kw in range(3):
            k = kh * 3 + kw
            dy, dx = kh - 1, kw - 1
            for y in range(p2):
                yy = y + dy
                if not 0 <= yy < p2:
                    continue
                for x in range(p2):
                    xx = x + dx
                    if not 0 <= xx < p2:
                        continue
                    for r in range(roi_tile):
                        o = r * p2 * p2
                        mats[k, o + y * p2 + x, o + yy * p2 + xx] = 1.0
    return mats


def _make_mean_mat(roi_tile, p2):
    # (T, T*P2*P2) block-diagonal averaging matrix: pooled[r] = mean over ROI r's spatial rows.
    m = np.zeros((roi_tile, roi_tile * p2 * p2), np.float32)
    for r in range(roi_tile):
        m[r, r * p2 * p2:(r + 1) * p2 * p2] = 1.0 / (p2 * p2)
    return m


# =========================== box delta decoding (plain JAX) ========================
def apply_deltas(deltas, boxes, weights=(10.0, 10.0, 5.0, 5.0)):
    scale_clamp = math.log(1000.0 / 16)
    widths = boxes[:, 2] - boxes[:, 0]
    heights = boxes[:, 3] - boxes[:, 1]
    ctr_x = boxes[:, 0] + 0.5 * widths
    ctr_y = boxes[:, 1] + 0.5 * heights
    wx, wy, ww, wh = weights
    dx = deltas[:, 0::4] / wx
    dy = deltas[:, 1::4] / wy
    dw = jnp.minimum(deltas[:, 2::4] / ww, scale_clamp)
    dh = jnp.minimum(deltas[:, 3::4] / wh, scale_clamp)
    pcx = dx * widths[:, None] + ctr_x[:, None]
    pcy = dy * heights[:, None] + ctr_y[:, None]
    pw = jnp.exp(dw) * widths[:, None]
    ph = jnp.exp(dh) * heights[:, None]
    out = jnp.stack([pcx - 0.5 * pw, pcy - 0.5 * ph,
                     pcx + 0.5 * pw, pcy + 0.5 * ph], axis=-1)
    return out.reshape(deltas.shape)


# ================================ forward (inference) ==============================
def res5_roi_heads_forward(params, features_nchw, proposal_boxes_per_image):
    # PyTorch NCHW feature map -> (N*H*W, C) bf16: channels on the lane axis, resident in VMEM.
    n, cin, h, w = features_nchw.shape
    feat_2d = jnp.transpose(features_nchw, (0, 2, 3, 1)).reshape(n * h * w, cin)
    feat_2d = feat_2d.astype(jnp.bfloat16)

    boxes = jnp.concatenate(proposal_boxes_per_image, axis=0)
    batch_idx = jnp.concatenate(
        [jnp.full((b.shape[0],), i, jnp.int32)
         for i, b in enumerate(proposal_boxes_per_image)])
    r0 = boxes.shape[0]

    # Strided (stride_in_1x1=True, first_stride=2) sampling grid; combined per-ROI bilinear
    # sampling matrix over (image, y, x) so ROIAlign is one matmul and ROI order is arbitrary.
    ys, xs = _roi_sample_coords(boxes, POOLER_RES, 1.0 / STRIDE, conv_stride=2)
    wy = _interp_matrix(ys, h)                                 # (R, P2, H)
    wx = _interp_matrix(xs, w)                                 # (R, P2, W)
    p2 = wy.shape[1]
    samp_img = jnp.einsum('rph,rqw->rpqhw', wy, wx)            # (R, P2, P2, H, W)
    onehot = (batch_idx[:, None] == jnp.arange(n)[None, :]).astype(jnp.float32)
    samp = jnp.einsum('rn,rpqhw->rpqnhw', onehot, samp_img)    # image selection folded in
    samp = samp.reshape(r0, p2 * p2, n * h * w)

    # ROI tiling: roi_tile*p2*p2 matmul rows per grid step; pad R with dummy (all-zero) ROIs.
    roi_tile = min(64, _round_up(r0, 8))
    r_pad = _round_up(r0, roi_tile)
    if r_pad != r0:
        samp = jnp.pad(samp, ((0, r_pad - r0), (0, 0), (0, 0)))
    samp = samp.reshape(r_pad * p2 * p2, n * h * w).astype(jnp.bfloat16)

    shifts = jnp.asarray(_make_shift_mats(roi_tile, p2), jnp.bfloat16)
    mean_mat = jnp.asarray(_make_mean_mat(roi_tile, p2), jnp.float32)

    head_raw, probs_pad = fused_res5_head(samp, feat_2d, shifts, mean_mat,
                                          params, roi_tile, p2, r_pad)
    probs = probs_pad[:r0, :NC1]                               # predict_probs
    deltas = head_raw[:r0, NC1:NC1 + NBOX]
    pred_boxes = apply_deltas(deltas, boxes)                   # predict_boxes
    return probs, pred_boxes


# ================================== parameter init =================================
def init_params(key):
    keys = iter(jax.random.split(key, 64))

    def dense(fan_in, fan_out):
        w = jax.random.normal(next(keys), (fan_in, fan_out), jnp.float32) / jnp.sqrt(fan_in)
        b = jax.random.normal(next(keys), (fan_out,), jnp.float32) * 0.01
        return w, b

    def block(c_in, c_bottle, c_out, shortcut):
        p = {}
        p["w1"], p["b1"] = dense(c_in, c_bottle)
        # conv2 weight layout: (9, Cin, Cout); tap k = kh*3 + kw  (== torch W[:, :, kh, kw].T)
        p["w2"] = (jax.random.normal(next(keys), (9, c_bottle, c_bottle), jnp.float32)
                   / jnp.sqrt(9 * c_bottle))
        p["b2"] = jax.random.normal(next(keys), (c_bottle,), jnp.float32) * 0.01
        p["w3"], p["b3"] = dense(c_bottle, c_out)
        if shortcut:
            p["ws"], p["bs"] = dense(c_in, c_out)
        return p

    params = {
        "block0": block(IN_CHANNELS, BOTTLENECK, OUT_CHANNELS, shortcut=True),
        "block1": block(OUT_CHANNELS, BOTTLENECK, OUT_CHANNELS, shortcut=False),
        "block2": block(OUT_CHANNELS, BOTTLENECK, OUT_CHANNELS, shortcut=False),
    }
    params["cls_w"], params["cls_b"] = dense(OUT_CHANNELS, NC1)
    params["bbox_w"], params["bbox_b"] = dense(OUT_CHANNELS, NBOX)
    return params


def prepare_params(raw):
    # bf16 conv-matmul operands, f32 (1, N) biases (FrozenBN folded), packed lane-dense head.
    # The packed head stays f32 so bbox deltas match detectron2's f32 box head.
    def prep_block(p, shortcut):
        out = {"w1": p["w1"].astype(jnp.bfloat16), "b1": p["b1"].reshape(1, -1),
               "w2": p["w2"].astype(jnp.bfloat16), "b2": p["b2"].reshape(1, -1),
               "w3": p["w3"].astype(jnp.bfloat16), "b3": p["b3"].reshape(1, -1)}
        if shortcut:
            out["ws"] = p["ws"].astype(jnp.bfloat16)
            out["bs"] = p["bs"].reshape(1, -1)
        return out

    c = raw["cls_w"].shape[0]
    w_head = jnp.zeros((c, HEAD_PAD), jnp.float32)
    w_head = w_head.at[:, :NC1].set(raw["cls_w"])
    w_head = w_head.at[:, NC1:NC1 + NBOX].set(raw["bbox_w"])
    b_head = jnp.zeros((1, HEAD_PAD), jnp.float32)
    b_head = b_head.at[0, :NC1].set(raw["cls_b"])
    b_head = b_head.at[0, NC1:NC1 + NBOX].set(raw["bbox_b"])
    return {"block0": prep_block(raw["block0"], True),
            "block1": prep_block(raw["block1"], False),
            "block2": prep_block(raw["block2"], False),
            "head_w": w_head,
            "head_b": b_head}


# ======================================= main ======================================
if __name__ == "__main__":
    key = jax.random.PRNGKey(0)
    k_feat, k_params = jax.random.split(key)

    params = prepare_params(init_params(k_params))

    # single in_feature ("res4"): (N, C, H, W) — PyTorch NCHW.
    features = jax.random.normal(
        k_feat, (NUM_IMAGES, IN_CHANNELS, FEAT_H, FEAT_W), jnp.float32)

    # proposal boxes (x1, y1, x2, y2) in image coordinates (image = 256 x 256).
    proposal_boxes = [
        jnp.array([[10.0, 12.0, 120.0, 140.0],
                   [40.0, 30.0, 200.0, 180.0],
                   [0.0, 0.0, 255.0, 255.0]], jnp.float32),
        jnp.array([[60.0, 50.0, 160.0, 150.0],
                   [20.0, 80.0, 100.0, 240.0],
                   [128.0, 64.0, 250.0, 200.0]], jnp.float32),
    ]

    forward = jax.jit(res5_roi_heads_forward)
    probs, pred_boxes = forward(params, features, proposal_boxes)
    jax.block_until_ready((probs, pred_boxes))

    assert probs.shape == (6, NUM_CLASSES + 1)
    assert pred_boxes.shape == (6, NUM_CLASSES * 4)
    assert bool(jnp.all(jnp.isfinite(probs))) and bool(jnp.all(jnp.isfinite(pred_boxes)))
    print("KERNEL_OK")
</pallas_src>

<mosaic_0001>
module attributes {stable_mosaic.version = 11 : i64} {
  func.func @_res5_head_kernel(%arg0: i32, %arg1: memref<32x512xbf16, #tpu.memory_space<vmem>>, %arg2: memref<512x32xbf16, #tpu.memory_space<vmem>>, %arg3: memref<9x32x32xbf16, #tpu.memory_space<vmem>>, %arg4: memref<8x32xf32, #tpu.memory_space<vmem>>, %arg5: memref<32x16xbf16, #tpu.memory_space<vmem>>, %arg6: memref<1x16xf32, #tpu.memory_space<vmem>>, %arg7: memref<9x16x16xbf16, #tpu.memory_space<vmem>>, %arg8: memref<1x16xf32, #tpu.memory_space<vmem>>, %arg9: memref<16x64xbf16, #tpu.memory_space<vmem>>, %arg10: memref<1x64xf32, #tpu.memory_space<vmem>>, %arg11: memref<32x64xbf16, #tpu.memory_space<vmem>>, %arg12: memref<1x64xf32, #tpu.memory_space<vmem>>, %arg13: memref<64x16xbf16, #tpu.memory_space<vmem>>, %arg14: memref<1x16xf32, #tpu.memory_space<vmem>>, %arg15: memref<9x16x16xbf16, #tpu.memory_space<vmem>>, %arg16: memref<1x16xf32, #tpu.memory_space<vmem>>, %arg17: memref<16x64xbf16, #tpu.memory_space<vmem>>, %arg18: memref<1x64xf32, #tpu.memory_space<vmem>>, %arg19: memref<64x16xbf16, #tpu.memory_space<vmem>>, %arg20: memref<1x16xf32, #tpu.memory_space<vmem>>, %arg21: memref<9x16x16xbf16, #tpu.memory_space<vmem>>, %arg22: memref<1x16xf32, #tpu.memory_space<vmem>>, %arg23: memref<16x64xbf16, #tpu.memory_space<vmem>>, %arg24: memref<1x64xf32, #tpu.memory_space<vmem>>, %arg25: memref<64x128xf32, #tpu.memory_space<vmem>>, %arg26: memref<1x128xf32, #tpu.memory_space<vmem>>, %arg27: memref<8x128xf32, #tpu.memory_space<vmem>>, %arg28: memref<8x128xf32, #tpu.memory_space<vmem>>) attributes {dimension_semantics = [#tpu.dimension_semantics<parallel>], iteration_bounds = array<i64: 1>, scalar_prefetch = 0 : i64, scratch_operands = 0 : i64, tpu.core_type = #tpu.core_type<tc>, window_params = [{transform_indices = @transform_0, window_bounds = array<i64: 32, 512>}, {pipeline_mode = #tpu.pipeline_mode<synchronous>, transform_indices = @transform_1, window_bounds = array<i64: 512, 32>}, {pipeline_mode = #tpu.pipeline_mode<synchronous>, transform_indices = @transform_2, window_bounds = array<i64: 9, 32, 32>}, {pipeline_mode = #tpu.pipeline_mode<synchronous>, transform_indices = @transform_3, window_bounds = array<i64: 8, 32>}, {pipeline_mode = #tpu.pipeline_mode<synchronous>, transform_indices = @transform_4, window_bounds = array<i64: 32, 16>}, {pipeline_mode = #tpu.pipeline_mode<synchronous>, transform_indices = @transform_5, window_bounds = array<i64: 1, 16>}, {pipeline_mode = #tpu.pipeline_mode<synchronous>, transform_indices = @transform_6, window_bounds = array<i64: 9, 16, 16>}, {pipeline_mode = #tpu.pipeline_mode<synchronous>, transform_indices = @transform_7, window_bounds = array<i64: 1, 16>}, {pipeline_mode = #tpu.pipeline_mode<synchronous>, transform_indices = @transform_8, window_bounds = array<i64: 16, 64>}, {pipeline_mode = #tpu.pipeline_mode<synchronous>, transform_indices = @transform_9, window_bounds = array<i64: 1, 64>}, {pipeline_mode = #tpu.pipeline_mode<synchronous>, transform_indices = @transform_10, window_bounds = array<i64: 32, 64>}, {pipeline_mode = #tpu.pipeline_mode<synchronous>, transform_indices = @transform_11, window_bounds = array<i64: 1, 64>}, {pipeline_mode = #tpu.pipeline_mode<synchronous>, transform_indices = @transform_12, window_bounds = array<i64: 64, 16>}, {pipeline_mode = #tpu.pipeline_mode<synchronous>, transform_indices = @transform_13, window_bounds = array<i64: 1, 16>}, {pipeline_mode = #tpu.pipeline_mode<synchronous>, transform_indices = @transform_14, window_bounds = array<i64: 9, 16, 16>}, {pipeline_mode = #tpu.pipeline_mode<synchronous>, transform_indices = @transform_15, window_bounds = array<i64: 1, 16>}, {pipeline_mode = #tpu.pipeline_mode<synchronous>, transform_indices = @transform_16, window_bounds = array<i64: 16, 64>}, {pipeline_mode = #tpu.pipeline_mode<synchronous>, transform_indices = @transform_17, window_bounds = array<i64: 1, 64>}, {pipeline_mode = #tpu.pipeline_mode<synchronous>, transform_indices = @transform_18, window_bounds = array<i64: 64, 16>}, {pipeline_mode = #tpu.pipeline_mode<synchronous>, transform_indices = @transform_19, window_bounds = array<i64: 1, 16>}, {pipeline_mode = #tpu.pipeline_mode<synchronous>, transform_indices = @transform_20, window_bounds = array<i64: 9, 16, 16>}, {pipeline_mode = #tpu.pipeline_mode<synchronous>, transform_indices = @transform_21, window_bounds = array<i64: 1, 16>}, {pipeline_mode = #tpu.pipeline_mode<synchronous>, transform_indices = @transform_22, window_bounds = array<i64: 16, 64>}, {pipeline_mode = #tpu.pipeline_mode<synchronous>, transform_indices = @transform_23, window_bounds = array<i64: 1, 64>}, {pipeline_mode = #tpu.pipeline_mode<synchronous>, transform_indices = @transform_24, window_bounds = array<i64: 64, 128>}, {pipeline_mode = #tpu.pipeline_mode<synchronous>, transform_indices = @transform_25, window_bounds = array<i64: 1, 128>}, {transform_indices = @transform_26, window_bounds = array<i64: 8, 128>}, {transform_indices = @transform_27, window_bounds = array<i64: 8, 128>}]} {
    %c0 = arith.constant 0 : index
    %c0_0 = arith.constant 0 : index
    %0 = vector.load %arg1[%c0, %c0_0] : memref<32x512xbf16, #tpu.memory_space<vmem>>, vector<32x512xbf16>
    %c0_1 = arith.constant 0 : index
    %c0_2 = arith.constant 0 : index
    %1 = vector.load %arg2[%c0_1, %c0_2] : memref<512x32xbf16, #tpu.memory_space<vmem>>, vector<512x32xbf16>
    %cst = arith.constant dense<0.000000e+00> : vector<32x32xf32>
    %2 = tpu.matmul %0, %1, %cst {dimension_numbers = #tpu.dot_dimension_numbers<[1], [0], [0], [1], [0, 0, 1, 1], [], []>} : vector<32x512xbf16>, vector<512x32xbf16>, vector<32x32xf32> -> vector<32x32xf32>
    %3 = arith.truncf %2 : vector<32x32xf32> to vector<32x32xbf16>
    %c0_3 = arith.constant 0 : index
    %c0_4 = arith.constant 0 : index
    %4 = vector.load %arg11[%c0_3, %c0_4] : memref<32x64xbf16, #tpu.memory_space<vmem>>, vector<32x64xbf16>
    %cst_5 = arith.constant dense<0.000000e+00> : vector<32x64xf32>
    %5 = tpu.matmul %3, %4, %cst_5 {dimension_numbers = #tpu.dot_dimension_numbers<[1], [0], [0], [1], [0, 0, 1, 1], [], []>} : vector<32x32xbf16>, vector<32x64xbf16>, vector<32x64xf32> -> vector<32x64xf32>
    %c0_6 = arith.constant 0 : index
    %c0_7 = arith.constant 0 : index
    %6 = vector.load %arg12[%c0_6, %c0_7] : memref<1x64xf32, #tpu.memory_space<vmem>>, vector<1x64xf32>
    %7 = vector.broadcast %6 : vector<1x64xf32> to vector<32x64xf32>
    %8 = arith.addf %5, %7 : vector<32x64xf32>
    %c0_8 = arith.constant 0 : index
    %c0_9 = arith.constant 0 : index
    %9 = vector.load %arg5[%c0_8, %c0_9] : memref<32x16xbf16, #tpu.memory_space<vmem>>, vector<32x16xbf16>
    %cst_10 = arith.constant dense<0.000000e+00> : vector<32x16xf32>
    %10 = tpu.matmul %3, %9, %cst_10 {dimension_numbers = #tpu.dot_dimension_numbers<[1], [0], [0], [1], [0, 0, 1, 1], [], []>} : vector<32x32xbf16>, vector<32x16xbf16>, vector<32x16xf32> -> vector<32x16xf32>
    %c0_11 = arith.constant 0 : index
    %c0_12 = arith.constant 0 : index
    %11 = vector.load %arg6[%c0_11, %c0_12] : memref<1x16xf32, #tpu.memory_space<vmem>>, vector<1x16xf32>
    %12 = vector.broadcast %11 : vector<1x16xf32> to vector<32x16xf32>
    %13 = arith.addf %10, %12 : vector<32x16xf32>
    %cst_13 = arith.constant 0.000000e+00 : f32
    %14 = vector.broadcast %cst_13 : f32 to vector<32x16xf32>
    %15 = arith.maximumf %13, %14 : vector<32x16xf32>
    %16 = arith.truncf %15 : vector<32x16xf32> to vector<32x16xbf16>
    %cst_14 = arith.constant 0.000000e+00 : f32
    %17 = vector.broadcast %cst_14 : f32 to vector<32x16xf32>
    %c0_15 = arith.constant 0 : index
    %c0_16 = arith.constant 0 : index
    %c0_17 = arith.constant 0 : index
    %18 = vector.load %arg3[%c0_15, %c0_16, %c0_17] : memref<9x32x32xbf16, #tpu.memory_space<vmem>>, vector<1x32x32xbf16>
    %19 = vector.shape_cast %18 : vector<1x32x32xbf16> to vector<32x32xbf16>
    %cst_18 = arith.constant dense<0.000000e+00> : vector<32x16xf32>
    %20 = tpu.matmul %19, %16, %cst_18 {dimension_numbers = #tpu.dot_dimension_numbers<[1], [0], [0], [1], [0, 0, 1, 1], [], []>} : vector<32x32xbf16>, vector<32x16xbf16>, vector<32x16xf32> -> vector<32x16xf32>
    %21 = arith.truncf %20 : vector<32x16xf32> to vector<32x16xbf16>
    %c0_19 = arith.constant 0 : index
    %c0_20 = arith.constant 0 : index
    %c0_21 = arith.constant 0 : index
    %22 = vector.load %arg7[%c0_19, %c0_20, %c0_21] : memref<9x16x16xbf16, #tpu.memory_space<vmem>>, vector<1x16x16xbf16>
    %23 = vector.shape_cast %22 : vector<1x16x16xbf16> to vector<16x16xbf16>
    %cst_22 = arith.constant dense<0.000000e+00> : vector<32x16xf32>
    %24 = tpu.matmul %21, %23, %cst_22 {dimension_numbers = #tpu.dot_dimension_numbers<[1], [0], [0], [1], [0, 0, 1, 1], [], []>} : vector<32x16xbf16>, vector<16x16xbf16>, vector<32x16xf32> -> vector<32x16xf32>
    %25 = arith.addf %17, %24 : vector<32x16xf32>
    %c1 = arith.constant 1 : index
    %c0_23 = arith.constant 0 : index
    %c0_24 = arith.constant 0 : index
    %26 = vector.load %arg3[%c1, %c0_23, %c0_24] : memref<9x32x32xbf16, #tpu.memory_space<vmem>>, vector<1x32x32xbf16>
    %27 = vector.shape_cast %26 : vector<1x32x32xbf16> to vector<32x32xbf16>
    %cst_25 = arith.constant dense<0.000000e+00> : vector<32x16xf32>
    %28 = tpu.matmul %27, %16, %cst_25 {dimension_numbers = #tpu.dot_dimension_numbers<[1], [0], [0], [1], [0, 0, 1, 1], [], []>} : vector<32x32xbf16>, vector<32x16xbf16>, vector<32x16xf32> -> vector<32x16xf32>
    %29 = arith.truncf %28 : vector<32x16xf32> to vector<32x16xbf16>
    %c1_26 = arith.constant 1 : index
    %c0_27 = arith.constant 0 : index
    %c0_28 = arith.constant 0 : index
    %30 = vector.load %arg7[%c1_26, %c0_27, %c0_28] : memref<9x16x16xbf16, #tpu.memory_space<vmem>>, vector<1x16x16xbf16>
    %31 = vector.shape_cast %30 : vector<1x16x16xbf16> to vector<16x16xbf16>
    %cst_29 = arith.constant dense<0.000000e+00> : vector<32x16xf32>
    %32 = tpu.matmul %29, %31, %cst_29 {dimension_numbers = #tpu.dot_dimension_numbers<[1], [0], [0], [1], [0, 0, 1, 1], [], []>} : vector<32x16xbf16>, vector<16x16xbf16>, vector<32x16xf32> -> vector<32x16xf32>
    %33 = arith.addf %25, %32 : vector<32x16xf32>
    %c2 = arith.constant 2 : index
    %c0_30 = arith.constant 0 : index
    %c0_31 = arith.constant 0 : index
    %34 = vector.load %arg3[%c2, %c0_30, %c0_31] : memref<9x32x32xbf16, #tpu.memory_space<vmem>>, vector<1x32x32xbf16>
    %35 = vector.shape_cast %34 : vector<1x32x32xbf16> to vector<32x32xbf16>
    %cst_32 = arith.constant dense<0.000000e+00> : vector<32x16xf32>
    %36 = tpu.matmul %35, %16, %cst_32 {dimension_numbers = #tpu.dot_dimension_numbers<[1], [0], [0], [1], [0, 0, 1, 1], [], []>} : vector<32x32xbf16>, vector<32x16xbf16>, vector<32x16xf32> -> vector<32x16xf32>
    %37 = arith.truncf %36 : vector<32x16xf32> to vector<32x16xbf16>
    %c2_33 = arith.constant 2 : index
    %c0_34 = arith.constant 0 : index
    %c0_35 = arith.constant 0 : index
    %38 = vector.load %arg7[%c2_33, %c0_34, %c0_35] : memref<9x16x16xbf16, #tpu.memory_space<vmem>>, vector<1x16x16xbf16>
    %39 = vector.shape_cast %38 : vector<1x16x16xbf16> to vector<16x16xbf16>
    %cst_36 = arith.constant dense<0.000000e+00> : vector<32x16xf32>
    %40 = tpu.matmul %37, %39, %cst_36 {dimension_numbers = #tpu.dot_dimension_numbers<[1], [0], [0], [1], [0, 0, 1, 1], [], []>} : vector<32x16xbf16>, vector<16x16xbf16>, vector<32x16xf32> -> vector<32x16xf32>
    %41 = arith.addf %33, %40 : vector<32x16xf32>
    %c3 = arith.constant 3 : index
    %c0_37 = arith.constant 0 : index
    %c0_38 = arith.constant 0 : index
    %42 = vector.load %arg3[%c3, %c0_37, %c0_38] : memref<9x32x32xbf16, #tpu.memory_space<vmem>>, vector<1x32x32xbf16>
    %43 = vector.shape_cast %42 : vector<1x32x32xbf16> to vector<32x32xbf16>
    %cst_39 = arith.constant dense<0.000000e+00> : vector<32x16xf32>
    %44 = tpu.matmul %43, %16, %cst_39 {dimension_numbers = #tpu.dot_dimension_numbers<[1], [0], [0], [1], [0, 0, 1, 1], [], []>} : vector<32x32xbf16>, vector<32x16xbf16>, vector<32x16xf32> -> vector<32x16xf32>
    %45 = arith.truncf %44 : vector<32x16xf32> to vector<32x16xbf16>
    %c3_40 = arith.constant 3 : index
    %c0_41 = arith.constant 0 : index
    %c0_42 = arith.constant 0 : index
    %46 = vector.load %arg7[%c3_40, %c0_41, %c0_42] : memref<9x16x16xbf16, #tpu.memory_space<vmem>>, vector<1x16x16xbf16>
    %47 = vector.shape_cast %46 : vector<1x16x16xbf16> to vector<16x16xbf16>
    %cst_43 = arith.constant dense<0.000000e+00> : vector<32x16xf32>
    %48 = tpu.matmul %45, %47, %cst_43 {dimension_numbers = #tpu.dot_dimension_numbers<[1], [0], [0], [1], [0, 0, 1, 1], [], []>} : vector<32x16xbf16>, vector<16x16xbf16>, vector<32x16xf32> -> vector<32x16xf32>
    %49 = arith.addf %41, %48 : vector<32x16xf32>
    %c4 = arith.constant 4 : index
    %c0_44 = arith.constant 0 : index
    %c0_45 = arith.constant 0 : index
    %50 = vector.load %arg3[%c4, %c0_44, %c0_45] : memref<9x32x32xbf16, #tpu.memory_space<vmem>>, vector<1x32x32xbf16>
    %51 = vector.shape_cast %50 : vector<1x32x32xbf16> to vector<32x32xbf16>
    %cst_46 = arith.constant dense<0.000000e+00> : vector<32x16xf32>
    %52 = tpu.matmul %51, %16, %cst_46 {dimension_numbers = #tpu.dot_dimension_numbers<[1], [0], [0], [1], [0, 0, 1, 1], [], []>} : vector<32x32xbf16>, vector<32x16xbf16>, vector<32x16xf32> -> vector<32x16xf32>
    %53 = arith.truncf %52 : vector<32x16xf32> to vector<32x16xbf16>
    %c4_47 = arith.constant 4 : index
    %c0_48 = arith.constant 0 : index
    %c0_49 = arith.constant 0 : index
    %54 = vector.load %arg7[%c4_47, %c0_48, %c0_49] : memref<9x16x16xbf16, #tpu.memory_space<vmem>>, vector<1x16x16xbf16>
    %55 = vector.shape_cast %54 : vector<1x16x16xbf16> to vector<16x16xbf16>
    %cst_50 = arith.constant dense<0.000000e+00> : vector<32x16xf32>
    %56 = tpu.matmul %53, %55, %cst_50 {dimension_numbers = #tpu.dot_dimension_numbers<[1], [0], [0], [1], [0, 0, 1, 1], [], []>} : vector<32x16xbf16>, vector<16x16xbf16>, vector<32x16xf32> -> vector<32x16xf32>
    %57 = arith.addf %49, %56 : vector<32x16xf32>
    %c5 = arith.constant 5 : index
    %c0_51 = arith.constant 0 : index
    %c0_52 = arith.constant 0 : index
    %58 = vector.load %arg3[%c5, %c0_51, %c0_52] : memref<9x32x32xbf16, #tpu.memory_space<vmem>>, vector<1x32x32xbf16>
    %59 = vector.shape_cast %58 : vector<1x32x32xbf16> to vector<32x32xbf16>
    %cst_53 = arith.constant dense<0.000000e+00> : vector<32x16xf32>
    %60 = tpu.matmul %59, %16, %cst_53 {dimension_numbers = #tpu.dot_dimension_numbers<[1], [0], [0], [1], [0, 0, 1, 1], [], []>} : vector<32x32xbf16>, vector<32x16xbf16>, vector<32x16xf32> -> vector<32x16xf32>
    %61 = arith.truncf %60 : vector<32x16xf32> to vector<32x16xbf16>
    %c5_54 = arith.constant 5 : index
    %c0_55 = arith.constant 0 : index
    %c0_56 = arith.constant 0 : index
    %62 = vector.load %arg7[%c5_54, %c0_55, %c0_56] : memref<9x16x16xbf16, #tpu.memory_space<vmem>>, vector<1x16x16xbf16>
    %63 = vector.shape_cast %62 : vector<1x16x16xbf16> to vector<16x16xbf16>
    %cst_57 = arith.constant dense<0.000000e+00> : vector<32x16xf32>
    %64 = tpu.matmul %61, %63, %cst_57 {dimension_numbers = #tpu.dot_dimension_numbers<[1], [0], [0], [1], [0, 0, 1, 1], [], []>} : vector<32x16xbf16>, vector<16x16xbf16>, vector<32x16xf32> -> vector<32x16xf32>
    %65 = arith.addf %57, %64 : vector<32x16xf32>
    %c6 = arith.constant 6 : index
    %c0_58 = arith.constant 0 : index
    %c0_59 = arith.constant 0 : index
    %66 = vector.load %arg3[%c6, %c0_58, %c0_59] : memref<9x32x32xbf16, #tpu.memory_space<vmem>>, vector<1x32x32xbf16>
    %67 = vector.shape_cast %66 : vector<1x32x32xbf16> to vector<32x32xbf16>
    %cst_60 = arith.constant dense<0.000000e+00> : vector<32x16xf32>
    %68 = tpu.matmul %67, %16, %cst_60 {dimension_numbers = #tpu.dot_dimension_numbers<[1], [0], [0], [1], [0, 0, 1, 1], [], []>} : vector<32x32xbf16>, vector<32x16xbf16>, vector<32x16xf32> -> vector<32x16xf32>
    %69 = arith.truncf %68 : vector<32x16xf32> to vector<32x16xbf16>
    %c6_61 = arith.constant 6 : index
    %c0_62 = arith.constant 0 : index
    %c0_63 = arith.constant 0 : index
    %70 = vector.load %arg7[%c6_61, %c0_62, %c0_63] : memref<9x16x16xbf16, #tpu.memory_space<vmem>>, vector<1x16x16xbf16>
    %71 = vector.shape_cast %70 : vector<1x16x16xbf16> to vector<16x16xbf16>
    %cst_64 = arith.constant dense<0.000000e+00> : vector<32x16xf32>
    %72 = tpu.matmul %69, %71, %cst_64 {dimension_numbers = #tpu.dot_dimension_numbers<[1], [0], [0], [1], [0, 0, 1, 1], [], []>} : vector<32x16xbf16>, vector<16x16xbf16>, vector<32x16xf32> -> vector<32x16xf32>
    %73 = arith.addf %65, %72 : vector<32x16xf32>
    %c7 = arith.constant 7 : index
    %c0_65 = arith.constant 0 : index
    %c0_66 = arith.constant 0 : index
    %74 = vector.load %arg3[%c7, %c0_65, %c0_66] : memref<9x32x32xbf16, #tpu.memory_space<vmem>>, vector<1x32x32xbf16>
    %75 = vector.shape_cast %74 : vector<1x32x32xbf16> to vector<32x32xbf16>
    %cst_67 = arith.constant dense<0.000000e+00> : vector<32x16xf32>
    %76 = tpu.matmul %75, %16, %cst_67 {dimension_numbers = #tpu.dot_dimension_numbers<[1], [0], [0], [1], [0, 0, 1, 1], [], []>} : vector<32x32xbf16>, vector<32x16xbf16>, vector<32x16xf32> -> vector<32x16xf32>
    %77 = arith.truncf %76 : vector<32x16xf32> to vector<32x16xbf16>
    %c7_68 = arith.constant 7 : index
    %c0_69 = arith.constant 0 : index
    %c0_70 = arith.constant 0 : index
    %78 = vector.load %arg7[%c7_68, %c0_69, %c0_70] : memref<9x16x16xbf16, #tpu.memory_space<vmem>>, vector<1x16x16xbf16>
    %79 = vector.shape_cast %78 : vector<1x16x16xbf16> to vector<16x16xbf16>
    %cst_71 = arith.constant dense<0.000000e+00> : vector<32x16xf32>
    %80 = tpu.matmul %77, %79, %cst_71 {dimension_numbers = #tpu.dot_dimension_numbers<[1], [0], [0], [1], [0, 0, 1, 1], [], []>} : vector<32x16xbf16>, vector<16x16xbf16>, vector<32x16xf32> -> vector<32x16xf32>
    %81 = arith.addf %73, %80 : vector<32x16xf32>
    %c8 = arith.constant 8 : index
    %c0_72 = arith.constant 0 : index
    %c0_73 = arith.constant 0 : index
    %82 = vector.load %arg3[%c8, %c0_72, %c0_73] : memref<9x32x32xbf16, #tpu.memory_space<vmem>>, vector<1x32x32xbf16>
    %83 = vector.shape_cast %82 : vector<1x32x32xbf16> to vector<32x32xbf16>
    %cst_74 = arith.constant dense<0.000000e+00> : vector<32x16xf32>
    %84 = tpu.matmul %83, %16, %cst_74 {dimension_numbers = #tpu.dot_dimension_numbers<[1], [0], [0], [1], [0, 0, 1, 1], [], []>} : vector<32x32xbf16>, vector<32x16xbf16>, vector<32x16xf32> -> vector<32x16xf32>
    %85 = arith.truncf %84 : vector<32x16xf32> to vector<32x16xbf16>
    %c8_75 = arith.constant 8 : index
    %c0_76 = arith.constant 0 : index
    %c0_77 = arith.constant 0 : index
    %86 = vector.load %arg7[%c8_75, %c0_76, %c0_77] : memref<9x16x16xbf16, #tpu.memory_space<vmem>>, vector<1x16x16xbf16>
    %87 = vector.shape_cast %86 : vector<1x16x16xbf16> to vector<16x16xbf16>
    %cst_78 = arith.constant dense<0.000000e+00> : vector<32x16xf32>
    %88 = tpu.matmul %85, %87, %cst_78 {dimension_numbers = #tpu.dot_dimension_numbers<[1], [0], [0], [1], [0, 0, 1, 1], [], []>} : vector<32x16xbf16>, vector<16x16xbf16>, vector<32x16xf32> -> vector<32x16xf32>
    %89 = arith.addf %81, %88 : vector<32x16xf32>
    %c0_79 = arith.constant 0 : index
    %c0_80 = arith.constant 0 : index
    %90 = vector.load %arg8[%c0_79, %c0_80] : memref<1x16xf32, #tpu.memory_space<vmem>>, vector<1x16xf32>
    %91 = vector.broadcast %90 : vector<1x16xf32> to vector<32x16xf32>
    %92 = arith.addf %89, %91 : vector<32x16xf32>
    %cst_81 = arith.constant 0.000000e+00 : f32
    %93 = vector.broadcast %cst_81 : f32 to vector<32x16xf32>
    %94 = arith.maximumf %92, %93 : vector<32x16xf32>
    %95 = arith.truncf %94 : vector<32x16xf32> to vector<32x16xbf16>
    %c0_82 = arith.constant 0 : index
    %c0_83 = arith.constant 0 : index
    %96 = vector.load %arg9[%c0_82, %c0_83] : memref<16x64xbf16, #tpu.memory_space<vmem>>, vector<16x64xbf16>
    %cst_84 = arith.constant dense<0.000000e+00> : vector<32x64xf32>
    %97 = tpu.matmul %95, %96, %cst_84 {dimension_numbers = #tpu.dot_dimension_numbers<[1], [0], [0], [1], [0, 0, 1, 1], [], []>} : vector<32x16xbf16>, vector<16x64xbf16>, vector<32x64xf32> -> vector<32x64xf32>
    %c0_85 = arith.constant 0 : index
    %c0_86 = arith.constant 0 : index
    %98 = vector.load %arg10[%c0_85, %c0_86] : memref<1x64xf32, #tpu.memory_space<vmem>>, vector<1x64xf32>
    %99 = vector.broadcast %98 : vector<1x64xf32> to vector<32x64xf32>
    %100 = arith.addf %97, %99 : vector<32x64xf32>
    %101 = arith.addf %100, %8 : vector<32x64xf32>
    %cst_87 = arith.constant 0.000000e+00 : f32
    %102 = vector.broadcast %cst_87 : f32 to vector<32x64xf32>
    %103 = arith.maximumf %101, %102 : vector<32x64xf32>
    %104 = arith.truncf %103 : vector<32x64xf32> to vector<32x64xbf16>
    %105 = arith.extf %104 : vector<32x64xbf16> to vector<32x64xf32>
    %c0_88 = arith.constant 0 : index
    %c0_89 = arith.constant 0 : index
    %106 = vector.load %arg13[%c0_88, %c0_89] : memref<64x16xbf16, #tpu.memory_space<vmem>>, vector<64x16xbf16>
    %cst_90 = arith.constant dense<0.000000e+00> : vector<32x16xf32>
    %107 = tpu.matmul %104, %106, %cst_90 {dimension_numbers = #tpu.dot_dimension_numbers<[1], [0], [0], [1], [0, 0, 1, 1], [], []>} : vector<32x64xbf16>, vector<64x16xbf16>, vector<32x16xf32> -> vector<32x16xf32>
    %c0_91 = arith.constant 0 : index
    %c0_92 = arith.constant 0 : index
    %108 = vector.load %arg14[%c0_91, %c0_92] : memref<1x16xf32, #tpu.memory_space<vmem>>, vector<1x16xf32>
    %109 = vector.broadcast %108 : vector<1x16xf32> to vector<32x16xf32>
    %110 = arith.addf %107, %109 : vector<32x16xf32>
    %cst_93 = arith.constant 0.000000e+00 : f32
    %111 = vector.broadcast %cst_93 : f32 to vector<32x16xf32>
    %112 = arith.maximumf %110, %111 : vector<32x16xf32>
    %113 = arith.truncf %112 : vector<32x16xf32> to vector<32x16xbf16>
    %cst_94 = arith.constant 0.000000e+00 : f32
    %114 = vector.broadcast %cst_94 : f32 to vector<32x16xf32>
    %c0_95 = arith.constant 0 : index
    %c0_96 = arith.constant 0 : index
    %c0_97 = arith.constant 0 : index
    %115 = vector.load %arg3[%c0_95, %c0_96, %c0_97] : memref<9x32x32xbf16, #tpu.memory_space<vmem>>, vector<1x32x32xbf16>
    %116 = vector.shape_cast %115 : vector<1x32x32xbf16> to vector<32x32xbf16>
    %cst_98 = arith.constant dense<0.000000e+00> : vector<32x16xf32>
    %117 = tpu.matmul %116, %113, %cst_98 {dimension_numbers = #tpu.dot_dimension_numbers<[1], [0], [0], [1], [0, 0, 1, 1], [], []>} : vector<32x32xbf16>, vector<32x16xbf16>, vector<32x16xf32> -> vector<32x16xf32>
    %118 = arith.truncf %117 : vector<32x16xf32> to vector<32x16xbf16>
    %c0_99 = arith.constant 0 : index
    %c0_100 = arith.constant 0 : index
    %c0_101 = arith.constant 0 : index
    %119 = vector.load %arg15[%c0_99, %c0_100, %c0_101] : memref<9x16x16xbf16, #tpu.memory_space<vmem>>, vector<1x16x16xbf16>
    %120 = vector.shape_cast %119 : vector<1x16x16xbf16> to vector<16x16xbf16>
    %cst_102 = arith.constant dense<0.000000e+00> : vector<32x16xf32>
    %121 = tpu.matmul %118, %120, %cst_102 {dimension_numbers = #tpu.dot_dimension_numbers<[1], [0], [0], [1], [0, 0, 1, 1], [], []>} : vector<32x16xbf16>, vector<16x16xbf16>, vector<32x16xf32> -> vector<32x16xf32>
    %122 = arith.addf %114, %121 : vector<32x16xf32>
    %c1_103 = arith.constant 1 : index
    %c0_104 = arith.constant 0 : index
    %c0_105 = arith.constant 0 : index
    %123 = vector.load %arg3[%c1_103, %c0_104, %c0_105] : memref<9x32x32xbf16, #tpu.memory_space<vmem>>, vector<1x32x32xbf16>
    %124 = vector.shape_cast %123 : vector<1x32x32xbf16> to vector<32x32xbf16>
    %cst_106 = arith.constant dense<0.000000e+00> : vector<32x16xf32>
    %125 = tpu.matmul %124, %113, %cst_106 {dimension_numbers = #tpu.dot_dimension_numbers<[1], [0], [0], [1], [0, 0, 1, 1], [], []>} : vector<32x32xbf16>, vector<32x16xbf16>, vector<32x16xf32> -> vector<32x16xf32>
    %126 = arith.truncf %125 : vector<32x16xf32> to vector<32x16xbf16>
    %c1_107 = arith.constant 1 : index
    %c0_108 = arith.constant 0 : index
    %c0_109 = arith.constant 0 : index
    %127 = vector.load %arg15[%c1_107, %c0_108, %c0_109] : memref<9x16x16xbf16, #tpu.memory_space<vmem>>, vector<1x16x16xbf16>
    %128 = vector.shape_cast %127 : vector<1x16x16xbf16> to vector<16x16xbf16>
    %cst_110 = arith.constant dense<0.000000e+00> : vector<32x16xf32>
    %129 = tpu.matmul %126, %128, %cst_110 {dimension_numbers = #tpu.dot_dimension_numbers<[1], [0], [0], [1], [0, 0, 1, 1], [], []>} : vector<32x16xbf16>, vector<16x16xbf16>, vector<32x16xf32> -> vector<32x16xf32>
    %130 = arith.addf %122, %129 : vector<32x16xf32>
    %c2_111 = arith.constant 2 : index
    %c0_112 = arith.constant 0 : index
    %c0_113 = arith.constant 0 : index
    %131 = vector.load %arg3[%c2_111, %c0_112, %c0_113] : memref<9x32x32xbf16, #tpu.memory_space<vmem>>, vector<1x32x32xbf16>
    %132 = vector.shape_cast %131 : vector<1x32x32xbf16> to vector<32x32xbf16>
    %cst_114 = arith.constant dense<0.000000e+00> : vector<32x16xf32>
    %133 = tpu.matmul %132, %113, %cst_114 {dimension_numbers = #tpu.dot_dimension_numbers<[1], [0], [0], [1], [0, 0, 1, 1], [], []>} : vector<32x32xbf16>, vector<32x16xbf16>, vector<32x16xf32> -> vector<32x16xf32>
    %134 = arith.truncf %133 : vector<32x16xf32> to vector<32x16xbf16>
    %c2_115 = arith.constant 2 : index
    %c0_116 = arith.constant 0 : index
    %c0_117 = arith.constant 0 : index
    %135 = vector.load %arg15[%c2_115, %c0_116, %c0_117] : memref<9x16x16xbf16, #tpu.memory_space<vmem>>, vector<1x16x16xbf16>
    %136 = vector.shape_cast %135 : vector<1x16x16xbf16> to vector<16x16xbf16>
    %cst_118 = arith.constant dense<0.000000e+00> : vector<32x16xf32>
    %137 = tpu.matmul %134, %136, %cst_118 {dimension_numbers = #tpu.dot_dimension_numbers<[1], [0], [0], [1], [0, 0, 1, 1], [], []>} : vector<32x16xbf16>, vector<16x16xbf16>, vector<32x16xf32> -> vector<32x16xf32>
    %138 = arith.addf %130, %137 : vector<32x16xf32>
    %c3_119 = arith.constant 3 : index
    %c0_120 = arith.constant 0 : index
    %c0_121 = arith.constant 0 : index
    %139 = vector.load %arg3[%c3_119, %c0_120, %c0_121] : memref<9x32x32xbf16, #tpu.memory_space<vmem>>, vector<1x32x32xbf16>
    %140 = vector.shape_cast %139 : vector<1x32x32xbf16> to vector<32x32xbf16>
    %cst_122 = arith.constant dense<0.000000e+00> : vector<32x16xf32>
    %141 = tpu.matmul %140, %113, %cst_122 {dimension_numbers = #tpu.dot_dimension_numbers<[1], [0], [0], [1], [0, 0, 1, 1], [], []>} : vector<32x32xbf16>, vector<32x16xbf16>, vector<32x16xf32> -> vector<32x16xf32>
    %142 = arith.truncf %141 : vector<32x16xf32> to vector<32x16xbf16>
    %c3_123 = arith.constant 3 : index
    %c0_124 = arith.constant 0 : index
    %c0_125 = arith.constant 0 : index
    %143 = vector.load %arg15[%c3_123, %c0_124, %c0_125] : memref<9x16x16xbf16, #tpu.memory_space<vmem>>, vector<1x16x16xbf16>
    %144 = vector.shape_cast %143 : vector<1x16x16xbf16> to vector<16x16xbf16>
    %cst_126 = arith.constant dense<0.000000e+00> : vector<32x16xf32>
    %145 = tpu.matmul %142, %144, %cst_126 {dimension_numbers = #tpu.dot_dimension_numbers<[1], [0], [0], [1], [0, 0, 1, 1], [], []>} : vector<32x16xbf16>, vector<16x16xbf16>, vector<32x16xf32> -> vector<32x16xf32>
    %146 = arith.addf %138, %145 : vector<32x16xf32>
    %c4_127 = arith.constant 4 : index
    %c0_128 = arith.constant 0 : index
    %c0_129 = arith.constant 0 : index
    %147 = vector.load %arg3[%c4_127, %c0_128, %c0_129] : memref<9x32x32xbf16, #tpu.memory_space<vmem>>, vector<1x32x32xbf16>
    %148 = vector.shape_cast %147 : vector<1x32x32xbf16> to vector<32x32xbf16>
    %cst_130 = arith.constant dense<0.000000e+00> : vector<32x16xf32>
    %149 = tpu.matmul %148, %113, %cst_130 {dimension_numbers = #tpu.dot_dimension_numbers<[1], [0], [0], [1], [0, 0, 1, 1], [], []>} : vector<32x32xbf16>, vector<32x16xbf16>, vector<32x16xf32> -> vector<32x16xf32>
    %150 = arith.truncf %149 : vector<32x16xf32> to vector<32x16xbf16>
    %c4_131 = arith.constant 4 : index
    %c0_132 = arith.constant 0 : index
    %c0_133 = arith.constant 0 : index
    %151 = vector.load %arg15[%c4_131, %c0_132, %c0_133] : memref<9x16x16xbf16, #tpu.memory_space<vmem>>, vector<1x16x16xbf16>
    %152 = vector.shape_cast %151 : vector<1x16x16xbf16> to vector<16x16xbf16>
    %cst_134 = arith.constant dense<0.000000e+00> : vector<32x16xf32>
    %153 = tpu.matmul %150, %152, %cst_134 {dimension_numbers = #tpu.dot_dimension_numbers<[1], [0], [0], [1], [0, 0, 1, 1], [], []>} : vector<32x16xbf16>, vector<16x16xbf16>, vector<32x16xf32> -> vector<32x16xf32>
    %154 = arith.addf %146, %153 : vector<32x16xf32>
    %c5_135 = arith.constant 5 : index
    %c0_136 = arith.constant 0 : index
    %c0_137 = arith.constant 0 : index
    %155 = vector.load %arg3[%c5_135, %c0_136, %c0_137] : memref<9x32x32xbf16, #tpu.memory_space<vmem>>, vector<1x32x32xbf16>
    %156 = vector.shape_cast %155 : vector<1x32x32xbf16> to vector<32x32xbf16>
    %cst_138 = arith.constant dense<0.000000e+00> : vector<32x16xf32>
    %157 = tpu.matmul %156, %113, %cst_138 {dimension_numbers = #tpu.dot_dimension_numbers<[1], [0], [0], [1], [0, 0, 1, 1], [], []>} : vector<32x32xbf16>, vector<32x16xbf16>, vector<32x16xf32> -> vector<32x16xf32>
    %158 = arith.truncf %157 : vector<32x16xf32> to vector<32x16xbf16>
    %c5_139 = arith.constant 5 : index
    %c0_140 = arith.constant 0 : index
    %c0_141 = arith.constant 0 : index
    %159 = vector.load %arg15[%c5_139, %c0_140, %c0_141] : memref<9x16x16xbf16, #tpu.memory_space<vmem>>, vector<1x16x16xbf16>
    %160 = vector.shape_cast %159 : vector<1x16x16xbf16> to vector<16x16xbf16>
    %cst_142 = arith.constant dense<0.000000e+00> : vector<32x16xf32>
    %161 = tpu.matmul %158, %160, %cst_142 {dimension_numbers = #tpu.dot_dimension_numbers<[1], [0], [0], [1], [0, 0, 1, 1], [], []>} : vector<32x16xbf16>, vector<16x16xbf16>, vector<32x16xf32> -> vector<32x16xf32>
    %162 = arith.addf %154, %161 : vector<32x16xf32>
    %c6_143 = arith.constant 6 : index
    %c0_144 = arith.constant 0 : index
    %c0_145 = arith.constant 0 : index
    %163 = vector.load %arg3[%c6_143, %c0_144, %c0_145] : memref<9x32x32xbf16, #tpu.memory_space<vmem>>, vector<1x32x32xbf16>
    %164 = vector.shape_cast %163 : vector<1x32x32xbf16> to vector<32x32xbf16>
    %cst_146 = arith.constant dense<0.000000e+00> : vector<32x16xf32>
    %165 = tpu.matmul %164, %113, %cst_146 {dimension_numbers = #tpu.dot_dimension_numbers<[1], [0], [0], [1], [0, 0, 1, 1], [], []>} : vector<32x32xbf16>, vector<32x16xbf16>, vector<32x16xf32> -> vector<32x16xf32>
    %166 = arith.truncf %165 : vector<32x16xf32> to vector<32x16xbf16>
    %c6_147 = arith.constant 6 : index
    %c0_148 = arith.constant 0 : index
    %c0_149 = arith.constant 0 : index
    %167 = vector.load %arg15[%c6_147, %c0_148, %c0_149] : memref<9x16x16xbf16, #tpu.memory_space<vmem>>, vector<1x16x16xbf16>
    %168 = vector.shape_cast %167 : vector<1x16x16xbf16> to vector<16x16xbf16>
    %cst_150 = arith.constant dense<0.000000e+00> : vector<32x16xf32>
    %169 = tpu.matmul %166, %168, %cst_150 {dimension_numbers = #tpu.dot_dimension_numbers<[1], [0], [0], [1], [0, 0, 1, 1], [], []>} : vector<32x16xbf16>, vector<16x16xbf16>, vector<32x16xf32> -> vector<32x16xf32>
    %170 = arith.addf %162, %169 : vector<32x16xf32>
    %c7_151 = arith.constant 7 : index
    %c0_152 = arith.constant 0 : index
    %c0_153 = arith.constant 0 : index
    %171 = vector.load %arg3[%c7_151, %c0_152, %c0_153] : memref<9x32x32xbf16, #tpu.memory_space<vmem>>, vector<1x32x32xbf16>
    %172 = vector.shape_cast %171 : vector<1x32x32xbf16> to vector<32x32xbf16>
    %cst_154 = arith.constant dense<0.000000e+00> : vector<32x16xf32>
    %173 = tpu.matmul %172, %113, %cst_154 {dimension_numbers = #tpu.dot_dimension_numbers<[1], [0], [0], [1], [0, 0, 1, 1], [], []>} : vector<32x32xbf16>, vector<32x16xbf16>, vector<32x16xf32> -> vector<32x16xf32>
    %174 = arith.truncf %173 : vector<32x16xf32> to vector<32x16xbf16>
    %c7_155 = arith.constant 7 : index
    %c0_156 = arith.constant 0 : index
    %c0_157 = arith.constant 0 : index
    %175 = vector.load %arg15[%c7_155, %c0_156, %c0_157] : memref<9x16x16xbf16, #tpu.memory_space<vmem>>, vector<1x16x16xbf16>
    %176 = vector.shape_cast %175 : vector<1x16x16xbf16> to vector<16x16xbf16>
    %cst_158 = arith.constant dense<0.000000e+00> : vector<32x16xf32>
    %177 = tpu.matmul %174, %176, %cst_158 {dimension_numbers = #tpu.dot_dimension_numbers<[1], [0], [0], [1], [0, 0, 1, 1], [], []>} : vector<32x16xbf16>, vector<16x16xbf16>, vector<32x16xf32> -> vector<32x16xf32>
    %178 = arith.addf %170, %177 : vector<32x16xf32>
    %c8_159 = arith.constant 8 : index
    %c0_160 = arith.constant 0 : index
    %c0_161 = arith.constant 0 : index
    %179 = vector.load %arg3[%c8_159, %c0_160, %c0_161] : memref<9x32x32xbf16, #tpu.memory_space<vmem>>, vector<1x32x32xbf16>
    %180 = vector.shape_cast %179 : vector<1x32x32xbf16> to vector<32x32xbf16>
    %cst_162 = arith.constant dense<0.000000e+00> : vector<32x16xf32>
    %181 = tpu.matmul %180, %113, %cst_162 {dimension_numbers = #tpu.dot_dimension_numbers<[1], [0], [0], [1], [0, 0, 1, 1], [], []>} : vector<32x32xbf16>, vector<32x16xbf16>, vector<32x16xf32> -> vector<32x16xf32>
    %182 = arith.truncf %181 : vector<32x16xf32> to vector<32x16xbf16>
    %c8_163 = arith.constant 8 : index
    %c0_164 = arith.constant 0 : index
    %c0_165 = arith.constant 0 : index
    %183 = vector.load %arg15[%c8_163, %c0_164, %c0_165] : memref<9x16x16xbf16, #tpu.memory_space<vmem>>, vector<1x16x16xbf16>
    %184 = vector.shape_cast %183 : vector<1x16x16xbf16> to vector<16x16xbf16>
    %cst_166 = arith.constant dense<0.000000e+00> : vector<32x16xf32>
    %185 = tpu.matmul %182, %184, %cst_166 {dimension_numbers = #tpu.dot_dimension_numbers<[1], [0], [0], [1], [0, 0, 1, 1], [], []>} : vector<32x16xbf16>, vector<16x16xbf16>, vector<32x16xf32> -> vector<32x16xf32>
    %186 = arith.addf %178, %185 : vector<32x16xf32>
    %c0_167 = arith.constant 0 : index
    %c0_168 = arith.constant 0 : index
    %187 = vector.load %arg16[%c0_167, %c0_168] : memref<1x16xf32, #tpu.memory_space<vmem>>, vector<1x16xf32>
    %188 = vector.broadcast %187 : vector<1x16xf32> to vector<32x16xf32>
    %189 = arith.addf %186, %188 : vector<32x16xf32>
    %cst_169 = arith.constant 0.000000e+00 : f32
    %190 = vector.broadcast %cst_169 : f32 to vector<32x16xf32>
    %191 = arith.maximumf %189, %190 : vector<32x16xf32>
    %192 = arith.truncf %191 : vector<32x16xf32> to vector<32x16xbf16>
    %c0_170 = arith.constant 0 : index
    %c0_171 = arith.constant 0 : index
    %193 = vector.load %arg17[%c0_170, %c0_171] : memref<16x64xbf16, #tpu.memory_space<vmem>>, vector<16x64xbf16>
    %cst_172 = arith.constant dense<0.000000e+00> : vector<32x64xf32>
    %194 = tpu.matmul %192, %193, %cst_172 {dimension_numbers = #tpu.dot_dimension_numbers<[1], [0], [0], [1], [0, 0, 1, 1], [], []>} : vector<32x16xbf16>, vector<16x64xbf16>, vector<32x64xf32> -> vector<32x64xf32>
    %c0_173 = arith.constant 0 : index
    %c0_174 = arith.constant 0 : index
    %195 = vector.load %arg18[%c0_173, %c0_174] : memref<1x64xf32, #tpu.memory_space<vmem>>, vector<1x64xf32>
    %196 = vector.broadcast %195 : vector<1x64xf32> to vector<32x64xf32>
    %197 = arith.addf %194, %196 : vector<32x64xf32>
    %198 = arith.addf %197, %105 : vector<32x64xf32>
    %cst_175 = arith.constant 0.000000e+00 : f32
    %199 = vector.broadcast %cst_175 : f32 to vector<32x64xf32>
    %200 = arith.maximumf %198, %199 : vector<32x64xf32>
    %201 = arith.truncf %200 : vector<32x64xf32> to vector<32x64xbf16>
    %202 = arith.extf %201 : vector<32x64xbf16> to vector<32x64xf32>
    %c0_176 = arith.constant 0 : index
    %c0_177 = arith.constant 0 : index
    %203 = vector.load %arg19[%c0_176, %c0_177] : memref<64x16xbf16, #tpu.memory_space<vmem>>, vector<64x16xbf16>
    %cst_178 = arith.constant dense<0.000000e+00> : vector<32x16xf32>
    %204 = tpu.matmul %201, %203, %cst_178 {dimension_numbers = #tpu.dot_dimension_numbers<[1], [0], [0], [1], [0, 0, 1, 1], [], []>} : vector<32x64xbf16>, vector<64x16xbf16>, vector<32x16xf32> -> vector<32x16xf32>
    %c0_179 = arith.constant 0 : index
    %c0_180 = arith.constant 0 : index
    %205 = vector.load %arg20[%c0_179, %c0_180] : memref<1x16xf32, #tpu.memory_space<vmem>>, vector<1x16xf32>
    %206 = vector.broadcast %205 : vector<1x16xf32> to vector<32x16xf32>
    %207 = arith.addf %204, %206 : vector<32x16xf32>
    %cst_181 = arith.constant 0.000000e+00 : f32
    %208 = vector.broadcast %cst_181 : f32 to vector<32x16xf32>
    %209 = arith.maximumf %207, %208 : vector<32x16xf32>
    %210 = arith.truncf %209 : vector<32x16xf32> to vector<32x16xbf16>
    %cst_182 = arith.constant 0.000000e+00 : f32
    %211 = vector.broadcast %cst_182 : f32 to vector<32x16xf32>
    %c0_183 = arith.constant 0 : index
    %c0_184 = arith.constant 0 : index
    %c0_185 = arith.constant 0 : index
    %212 = vector.load %arg3[%c0_183, %c0_184, %c0_185] : memref<9x32x32xbf16, #tpu.memory_space<vmem>>, vector<1x32x32xbf16>
    %213 = vector.shape_cast %212 : vector<1x32x32xbf16> to vector<32x32xbf16>
    %cst_186 = arith.constant dense<0.000000e+00> : vector<32x16xf32>
    %214 = tpu.matmul %213, %210, %cst_186 {dimension_numbers = #tpu.dot_dimension_numbers<[1], [0], [0], [1], [0, 0, 1, 1], [], []>} : vector<32x32xbf16>, vector<32x16xbf16>, vector<32x16xf32> -> vector<32x16xf32>
    %215 = arith.truncf %214 : vector<32x16xf32> to vector<32x16xbf16>
    %c0_187 = arith.constant 0 : index
    %c0_188 = arith.constant 0 : index
    %c0_189 = arith.constant 0 : index
    %216 = vector.load %arg21[%c0_187, %c0_188, %c0_189] : memref<9x16x16xbf16, #tpu.memory_space<vmem>>, vector<1x16x16xbf16>
    %217 = vector.shape_cast %216 : vector<1x16x16xbf16> to vector<16x16xbf16>
    %cst_190 = arith.constant dense<0.000000e+00> : vector<32x16xf32>
    %218 = tpu.matmul %215, %217, %cst_190 {dimension_numbers = #tpu.dot_dimension_numbers<[1], [0], [0], [1], [0, 0, 1, 1], [], []>} : vector<32x16xbf16>, vector<16x16xbf16>, vector<32x16xf32> -> vector<32x16xf32>
    %219 = arith.addf %211, %218 : vector<32x16xf32>
    %c1_191 = arith.constant 1 : index
    %c0_192 = arith.constant 0 : index
    %c0_193 = arith.constant 0 : index
    %220 = vector.load %arg3[%c1_191, %c0_192, %c0_193] : memref<9x32x32xbf16, #tpu.memory_space<vmem>>, vector<1x32x32xbf16>
    %221 = vector.shape_cast %220 : vector<1x32x32xbf16> to vector<32x32xbf16>
    %cst_194 = arith.constant dense<0.000000e+00> : vector<32x16xf32>
    %222 = tpu.matmul %221, %210, %cst_194 {dimension_numbers = #tpu.dot_dimension_numbers<[1], [0], [0], [1], [0, 0, 1, 1], [], []>} : vector<32x32xbf16>, vector<32x16xbf16>, vector<32x16xf32> -> vector<32x16xf32>
    %223 = arith.truncf %222 : vector<32x16xf32> to vector<32x16xbf16>
    %c1_195 = arith.constant 1 : index
    %c0_196 = arith.constant 0 : index
    %c0_197 = arith.constant 0 : index
    %224 = vector.load %arg21[%c1_195, %c0_196, %c0_197] : memref<9x16x16xbf16, #tpu.memory_space<vmem>>, vector<1x16x16xbf16>
    %225 = vector.shape_cast %224 : vector<1x16x16xbf16> to vector<16x16xbf16>
    %cst_198 = arith.constant dense<0.000000e+00> : vector<32x16xf32>
    %226 = tpu.matmul %223, %225, %cst_198 {dimension_numbers = #tpu.dot_dimension_numbers<[1], [0], [0], [1], [0, 0, 1, 1], [], []>} : vector<32x16xbf16>, vector<16x16xbf16>, vector<32x16xf32> -> vector<32x16xf32>
    %227 = arith.addf %219, %226 : vector<32x16xf32>
    %c2_199 = arith.constant 2 : index
    %c0_200 = arith.constant 0 : index
    %c0_201 = arith.constant 0 : index
    %228 = vector.load %arg3[%c2_199, %c0_200, %c0_201] : memref<9x32x32xbf16, #tpu.memory_space<vmem>>, vector<1x32x32xbf16>
    %229 = vector.shape_cast %228 : vector<1x32x32xbf16> to vector<32x32xbf16>
    %cst_202 = arith.constant dense<0.000000e+00> : vector<32x16xf32>
    %230 = tpu.matmul %229, %210, %cst_202 {dimension_numbers = #tpu.dot_dimension_numbers<[1], [0], [0], [1], [0, 0, 1, 1], [], []>} : vector<32x32xbf16>, vector<32x16xbf16>, vector<32x16xf32> -> vector<32x16xf32>
    %231 = arith.truncf %230 : vector<32x16xf32> to vector<32x16xbf16>
    %c2_203 = arith.constant 2 : index
    %c0_204 = arith.constant 0 : index
    %c0_205 = arith.constant 0 : index
    %232 = vector.load %arg21[%c2_203, %c0_204, %c0_205] : memref<9x16x16xbf16, #tpu.memory_space<vmem>>, vector<1x16x16xbf16>
    %233 = vector.shape_cast %232 : vector<1x16x16xbf16> to vector<16x16xbf16>
    %cst_206 = arith.constant dense<0.000000e+00> : vector<32x16xf32>
    %234 = tpu.matmul %231, %233, %cst_206 {dimension_numbers = #tpu.dot_dimension_numbers<[1], [0], [0], [1], [0, 0, 1, 1], [], []>} : vector<32x16xbf16>, vector<16x16xbf16>, vector<32x16xf32> -> vector<32x16xf32>
    %235 = arith.addf %227, %234 : vector<32x16xf32>
    %c3_207 = arith.constant 3 : index
    %c0_208 = arith.constant 0 : index
    %c0_209 = arith.constant 0 : index
    %236 = vector.load %arg3[%c3_207, %c0_208, %c0_209] : memref<9x32x32xbf16, #tpu.memory_space<vmem>>, vector<1x32x32xbf16>
    %237 = vector.shape_cast %236 : vector<1x32x32xbf16> to vector<32x32xbf16>
    %cst_210 = arith.constant dense<0.000000e+00> : vector<32x16xf32>
    %238 = tpu.matmul %237, %210, %cst_210 {dimension_numbers = #tpu.dot_dimension_numbers<[1], [0], [0], [1], [0, 0, 1, 1], [], []>} : vector<32x32xbf16>, vector<32x16xbf16>, vector<32x16xf32> -> vector<32x16xf32>
    %239 = arith.truncf %238 : vector<32x16xf32> to vector<32x16xbf16>
    %c3_211 = arith.constant 3 : index
    %c0_212 = arith.constant 0 : index
    %c0_213 = arith.constant 0 : index
    %240 = vector.load %arg21[%c3_211, %c0_212, %c0_213] : memref<9x16x16xbf16, #tpu.memory_space<vmem>>, vector<1x16x16xbf16>
    %241 = vector.shape_cast %240 : vector<1x16x16xbf16> to vector<16x16xbf16>
    %cst_214 = arith.constant dense<0.000000e+00> : vector<32x16xf32>
    %242 = tpu.matmul %239, %241, %cst_214 {dimension_numbers = #tpu.dot_dimension_numbers<[1], [0], [0], [1], [0, 0, 1, 1], [], []>} : vector<32x16xbf16>, vector<16x16xbf16>, vector<32x16xf32> -> vector<32x16xf32>
    %243 = arith.addf %235, %242 : vector<32x16xf32>
    %c4_215 = arith.constant 4 : index
    %c0_216 = arith.constant 0 : index
    %c0_217 = arith.constant 0 : index
    %244 = vector.load %arg3[%c4_215, %c0_216, %c0_217] : memref<9x32x32xbf16, #tpu.memory_space<vmem>>, vector<1x32x32xbf16>
    %245 = vector.shape_cast %244 : vector<1x32x32xbf16> to vector<32x32xbf16>
    %cst_218 = arith.constant dense<0.000000e+00> : vector<32x16xf32>
    %246 = tpu.matmul %245, %210, %cst_218 {dimension_numbers = #tpu.dot_dimension_numbers<[1], [0], [0], [1], [0, 0, 1, 1], [], []>} : vector<32x32xbf16>, vector<32x16xbf16>, vector<32x16xf32> -> vector<32x16xf32>
    %247 = arith.truncf %246 : vector<32x16xf32> to vector<32x16xbf16>
    %c4_219 = arith.constant 4 : index
    %c0_220 = arith.constant 0 : index
    %c0_221 = arith.constant 0 : index
    %248 = vector.load %arg21[%c4_219, %c0_220, %c0_221] : memref<9x16x16xbf16, #tpu.memory_space<vmem>>, vector<1x16x16xbf16>
    %249 = vector.shape_cast %248 : vector<1x16x16xbf16> to vector<16x16xbf16>
    %cst_222 = arith.constant dense<0.000000e+00> : vector<32x16xf32>
    %250 = tpu.matmul %247, %249, %cst_222 {dimension_numbers = #tpu.dot_dimension_numbers<[1], [0], [0], [1], [0, 0, 1, 1], [], []>} : vector<32x16xbf16>, vector<16x16xbf16>, vector<32x16xf32> -> vector<32x16xf32>
    %251 = arith.addf %243, %250 : vector<32x16xf32>
    %c5_223 = arith.constant 5 : index
    %c0_224 = arith.constant 0 : index
    %c0_225 = arith.constant 0 : index
    %252 = vector.load %arg3[%c5_223, %c0_224, %c0_225] : memref<9x32x32xbf16, #tpu.memory_space<vmem>>, vector<1x32x32xbf16>
    %253 = vector.shape_cast %252 : vector<1x32x32xbf16> to vector<32x32xbf16>
    %cst_226 = arith.constant dense<0.000000e+00> : vector<32x16xf32>
    %254 = tpu.matmul %253, %210, %cst_226 {dimension_numbers = #tpu.dot_dimension_numbers<[1], [0], [0], [1], [0, 0, 1, 1], [], []>} : vector<32x32xbf16>, vector<32x16xbf16>, vector<32x16xf32> -> vector<32x16xf32>
    %255 = arith.truncf %254 : vector<32x16xf32> to vector<32x16xbf16>
    %c5_227 = arith.constant 5 : index
    %c0_228 = arith.constant 0 : index
    %c0_229 = arith.constant 0 : index
    %256 = vector.load %arg21[%c5_227, %c0_228, %c0_229] : memref<9x16x16xbf16, #tpu.memory_space<vmem>>, vector<1x16x16xbf16>
    %257 = vector.shape_cast %256 : vector<1x16x16xbf16> to vector<16x16xbf16>
    %cst_230 = arith.constant dense<0.000000e+00> : vector<32x16xf32>
    %258 = tpu.matmul %255, %257, %cst_230 {dimension_numbers = #tpu.dot_dimension_numbers<[1], [0], [0], [1], [0, 0, 1, 1], [], []>} : vector<32x16xbf16>, vector<16x16xbf16>, vector<32x16xf32> -> vector<32x16xf32>
    %259 = arith.addf %251, %258 : vector<32x16xf32>
    %c6_231 = arith.constant 6 : index
    %c0_232 = arith.constant 0 : index
    %c0_233 = arith.constant 0 : index
    %260 = vector.load %arg3[%c6_231, %c0_232, %c0_233] : memref<9x32x32xbf16, #tpu.memory_space<vmem>>, vector<1x32x32xbf16>
    %261 = vector.shape_cast %260 : vector<1x32x32xbf16> to vector<32x32xbf16>
    %cst_234 = arith.constant dense<0.000000e+00> : vector<32x16xf32>
    %262 = tpu.matmul %261, %210, %cst_234 {dimension_numbers = #tpu.dot_dimension_numbers<[1], [0], [0], [1], [0, 0, 1, 1], [], []>} : vector<32x32xbf16>, vector<32x16xbf16>, vector<32x16xf32> -> vector<32x16xf32>
    %263 = arith.truncf %262 : vector<32x16xf32> to vector<32x16xbf16>
    %c6_235 = arith.constant 6 : index
    %c0_236 = arith.constant 0 : index
    %c0_237 = arith.constant 0 : index
    %264 = vector.load %arg21[%c6_235, %c0_236, %c0_237] : memref<9x16x16xbf16, #tpu.memory_space<vmem>>, vector<1x16x16xbf16>
    %265 = vector.shape_cast %264 : vector<1x16x16xbf16> to vector<16x16xbf16>
    %cst_238 = arith.constant dense<0.000000e+00> : vector<32x16xf32>
    %266 = tpu.matmul %263, %265, %cst_238 {dimension_numbers = #tpu.dot_dimension_numbers<[1], [0], [0], [1], [0, 0, 1, 1], [], []>} : vector<32x16xbf16>, vector<16x16xbf16>, vector<32x16xf32> -> vector<32x16xf32>
    %267 = arith.addf %259, %266 : vector<32x16xf32>
    %c7_239 = arith.constant 7 : index
    %c0_240 = arith.constant 0 : index
    %c0_241 = arith.constant 0 : index
    %268 = vector.load %arg3[%c7_239, %c0_240, %c0_241] : memref<9x32x32xbf16, #tpu.memory_space<vmem>>, vector<1x32x32xbf16>
    %269 = vector.shape_cast %268 : vector<1x32x32xbf16> to vector<32x32xbf16>
    %cst_242 = arith.constant dense<0.000000e+00> : vector<32x16xf32>
    %270 = tpu.matmul %269, %210, %cst_242 {dimension_numbers = #tpu.dot_dimension_numbers<[1], [0], [0], [1], [0, 0, 1, 1], [], []>} : vector<32x32xbf16>, vector<32x16xbf16>, vector<32x16xf32> -> vector<32x16xf32>
    %271 = arith.truncf %270 : vector<32x16xf32> to vector<32x16xbf16>
    %c7_243 = arith.constant 7 : index
    %c0_244 = arith.constant 0 : index
    %c0_245 = arith.constant 0 : index
    %272 = vector.load %arg21[%c7_243, %c0_244, %c0_245] : memref<9x16x16xbf16, #tpu.memory_space<vmem>>, vector<1x16x16xbf16>
    %273 = vector.shape_cast %272 : vector<1x16x16xbf16> to vector<16x16xbf16>
    %cst_246 = arith.constant dense<0.000000e+00> : vector<32x16xf32>
    %274 = tpu.matmul %271, %273, %cst_246 {dimension_numbers = #tpu.dot_dimension_numbers<[1], [0], [0], [1], [0, 0, 1, 1], [], []>} : vector<32x16xbf16>, vector<16x16xbf16>, vector<32x16xf32> -> vector<32x16xf32>
    %275 = arith.addf %267, %274 : vector<32x16xf32>
    %c8_247 = arith.constant 8 : index
    %c0_248 = arith.constant 0 : index
    %c0_249 = arith.constant 0 : index
    %276 = vector.load %arg3[%c8_247, %c0_248, %c0_249] : memref<9x32x32xbf16, #tpu.memory_space<vmem>>, vector<1x32x32xbf16>
    %277 = vector.shape_cast %276 : vector<1x32x32xbf16> to vector<32x32xbf16>
    %cst_250 = arith.constant dense<0.000000e+00> : vector<32x16xf32>
    %278 = tpu.matmul %277, %210, %cst_250 {dimension_numbers = #tpu.dot_dimension_numbers<[1], [0], [0], [1], [0, 0, 1, 1], [], []>} : vector<32x32xbf16>, vector<32x16xbf16>, vector<32x16xf32> -> vector<32x16xf32>
    %279 = arith.truncf %278 : vector<32x16xf32> to vector<32x16xbf16>
    %c8_251 = arith.constant 8 : index
    %c0_252 = arith.constant 0 : index
    %c0_253 = arith.constant 0 : index
    %280 = vector.load %arg21[%c8_251, %c0_252, %c0_253] : memref<9x16x16xbf16, #tpu.memory_space<vmem>>, vector<1x16x16xbf16>
    %281 = vector.shape_cast %280 : vector<1x16x16xbf16> to vector<16x16xbf16>
    %cst_254 = arith.constant dense<0.000000e+00> : vector<32x16xf32>
    %282 = tpu.matmul %279, %281, %cst_254 {dimension_numbers = #tpu.dot_dimension_numbers<[1], [0], [0], [1], [0, 0, 1, 1], [], []>} : vector<32x16xbf16>, vector<16x16xbf16>, vector<32x16xf32> -> vector<32x16xf32>
    %283 = arith.addf %275, %282 : vector<32x16xf32>
    %c0_255 = arith.constant 0 : index
    %c0_256 = arith.constant 0 : index
    %284 = vector.load %arg22[%c0_255, %c0_256] : memref<1x16xf32, #tpu.memory_space<vmem>>, vector<1x16xf32>
    %285 = vector.broadcast %284 : vector<1x16xf32> to vector<32x16xf32>
    %286 = arith.addf %283, %285 : vector<32x16xf32>
    %cst_257 = arith.constant 0.000000e+00 : f32
    %287 = vector.broadcast %cst_257 : f32 to vector<32x16xf32>
    %288 = arith.maximumf %286, %287 : vector<32x16xf32>
    %289 = arith.truncf %288 : vector<32x16xf32> to vector<32x16xbf16>
    %c0_258 = arith.constant 0 : index
    %c0_259 = arith.constant 0 : index
    %290 = vector.load %arg23[%c0_258, %c0_259] : memref<16x64xbf16, #tpu.memory_space<vmem>>, vector<16x64xbf16>
    %cst_260 = arith.constant dense<0.000000e+00> : vector<32x64xf32>
    %291 = tpu.matmul %289, %290, %cst_260 {dimension_numbers = #tpu.dot_dimension_numbers<[1], [0], [0], [1], [0, 0, 1, 1], [], []>} : vector<32x16xbf16>, vector<16x64xbf16>, vector<32x64xf32> -> vector<32x64xf32>
    %c0_261 = arith.constant 0 : index
    %c0_262 = arith.constant 0 : index
    %292 = vector.load %arg24[%c0_261, %c0_262] : memref<1x64xf32, #tpu.memory_space<vmem>>, vector<1x64xf32>
    %293 = vector.broadcast %292 : vector<1x64xf32> to vector<32x64xf32>
    %294 = arith.addf %291, %293 : vector<32x64xf32>
    %295 = arith.addf %294, %202 : vector<32x64xf32>
    %cst_263 = arith.constant 0.000000e+00 : f32
    %296 = vector.broadcast %cst_263 : f32 to vector<32x64xf32>
    %297 = arith.maximumf %295, %296 : vector<32x64xf32>
    %c0_264 = arith.constant 0 : index
    %c0_265 = arith.constant 0 : index
    %298 = vector.load %arg4[%c0_264, %c0_265] : memref<8x32xf32, #tpu.memory_space<vmem>>, vector<8x32xf32>
    %cst_266 = arith.constant dense<0.000000e+00> : vector<8x64xf32>
    %299 = tpu.matmul %298, %297, %cst_266 {dimension_numbers = #tpu.dot_dimension_numbers<[1], [0], [0], [1], [0, 0, 1, 1], [], []>} : vector<8x32xf32>, vector<32x64xf32>, vector<8x64xf32> -> vector<8x64xf32>
    %c0_267 = arith.constant 0 : index
    %c0_268 = arith.constant 0 : index
    %300 = vector.load %arg25[%c0_267, %c0_268] : memref<64x128xf32, #tpu.memory_space<vmem>>, vector<64x128xf32>
    %cst_269 = arith.constant dense<0.000000e+00> : vector<8x128xf32>
    %301 = tpu.matmul %299, %300, %cst_269 {dimension_numbers = #tpu.dot_dimension_numbers<[1], [0], [0], [1], [0, 0, 1, 1], [], []>} : vector<8x64xf32>, vector<64x128xf32>, vector<8x128xf32> -> vector<8x128xf32>
    %c0_270 = arith.constant 0 : index
    %c0_271 = arith.constant 0 : index
    %302 = vector.load %arg26[%c0_270, %c0_271] : memref<1x128xf32, #tpu.memory_space<vmem>>, vector<1x128xf32>
    %303 = vector.broadcast %302 : vector<1x128xf32> to vector<8x128xf32>
    %304 = arith.addf %301, %303 : vector<8x128xf32>
    %c0_272 = arith.constant 0 : index
    %c0_273 = arith.constant 0 : index
    %305 = vector.load %arg27[%c0_272, %c0_273] : memref<8x128xf32, #tpu.memory_space<vmem>>, vector<8x128xf32>
    tpu.vector_store %arg27[%c0_272, %c0_273], %304 {strides = array<i32>} : memref<8x128xf32, #tpu.memory_space<vmem>>, vector<8x128xf32>,
    %306 = tpu.iota {dimensions = array<i32: 1>} : vector<8x128xi32>
    %c9_i32 = arith.constant 9 : i32
    %307 = vector.broadcast %c9_i32 : i32 to vector<8x128xi32>
    %308 = arith.cmpi slt, %306, %307 : vector<8x128xi32>
    %cst_274 = arith.constant 0xFF800000 : f32
    %309 = vector.broadcast %cst_274 : f32 to vector<8x128xf32>
    %310 = arith.select %308, %304, %309 : vector<8x128xi1>, vector<8x128xf32>
    %cst_275 = arith.constant dense<0xFF800000> : vector<8xf32>
    %311 = vector.multi_reduction <maximumf>, %310, %cst_275 [1] : vector<8x128xf32> to vector<8xf32>
    %312 = vector.shape_cast %311 : vector<8xf32> to vector<8x1xf32>
    %313 = vector.broadcast %312 : vector<8x1xf32> to vector<8x128xf32>
    %314 = arith.subf %310, %313 : vector<8x128xf32>
    %315 = math.exp %314 : vector<8x128xf32>
    %cst_276 = arith.constant dense<0.000000e+00> : vector<8xf32>
    %316 = vector.multi_reduction <add>, %315, %cst_276 [1] : vector<8x128xf32> to vector<8xf32>
    %317 = vector.shape_cast %316 : vector<8xf32> to vector<8x1xf32>
    %318 = vector.broadcast %317 : vector<8x1xf32> to vector<8x128xf32>
    %319 = arith.divf %315, %318 : vector<8x128xf32>
    %c0_277 = arith.constant 0 : index
    %c0_278 = arith.constant 0 : index
    %320 = vector.load %arg28[%c0_277, %c0_278] : memref<8x128xf32, #tpu.memory_space<vmem>>, vector<8x128xf32>
    tpu.vector_store %arg28[%c0_277, %c0_278], %319 {strides = array<i32>} : memref<8x128xf32, #tpu.memory_space<vmem>>, vector<8x128xf32>,
    return
  }
  func.func @transform_0(%arg0: i32) -> (i32, i32) {
    %c0_i32 = arith.constant 0 : i32
    %c0_i32_0 = arith.constant 0 : i32
    return %arg0, %c0_i32 : i32, i32
  }
  func.func @transform_1(%arg0: i32) -> (i32, i32) {
    %c0_i32 = arith.constant 0 : i32
    %c0_i32_0 = arith.constant 0 : i32
    %c0_i32_1 = arith.constant 0 : i32
    return %c0_i32, %c0_i32_0 : i32, i32
  }
  func.func @transform_2(%arg0: i32) -> (i32, i32, i32) {
    %c0_i32 = arith.constant 0 : i32
    %c0_i32_0 = arith.constant 0 : i32
    %c0_i32_1 = arith.constant 0 : i32
    %c0_i32_2 = arith.constant 0 : i32
    return %c0_i32, %c0_i32_0, %c0_i32_1 : i32, i32, i32
  }
  func.func @transform_3(%arg0: i32) -> (i32, i32) {
    %c0_i32 = arith.constant 0 : i32
    %c0_i32_0 = arith.constant 0 : i32
    %c0_i32_1 = arith.constant 0 : i32
    return %c0_i32, %c0_i32_0 : i32, i32
  }
  func.func @transform_4(%arg0: i32) -> (i32, i32) {
    %c0_i32 = arith.constant 0 : i32
    %c0_i32_0 = arith.constant 0 : i32
    %c0_i32_1 = arith.constant 0 : i32
    return %c0_i32, %c0_i32_0 : i32, i32
  }
  func.func @transform_5(%arg0: i32) -> (i32, i32) {
    %c0_i32 = arith.constant 0 : i32
    %c0_i32_0 = arith.constant 0 : i32
    %c0_i32_1 = arith.constant 0 : i32
    return %c0_i32, %c0_i32_0 : i32, i32
  }
  func.func @transform_6(%arg0: i32) -> (i32, i32, i32) {
    %c0_i32 = arith.constant 0 : i32
    %c0_i32_0 = arith.constant 0 : i32
    %c0_i32_1 = arith.constant 0 : i32
    %c0_i32_2 = arith.constant 0 : i32
    return %c0_i32, %c0_i32_0, %c0_i32_1 : i32, i32, i32
  }
  func.func @transform_7(%arg0: i32) -> (i32, i32) {
    %c0_i32 = arith.constant 0 : i32
    %c0_i32_0 = arith.constant 0 : i32
    %c0_i32_1 = arith.constant 0 : i32
    return %c0_i32, %c0_i32_0 : i32, i32
  }
  func.func @transform_8(%arg0: i32) -> (i32, i32) {
    %c0_i32 = arith.constant 0 : i32
    %c0_i32_0 = arith.constant 0 : i32
    %c0_i32_1 = arith.constant 0 : i32
    return %c0_i32, %c0_i32_0 : i32, i32
  }
  func.func @transform_9(%arg0: i32) -> (i32, i32) {
    %c0_i32 = arith.constant 0 : i32
    %c0_i32_0 = arith.constant 0 : i32
    %c0_i32_1 = arith.constant 0 : i32
    return %c0_i32, %c0_i32_0 : i32, i32
  }
  func.func @transform_10(%arg0: i32) -> (i32, i32) {
    %c0_i32 = arith.constant 0 : i32
    %c0_i32_0 = arith.constant 0 : i32
    %c0_i32_1 = arith.constant 0 : i32
    return %c0_i32, %c0_i32_0 : i32, i32
  }
  func.func @transform_11(%arg0: i32) -> (i32, i32) {
    %c0_i32 = arith.constant 0 : i32
    %c0_i32_0 = arith.constant 0 : i32
    %c0_i32_1 = arith.constant 0 : i32
    return %c0_i32, %c0_i32_0 : i32, i32
  }
  func.func @transform_12(%arg0: i32) -> (i32, i32) {
    %c0_i32 = arith.constant 0 : i32
    %c0_i32_0 = arith.constant 0 : i32
    %c0_i32_1 = arith.constant 0 : i32
    return %c0_i32, %c0_i32_0 : i32, i32
  }
  func.func @transform_13(%arg0: i32) -> (i32, i32) {
    %c0_i32 = arith.constant 0 : i32
    %c0_i32_0 = arith.constant 0 : i32
    %c0_i32_1 = arith.constant 0 : i32
    return %c0_i32, %c0_i32_0 : i32, i32
  }
  func.func @transform_14(%arg0: i32) -> (i32, i32, i32) {
    %c0_i32 = arith.constant 0 : i32
    %c0_i32_0 = arith.constant 0 : i32
    %c0_i32_1 = arith.constant 0 : i32
    %c0_i32_2 = arith.constant 0 : i32
    return %c0_i32, %c0_i32_0, %c0_i32_1 : i32, i32, i32
  }
  func.func @transform_15(%arg0: i32) -> (i32, i32) {
    %c0_i32 = arith.constant 0 : i32
    %c0_i32_0 = arith.constant 0 : i32
    %c0_i32_1 = arith.constant 0 : i32
    return %c0_i32, %c0_i32_0 : i32, i32
  }
  func.func @transform_16(%arg0: i32) -> (i32, i32) {
    %c0_i32 = arith.constant 0 : i32
    %c0_i32_0 = arith.constant 0 : i32
    %c0_i32_1 = arith.constant 0 : i32
    return %c0_i32, %c0_i32_0 : i32, i32
  }
  func.func @transform_17(%arg0: i32) -> (i32, i32) {
    %c0_i32 = arith.constant 0 : i32
    %c0_i32_0 = arith.constant 0 : i32
    %c0_i32_1 = arith.constant 0 : i32
    return %c0_i32, %c0_i32_0 : i32, i32
  }
  func.func @transform_18(%arg0: i32) -> (i32, i32) {
    %c0_i32 = arith.constant 0 : i32
    %c0_i32_0 = arith.constant 0 : i32
    %c0_i32_1 = arith.constant 0 : i32
    return %c0_i32, %c0_i32_0 : i32, i32
  }
  func.func @transform_19(%arg0: i32) -> (i32, i32) {
    %c0_i32 = arith.constant 0 : i32
    %c0_i32_0 = arith.constant 0 : i32
    %c0_i32_1 = arith.constant 0 : i32
    return %c0_i32, %c0_i32_0 : i32, i32
  }
  func.func @transform_20(%arg0: i32) -> (i32, i32, i32) {
    %c0_i32 = arith.constant 0 : i32
    %c0_i32_0 = arith.constant 0 : i32
    %c0_i32_1 = arith.constant 0 : i32
    %c0_i32_2 = arith.constant 0 : i32
    return %c0_i32, %c0_i32_0, %c0_i32_1 : i32, i32, i32
  }
  func.func @transform_21(%arg0: i32) -> (i32, i32) {
    %c0_i32 = arith.constant 0 : i32
    %c0_i32_0 = arith.constant 0 : i32
    %c0_i32_1 = arith.constant 0 : i32
    return %c0_i32, %c0_i32_0 : i32, i32
  }
  func.func @transform_22(%arg0: i32) -> (i32, i32) {
    %c0_i32 = arith.constant 0 : i32
    %c0_i32_0 = arith.constant 0 : i32
    %c0_i32_1 = arith.constant 0 : i32
    return %c0_i32, %c0_i32_0 : i32, i32
  }
  func.func @transform_23(%arg0: i32) -> (i32, i32) {
    %c0_i32 = arith.constant 0 : i32
    %c0_i32_0 = arith.constant 0 : i32
    %c0_i32_1 = arith.constant 0 : i32
    return %c0_i32, %c0_i32_0 : i32, i32
  }
  func.func @transform_24(%arg0: i32) -> (i32, i32) {
    %c0_i32 = arith.constant 0 : i32
    %c0_i32_0 = arith.constant 0 : i32
    %c0_i32_1 = arith.constant 0 : i32
    return %c0_i32, %c0_i32_0 : i32, i32
  }
  func.func @transform_25(%arg0: i32) -> (i32, i32) {
    %c0_i32 = arith.constant 0 : i32
    %c0_i32_0 = arith.constant 0 : i32
    %c0_i32_1 = arith.constant 0 : i32
    return %c0_i32, %c0_i32_0 : i32, i32
  }
  func.func @transform_26(%arg0: i32) -> (i32, i32) {
    %c0_i32 = arith.constant 0 : i32
    %c0_i32_0 = arith.constant 0 : i32
    return %arg0, %c0_i32 : i32, i32
  }
  func.func @transform_27(%arg0: i32) -> (i32, i32) {
    %c0_i32 = arith.constant 0 : i32
    %c0_i32_0 = arith.constant 0 : i32
    return %arg0, %c0_i32 : i32, i32
  }
}

</mosaic_0001>

<llo_original>
// kernel: res5_roi_heads_forward.1
$region0: #{res5_roi_heads_forward.1}
  #allocation0 [shape = 'u32[]', space=smem, size = 0x4, offset = 0x4, fixed_abs, tag = 'smem constant byte address 0x4 - core index']
  #allocation1 [shape = 'u32[72,128]{1,0:T(1,128)}', space=vmem, size = 0x9000, scoped, tag = 'internal scratch']
  %s0 = inlined_call_operand.vmem [shape: bf16[32,512], index: 0, kind: input, shape index: {}]
  %s1 = inlined_call_operand.vmem [shape: bf16[512,32], index: 1, kind: input, shape index: {}]
  %s2 = inlined_call_operand.vmem [shape: bf16[9,32,32], index: 2, kind: input, shape index: {}]
  %s3 = inlined_call_operand.vmem [shape: f32[8,32], index: 3, kind: input, shape index: {}]
  %s4 = inlined_call_operand.vmem [shape: bf16[32,16], index: 4, kind: input, shape index: {}]
  %s5 = inlined_call_operand.vmem [shape: f32[1,16], index: 5, kind: input, shape index: {}]
  %s6 = inlined_call_operand.vmem [shape: bf16[9,16,16], index: 6, kind: input, shape index: {}]
  %s7 = inlined_call_operand.vmem [shape: f32[1,16], index: 7, kind: input, shape index: {}]
  %s8 = inlined_call_operand.vmem [shape: bf16[16,64], index: 8, kind: input, shape index: {}]
  %s9 = inlined_call_operand.vmem [shape: f32[1,64], index: 9, kind: input, shape index: {}]
  %s10 = inlined_call_operand.vmem [shape: bf16[32,64], index: 10, kind: input, shape index: {}]
  %s11 = inlined_call_operand.vmem [shape: f32[1,64], index: 11, kind: input, shape index: {}]
  %s12 = inlined_call_operand.vmem [shape: bf16[64,16], index: 12, kind: input, shape index: {}]
  %s13 = inlined_call_operand.vmem [shape: f32[1,16], index: 13, kind: input, shape index: {}]
  %s14 = inlined_call_operand.vmem [shape: bf16[9,16,16], index: 14, kind: input, shape index: {}]
  %s15 = inlined_call_operand.vmem [shape: f32[1,16], index: 15, kind: input, shape index: {}]
  %s16 = inlined_call_operand.vmem [shape: bf16[16,64], index: 16, kind: input, shape index: {}]
  %s17 = inlined_call_operand.vmem [shape: f32[1,64], index: 17, kind: input, shape index: {}]
  %s18 = inlined_call_operand.vmem [shape: bf16[64,16], index: 18, kind: input, shape index: {}]
  %s19 = inlined_call_operand.vmem [shape: f32[1,16], index: 19, kind: input, shape index: {}]
  %s20 = inlined_call_operand.vmem [shape: bf16[9,16,16], index: 20, kind: input, shape index: {}]
  %s21 = inlined_call_operand.vmem [shape: f32[1,16], index: 21, kind: input, shape index: {}]
  %s22 = inlined_call_operand.vmem [shape: bf16[16,64], index: 22, kind: input, shape index: {}]
  %s23 = inlined_call_operand.vmem [shape: f32[1,64], index: 23, kind: input, shape index: {}]
  %s24 = inlined_call_operand.vmem [shape: f32[64,128], index: 24, kind: input, shape index: {}]
  %s25 = inlined_call_operand.vmem [shape: f32[1,128], index: 25, kind: input, shape index: {}]
  %s26 = inlined_call_operand.vmem [shape: f32[8,128], index: 26, kind: output, shape index: {0}]
  %s27 = inlined_call_operand.hbm [shape: f32[8,128], index: 27, kind: output, shape index: {1}]
  %28 = xla_tuple %s26, %s27
  %s29 = sld [smem:[#allocation0]]
  $region122: #{res5_roi_heads_forward.1} parent=0
    _
  %s31 = ssub.s32 1, %s29
  %s32 = scalar_select 0, %s31, %s29
  $region1: #{res5_roi_heads_forward.1} parent=0
    #allocation2 [shape = 'u8[4096]{0}', space=vmem, size = 0x1000, scoped, tag = 'output window, operand 1, single buffered']
    #allocation3 [shape = 's32[1]{0}', space=sflag, size = 0x4, scoped, tag = 'scoped memory for res5_roi_heads_forward.1']
    %33 = vsyncpa [#allocation3], 0
    // Predicated region
    $region2: #{res5_roi_heads_forward.1} parent=1 // pred_check
      _
    $region3: #{res5_roi_heads_forward.1} parent=1 // pred_check_branch
      %35 = sbr.rel (0) target = $region5
    $region4: #{res5_roi_heads_forward.1} parent=1 // pred_region
      _
    $region5: #{res5_roi_heads_forward.1} parent=1 // pred_fallthru
      _
    // Predicated region
    $region6: #{res5_roi_heads_forward.1} parent=1 // pred_check
      _
    $region7: #{res5_roi_heads_forward.1} parent=1 // pred_check_branch
      %37 = sbr.rel (0) target = $region9
    $region8: #{res5_roi_heads_forward.1} parent=1 // pred_region
      _
    $region9: #{res5_roi_heads_forward.1} parent=1 // pred_fallthru
      _
    // Predicated region
    $region10: #{res5_roi_heads_forward.1} parent=1 // pred_check
      _
    $region11: #{res5_roi_heads_forward.1} parent=1 // pred_check_branch
      %39 = sbr.rel (0) target = $region13
    $region12: #{res5_roi_heads_forward.1} parent=1 // pred_region
      _
    $region13: #{res5_roi_heads_forward.1} parent=1 // pred_fallthru
      _
    // Predicated region
    $region14: #{res5_roi_heads_forward.1} parent=1 // pred_check
      _
    $region15: #{res5_roi_heads_forward.1} parent=1 // pred_check_branch
      %41 = sbr.rel (0) target = $region17
    $region16: #{res5_roi_heads_forward.1} parent=1 // pred_region
      _
    $region17: #{res5_roi_heads_forward.1} parent=1 // pred_fallthru
      _
    // Predicated region
    $region18: #{res5_roi_heads_forward.1} parent=1 // pred_check
      _
    $region19: #{res5_roi_heads_forward.1} parent=1 // pred_check_branch
      %43 = sbr.rel (0) target = $region21
    $region20: #{res5_roi_heads_forward.1} parent=1 // pred_region
      _
    $region21: #{res5_roi_heads_forward.1} parent=1 // pred_fallthru
      _
    // Predicated region
    $region22: #{res5_roi_heads_forward.1} parent=1 // pred_check
      _
    $region23: #{res5_roi_heads_forward.1} parent=1 // pred_check_branch
      %45 = sbr.rel (0) target = $region25
    $region24: #{res5_roi_heads_forward.1} parent=1 // pred_region
      _
    $region25: #{res5_roi_heads_forward.1} parent=1 // pred_fallthru
      _
    // Predicated region
    $region26: #{res5_roi_heads_forward.1} parent=1 // pred_check
      _
    $region27: #{res5_roi_heads_forward.1} parent=1 // pred_check_branch
      %47 = sbr.rel (0) target = $region29
    $region28: #{res5_roi_heads_forward.1} parent=1 // pred_region
      _
    $region29: #{res5_roi_heads_forward.1} parent=1 // pred_fallthru
      _
    // Predicated region
    $region30: #{res5_roi_heads_forward.1} parent=1 // pred_check
      _
    $region31: #{res5_roi_heads_forward.1} parent=1 // pred_check_branch
      %49 = sbr.rel (0) target = $region33
    $region32: #{res5_roi_heads_forward.1} parent=1 // pred_region
      _
    $region33: #{res5_roi_heads_forward.1} parent=1 // pred_fallthru
      _
    // Predicated region
    $region34: #{res5_roi_heads_forward.1} parent=1 // pred_check
      _
    $region35: #{res5_roi_heads_forward.1} parent=1 // pred_check_branch
      %51 = sbr.rel (0) target = $region37
    $region36: #{res5_roi_heads_forward.1} parent=1 // pred_region
      _
    $region37: #{res5_roi_heads_forward.1} parent=1 // pred_fallthru
      _
    // Predicated region
    $region38: #{res5_roi_heads_forward.1} parent=1 // pred_check
      _
    $region39: #{res5_roi_heads_forward.1} parent=1 // pred_check_branch
      %53 = sbr.rel (0) target = $region41
    $region40: #{res5_roi_heads_forward.1} parent=1 // pred_region
      _
    $region41: #{res5_roi_heads_forward.1} parent=1 // pred_fallthru
      _
    // Predicated region
    $region42: #{res5_roi_heads_forward.1} parent=1 // pred_check
      _
    $region43: #{res5_roi_heads_forward.1} parent=1 // pred_check_branch
      %55 = sbr.rel (0) target = $region45
    $region44: #{res5_roi_heads_forward.1} parent=1 // pred_region
      _
    $region45: #{res5_roi_heads_forward.1} parent=1 // pred_fallthru
      _
    // Predicated region
    $region46: #{res5_roi_heads_forward.1} parent=1 // pred_check
      _
    $region47: #{res5_roi_heads_forward.1} parent=1 // pred_check_branch
      %57 = sbr.rel (0) target = $region49
    $region48: #{res5_roi_heads_forward.1} parent=1 // pred_region
      _
    $region49: #{res5_roi_heads_forward.1} parent=1 // pred_fallthru
      _
    // Predicated region
    $region50: #{res5_roi_heads_forward.1} parent=1 // pred_check
      _
    $region51: #{res5_roi_heads_forward.1} parent=1 // pred_check_branch
      %59 = sbr.rel (0) target = $region53
    $region52: #{res5_roi_heads_forward.1} parent=1 // pred_region
      _
    $region53: #{res5_roi_heads_forward.1} parent=1 // pred_fallthru
      _
    // Predicated region
    $region54: #{res5_roi_heads_forward.1} parent=1 // pred_check
      _
    $region55: #{res5_roi_heads_forward.1} parent=1 // pred_check_branch
      %61 = sbr.rel (0) target = $region57
    $region56: #{res5_roi_heads_forward.1} parent=1 // pred_region
      _
    $region57: #{res5_roi_heads_forward.1} parent=1 // pred_fallthru
      _
    // Predicated region
    $region58: #{res5_roi_heads_forward.1} parent=1 // pred_check
      _
    $region59: #{res5_roi_heads_forward.1} parent=1 // pred_check_branch
      %63 = sbr.rel (0) target = $region61
    $region60: #{res5_roi_heads_forward.1} parent=1 // pred_region
      _
    $region61: #{res5_roi_heads_forward.1} parent=1 // pred_fallthru
      _
    // Predicated region
    $region62: #{res5_roi_heads_forward.1} parent=1 // pred_check
      _
    $region63: #{res5_roi_heads_forward.1} parent=1 // pred_check_branch
      %65 = sbr.rel (0) target = $region65
    $region64: #{res5_roi_heads_forward.1} parent=1 // pred_region
      _
    $region65: #{res5_roi_heads_forward.1} parent=1 // pred_fallthru
      _
    // Predicated region
    $region66: #{res5_roi_heads_forward.1} parent=1 // pred_check
      _
    $region67: #{res5_roi_heads_forward.1} parent=1 // pred_check_branch
      %67 = sbr.rel (0) target = $region69
    $region68: #{res5_roi_heads_forward.1} parent=1 // pred_region
      _
    $region69: #{res5_roi_heads_forward.1} parent=1 // pred_fallthru
      _
    // Predicated region
    $region70: #{res5_roi_heads_forward.1} parent=1 // pred_check
      _
    $region71: #{res5_roi_heads_forward.1} parent=1 // pred_check_branch
      %69 = sbr.rel (0) target = $region73
    $region72: #{res5_roi_heads_forward.1} parent=1 // pred_region
      _
    $region73: #{res5_roi_heads_forward.1} parent=1 // pred_fallthru
      _
    // Predicated region
    $region74: #{res5_roi_heads_forward.1} parent=1 // pred_check
      _
    $region75: #{res5_roi_heads_forward.1} parent=1 // pred_check_branch
      %71 = sbr.rel (0) target = $region77
    $region76: #{res5_roi_heads_forward.1} parent=1 // pred_region
      _
    $region77: #{res5_roi_heads_forward.1} parent=1 // pred_fallthru
      _
    // Predicated region
    $region78: #{res5_roi_heads_forward.1} parent=1 // pred_check
      _
    $region79: #{res5_roi_heads_forward.1} parent=1 // pred_check_branch
      %73 = sbr.rel (0) target = $region81
    $region80: #{res5_roi_heads_forward.1} parent=1 // pred_region
      _
    $region81: #{res5_roi_heads_forward.1} parent=1 // pred_fallthru
      _
    // Predicated region
    $region82: #{res5_roi_heads_forward.1} parent=1 // pred_check
      _
    $region83: #{res5_roi_heads_forward.1} parent=1 // pred_check_branch
      %75 = sbr.rel (0) target = $region85
    $region84: #{res5_roi_heads_forward.1} parent=1 // pred_region
      _
    $region85: #{res5_roi_heads_forward.1} parent=1 // pred_fallthru
      _
    // Predicated region
    $region86: #{res5_roi_heads_forward.1} parent=1 // pred_check
      _
    $region87: #{res5_roi_heads_forward.1} parent=1 // pred_check_branch
      %77 = sbr.rel (0) target = $region89
    $region88: #{res5_roi_heads_forward.1} parent=1 // pred_region
      _
    $region89: #{res5_roi_heads_forward.1} parent=1 // pred_fallthru
      _
    // Predicated region
    $region90: #{res5_roi_heads_forward.1} parent=1 // pred_check
      _
    $region91: #{res5_roi_heads_forward.1} parent=1 // pred_check_branch
      %79 = sbr.rel (0) target = $region93
    $region92: #{res5_roi_heads_forward.1} parent=1 // pred_region
      _
    $region93: #{res5_roi_heads_forward.1} parent=1 // pred_fallthru
      _
    // Predicated region
    $region94: #{res5_roi_heads_forward.1} parent=1 // pred_check
      _
    $region95: #{res5_roi_heads_forward.1} parent=1 // pred_check_branch
      %81 = sbr.rel (0) target = $region97
    $region96: #{res5_roi_heads_forward.1} parent=1 // pred_region
      _
    $region97: #{res5_roi_heads_forward.1} parent=1 // pred_fallthru
      _
    // Predicated region
    $region98: #{res5_roi_heads_forward.1} parent=1 // pred_check
      _
    $region99: #{res5_roi_heads_forward.1} parent=1 // pred_check_branch
      %83 = sbr.rel (0) target = $region101
    $region100: #{res5_roi_heads_forward.1} parent=1 // pred_region
      _
    $region101: #{res5_roi_heads_forward.1} parent=1 // pred_fallthru
      _
    // Predicated region
    $region102: #{res5_roi_heads_forward.1} parent=1 // pred_check
      _
    $region103: #{res5_roi_heads_forward.1} parent=1 // pred_check_branch
      %85 = sbr.rel (0) target = $region105
    $region104: #{res5_roi_heads_forward.1} parent=1 // pred_region
      _
    $region105: #{res5_roi_heads_forward.1} parent=1 // pred_fallthru
      _
    %v87 = vld [vmem:[%s0] sm:$0xff]
    %v88 = vld [vmem:[%s0 + $0x8] sm:$0xff]
    %v89 = vld [vmem:[%s0 + $0x10] sm:$0xff]
    %v90 = vld [vmem:[%s0 + $0x18] sm:$0xff]
    %v91 = vld [vmem:[%s0 + $0x20] sm:$0xff]
    %v92 = vld [vmem:[%s0 + $0x28] sm:$0xff]
    %v93 = vld [vmem:[%s0 + $0x30] sm:$0xff]
    %v94 = vld [vmem:[%s0 + $0x38] sm:$0xff]
    %v95 = vld [vmem:[%s1] sm:$0xf]
    %v96 = vld [vmem:[%s1 + $0x4] sm:$0xf]
    %v97 = vld [vmem:[%s1 + $0x8] sm:$0xf]
    %v98 = vld [vmem:[%s1 + $0xc] sm:$0xf]
    %v99 = vld [vmem:[%s1 + $0x10] sm:$0xf]
    %v100 = vld [vmem:[%s1 + $0x14] sm:$0xf]
    %v101 = vld [vmem:[%s1 + $0x18] sm:$0xf]
    %v102 = vld [vmem:[%s1 + $0x1c] sm:$0xf]
    %v103 = vld [vmem:[%s1 + $0x20] sm:$0xf]
    %v104 = vld [vmem:[%s1 + $0x24] sm:$0xf]
    %v105 = vld [vmem:[%s1 + $0x28] sm:$0xf]
    %v106 = vld [vmem:[%s1 + $0x2c] sm:$0xf]
    %v107 = vld [vmem:[%s1 + $0x30] sm:$0xf]
    %v108 = vld [vmem:[%s1 + $0x34] sm:$0xf]
    %v109 = vld [vmem:[%s1 + $0x38] sm:$0xf]
    %v110 = vld [vmem:[%s1 + $0x3c] sm:$0xf]
    %v111 = vld [vmem:[%s1 + $0x40] sm:$0xf]
    %v112 = vld [vmem:[%s1 + $0x44] sm:$0xf]
    %v113 = vld [vmem:[%s1 + $0x48] sm:$0xf]
    %v114 = vld [vmem:[%s1 + $0x4c] sm:$0xf]
    %v115 = vld [vmem:[%s1 + $0x50] sm:$0xf]
    %v116 = vld [vmem:[%s1 + $0x54] sm:$0xf]
    %v117 = vld [vmem:[%s1 + $0x58] sm:$0xf]
    %v118 = vld [vmem:[%s1 + $0x5c] sm:$0xf]
    %v119 = vld [vmem:[%s1 + $0x60] sm:$0xf]
    %v120 = vld [vmem:[%s1 + $0x64] sm:$0xf]
    %v121 = vld [vmem:[%s1 + $0x68] sm:$0xf]
    %v122 = vld [vmem:[%s1 + $0x6c] sm:$0xf]
    %v123 = vld [vmem:[%s1 + $0x70] sm:$0xf]
    %v124 = vld [vmem:[%s1 + $0x74] sm:$0xf]
    %v125 = vld [vmem:[%s1 + $0x78] sm:$0xf]
    %v126 = vld [vmem:[%s1 + $0x7c] sm:$0xf]
    %v127 = vld [vmem:[%s1 + $0x80] sm:$0xf]
    %v128 = vld [vmem:[%s1 + $0x84] sm:$0xf]
    %v129 = vld [vmem:[%s1 + $0x88] sm:$0xf]
    %v130 = vld [vmem:[%s1 + $0x8c] sm:$0xf]
    %v131 = vld [vmem:[%s1 + $0x90] sm:$0xf]
    %v132 = vld [vmem:[%s1 + $0x94] sm:$0xf]
    %v133 = vld [vmem:[%s1 + $0x98] sm:$0xf]
    %v134 = vld [vmem:[%s1 + $0x9c] sm:$0xf]
    %v135 = vld [vmem:[%s1 + $0xa0] sm:$0xf]
    %v136 = vld [vmem:[%s1 + $0xa4] sm:$0xf]
    %v137 = vld [vmem:[%s1 + $0xa8] sm:$0xf]
    %v138 = vld [vmem:[%s1 + $0xac] sm:$0xf]
    %v139 = vld [vmem:[%s1 + $0xb0] sm:$0xf]
    %v140 = vld [vmem:[%s1 + $0xb4] sm:$0xf]
    %v141 = vld [vmem:[%s1 + $0xb8] sm:$0xf]
    %v142 = vld [vmem:[%s1 + $0xbc] sm:$0xf]
    %v143 = vld [vmem:[%s1 + $0xc0] sm:$0xf]
    %v144 = vld [vmem:[%s1 + $0xc4] sm:$0xf]
    %v145 = vld [vmem:[%s1 + $0xc8] sm:$0xf]
    %v146 = vld [vmem:[%s1 + $0xcc] sm:$0xf]
    %v147 = vld [vmem:[%s1 + $0xd0] sm:$0xf]
    %v148 = vld [vmem:[%s1 + $0xd4] sm:$0xf]
    %v149 = vld [vmem:[%s1 + $0xd8] sm:$0xf]
    %v150 = vld [vmem:[%s1 + $0xdc] sm:$0xf]
    %v151 = vld [vmem:[%s1 + $0xe0] sm:$0xf]
    %v152 = vld [vmem:[%s1 + $0xe4] sm:$0xf]
    %v153 = vld [vmem:[%s1 + $0xe8] sm:$0xf]
    %v154 = vld [vmem:[%s1 + $0xec] sm:$0xf]
    %v155 = vld [vmem:[%s1 + $0xf0] sm:$0xf]
    %v156 = vld [vmem:[%s1 + $0xf4] sm:$0xf]
    %v157 = vld [vmem:[%s1 + $0xf8] sm:$0xf]
    %v158 = vld [vmem:[%s1 + $0xfc] sm:$0xf]
    %v167 = vunpack.c.l.b16 %v87
    %v168 = vunpack.c.h.b16 %v87
    %v169 = vunpack.c.l.b16 %v88
    %v170 = vunpack.c.h.b16 %v88
    %v171 = vunpack.c.l.b16 %v89
    %v172 = vunpack.c.h.b16 %v89
    %v173 = vunpack.c.l.b16 %v90
    %v174 = vunpack.c.h.b16 %v90
    %v175 = vunpack.c.l.b16 %v91
    %v176 = vunpack.c.h.b16 %v91
    %v177 = vunpack.c.l.b16 %v92
    %v178 = vunpack.c.h.b16 %v92
    %v179 = vunpack.c.l.b16 %v93
    %v180 = vunpack.c.h.b16 %v93
    %v181 = vunpack.c.l.b16 %v94
    %v182 = vunpack.c.h.b16 %v94
    %v183 = vpack.c.b16 %v171, %v167
    %v184 = vpack.c.b16 %v172, %v168
    %v185 = vpack.c.b16 %v173, %v169
    %v186 = vpack.c.b16 %v174, %v170
    %v187 = vpack.c.b16 %v179, %v175
    %v188 = vpack.c.b16 %v180, %v176
    %v189 = vpack.c.b16 %v181, %v177
    %v190 = vpack.c.b16 %v182, %v178
    %v263 = vunpack.c.l.b16 %v95
    %v264 = vunpack.c.l.b16 %v96
    %v265 = vunpack.c.l.b16 %v97
    %v266 = vunpack.c.l.b16 %v98
    %v267 = vunpack.c.l.b16 %v99
    %v268 = vunpack.c.l.b16 %v100
    %v269 = vunpack.c.l.b16 %v101
    %v270 = vunpack.c.l.b16 %v102
    %v271 = vunpack.c.l.b16 %v103
    %v272 = vunpack.c.l.b16 %v104
    %v273 = vunpack.c.l.b16 %v105
    %v274 = vunpack.c.l.b16 %v106
    %v275 = vunpack.c.l.b16 %v107
    %v276 = vunpack.c.l.b16 %v108
    %v277 = vunpack.c.l.b16 %v109
    %v278 = vunpack.c.l.b16 %v110
    %v279 = vunpack.c.l.b16 %v111
    %v280 = vunpack.c.l.b16 %v112
    %v281 = vunpack.c.l.b16 %v113
    %v282 = vunpack.c.l.b16 %v114
    %v283 = vunpack.c.l.b16 %v115
    %v284 = vunpack.c.l.b16 %v116
    %v285 = vunpack.c.l.b16 %v117
    %v286 = vunpack.c.l.b16 %v118
    %v287 = vunpack.c.l.b16 %v119
    %v288 = vunpack.c.l.b16 %v120
    %v289 = vunpack.c.l.b16 %v121
    %v290 = vunpack.c.l.b16 %v122
    %v291 = vunpack.c.l.b16 %v123
    %v292 = vunpack.c.l.b16 %v124
    %v293 = vunpack.c.l.b16 %v125
    %v294 = vunpack.c.l.b16 %v126
    %v295 = vunpack.c.l.b16 %v127
    %v296 = vunpack.c.l.b16 %v128
    %v297 = vunpack.c.l.b16 %v129
    %v298 = vunpack.c.l.b16 %v130
    %v299 = vunpack.c.l.b16 %v131
    %v300 = vunpack.c.l.b16 %v132
    %v301 = vunpack.c.l.b16 %v133
    %v302 = vunpack.c.l.b16 %v134
    %v303 = vunpack.c.l.b16 %v135
    %v304 = vunpack.c.l.b16 %v136
    %v305 = vunpack.c.l.b16 %v137
    %v306 = vunpack.c.l.b16 %v138
    %v307 = vunpack.c.l.b16 %v139
    %v308 = vunpack.c.l.b16 %v140
    %v309 = vunpack.c.l.b16 %v141
    %v310 = vunpack.c.l.b16 %v142
    %v311 = vunpack.c.l.b16 %v143
    %v312 = vunpack.c.l.b16 %v144
    %v313 = vunpack.c.l.b16 %v145
    %v314 = vunpack.c.l.b16 %v146
    %v315 = vunpack.c.l.b16 %v147
    %v316 = vunpack.c.l.b16 %v148
    %v317 = vunpack.c.l.b16 %v149
    %v318 = vunpack.c.l.b16 %v150
    %v319 = vunpack.c.l.b16 %v151
    %v320 = vunpack.c.l.b16 %v152
    %v321 = vunpack.c.l.b16 %v153
    %v322 = vunpack.c.l.b16 %v154
    %v323 = vunpack.c.l.b16 %v155
    %v324 = vunpack.c.l.b16 %v156
    %v325 = vunpack.c.l.b16 %v157
    %v326 = vunpack.c.l.b16 %v158
    %v327 = vpack.c.b16 %v264, %v263
    %v328 = vpack.c.b16 %v266, %v265
    %v329 = vpack.c.b16 %v268, %v267
    %v330 = vpack.c.b16 %v270, %v269
    %v331 = vpack.c.b16 %v272, %v271
    %v332 = vpack.c.b16 %v274, %v273
    %v333 = vpack.c.b16 %v276, %v275
    %v334 = vpack.c.b16 %v278, %v277
    %v335 = vpack.c.b16 %v280, %v279
    %v336 = vpack.c.b16 %v282, %v281
    %v337 = vpack.c.b16 %v284, %v283
    %v338 = vpack.c.b16 %v286, %v285
    %v339 = vpack.c.b16 %v288, %v287
    %v340 = vpack.c.b16 %v290, %v289
    %v341 = vpack.c.b16 %v292, %v291
    %v342 = vpack.c.b16 %v294, %v293
    %v343 = vpack.c.b16 %v296, %v295
    %v344 = vpack.c.b16 %v298, %v297
    %v345 = vpack.c.b16 %v300, %v299
    %v346 = vpack.c.b16 %v302, %v301
    %v347 = vpack.c.b16 %v304, %v303
    %v348 = vpack.c.b16 %v306, %v305
    %v349 = vpack.c.b16 %v308, %v307
    %v350 = vpack.c.b16 %v310, %v309
    %v351 = vpack.c.b16 %v312, %v311
    %v352 = vpack.c.b16 %v314, %v313
    %v353 = vpack.c.b16 %v316, %v315
    %v354 = vpack.c.b16 %v318, %v317
    %v355 = vpack.c.b16 %v320, %v319
    %v356 = vpack.c.b16 %v322, %v321
    %v357 = vpack.c.b16 %v324, %v323
    %v358 = vpack.c.b16 %v326, %v325
    %391 = vmatpush.bf16.msra.mxu0 %v334
    %392 = vmatpush.bf16.msra.mxu0 %v333
    %393 = vmatpush.bf16.msra.mxu0 %v332
    %394 = vmatpush.bf16.msra.mxu0 %v331
    %395 = vmatpush.bf16.msra.mxu0 %v330
    %396 = vmatpush.bf16.msra.mxu0 %v329
    %397 = vmatpush.bf16.msra.mxu0 %v328
    %398 = vmatpush.bf16.msra.mxu0 %v327
    %399 = vmatmul.bf16.gmra.mxu0 %v183
    %v400 = vpop.f32.mrf.mxu0
    %v401 = vadd.f32 0.0, %v400
    %v402 = vpop.f32.mrf.mxu0
    %v403 = vadd.f32 0.0, %v402
    %404 = vmatmul.bf16.gmra.mxu0 %v187
    %v405 = vpop.f32.mrf.mxu0
    %v406 = vadd.f32 0.0, %v405
    %v407 = vpop.f32.mrf.mxu0
    %v408 = vadd.f32 0.0, %v407
    %409 = vdwg.mxu0
    %410 = vmatpush.bf16.msra.mxu0 %v342
    %411 = vmatpush.bf16.msra.mxu0 %v341
    %412 = vmatpush.bf16.msra.mxu0 %v340
    %413 = vmatpush.bf16.msra.mxu0 %v339
    %414 = vmatpush.bf16.msra.mxu0 %v338
    %415 = vmatpush.bf16.msra.mxu0 %v337
    %416 = vmatpush.bf16.msra.mxu0 %v336
    %417 = vmatpush.bf16.msra.mxu0 %v335
    %418 = vmatmul.bf16.gmra.mxu0 %v184
    %v419 = vpop.f32.mrf.mxu0
    %v420 = vadd.f32 %v401, %v419
    %v421 = vpop.f32.mrf.mxu0
    %v422 = vadd.f32 %v403, %v421
    %423 = vmatmul.bf16.gmra.mxu0 %v188
    %v424 = vpop.f32.mrf.mxu0
    %v425 = vadd.f32 %v406, %v424
    %v426 = vpop.f32.mrf.mxu0
    %v427 = vadd.f32 %v408, %v426
    %428 = vdwg.mxu0
    %429 = vmatpush.bf16.msra.mxu0 %v350
    %430 = vmatpush.bf16.msra.mxu0 %v349
    %431 = vmatpush.bf16.msra.mxu0 %v348
    %432 = vmatpush.bf16.msra.mxu0 %v347
    %433 = vmatpush.bf16.msra.mxu0 %v346
    %434 = vmatpush.bf16.msra.mxu0 %v345
    %435 = vmatpush.bf16.msra.mxu0 %v344
    %436 = vmatpush.bf16.msra.mxu0 %v343
    %437 = vmatmul.bf16.gmra.mxu0 %v185
    %v438 = vpop.f32.mrf.mxu0
    %v439 = vadd.f32 %v420, %v438
    %v440 = vpop.f32.mrf.mxu0
    %v441 = vadd.f32 %v422, %v440
    %442 = vmatmul.bf16.gmra.mxu0 %v189
    %v443 = vpop.f32.mrf.mxu0
    %v444 = vadd.f32 %v425, %v443
    %v445 = vpop.f32.mrf.mxu0
    %v446 = vadd.f32 %v427, %v445
    %447 = vdwg.mxu0
    %448 = vmatpush.bf16.msra.mxu0 %v358
    %449 = vmatpush.bf16.msra.mxu0 %v357
    %450 = vmatpush.bf16.msra.mxu0 %v356
    %451 = vmatpush.bf16.msra.mxu0 %v355
    %452 = vmatpush.bf16.msra.mxu0 %v354
    %453 = vmatpush.bf16.msra.mxu0 %v353
    %454 = vmatpush.bf16.msra.mxu0 %v352
    %455 = vmatpush.bf16.msra.mxu0 %v351
    %456 = vmatmul.bf16.gmra.mxu0 %v186
    %v457 = vpop.f32.mrf.mxu0
    %v458 = vadd.f32 %v439, %v457
    %v459 = vpop.f32.mrf.mxu0
    %v460 = vadd.f32 %v441, %v459
    %461 = vmatmul.bf16.gmra.mxu0 %v190
    %v462 = vpop.f32.mrf.mxu0
    %v463 = vadd.f32 %v444, %v462
    %v464 = vpop.f32.mrf.mxu0
    %v465 = vadd.f32 %v446, %v464
    %466 = vdwg.mxu0
    %v467 = vpack.c.bf16 %v460, %v458
    %v468 = vpack.c.bf16 %v465, %v463
    %v469 = vld [vmem:[%s10] sm:$0xf]
    %v470 = vld [vmem:[%s10 + $0x4] sm:$0xf]
    %v471 = vld [vmem:[%s10 + $0x8] sm:$0xf]
    %v472 = vld [vmem:[%s10 + $0xc] sm:$0xf]
    %v473 = vld [vmem:[%s11] sm:$0x1]
    %v475 = vperm.slane %v473, 0
    %v481 = vunpack.c.l.b16 %v469
    %v482 = vunpack.c.l.b16 %v470
    %v483 = vunpack.c.l.b16 %v471
    %v484 = vunpack.c.l.b16 %v472
    %v485 = vpack.c.b16 %v482, %v481
    %v486 = vpack.c.b16 %v484, %v483
    %vm489 = vcmask 261120
    %v491 = vsel %vm489, %v467, 0
    %v494 = vsel %vm489, %v468, 0
    %496 = vmatpush.bf16.msra.mxu0 0
    %497 = vmatpush.bf16.msra.mxu0 0
    %498 = vmatpush.bf16.msra.mxu0 0
    %499 = vmatpush.bf16.msra.mxu0 0
    %500 = vmatpush.bf16.msra.mxu0 0
    %501 = vmatpush.bf16.msra.mxu0 0
    %502 = vmatpush.bf16.msra.mxu0 %v486
    %503 = vmatpush.bf16.msra.mxu0 %v485
    %504 = vmatmul.bf16.gmra.mxu0 %v491
    %v505 = vpop.f32.mrf.mxu0
    %v506 = vadd.f32 %v475, %v505
    %v507 = vpop.f32.mrf.mxu0
    %v508 = vadd.f32 %v475, %v507
    %509 = vmatmul.bf16.gmra.mxu0 %v494
    %v510 = vpop.f32.mrf.mxu0
    %v511 = vadd.f32 %v475, %v510
    %v512 = vpop.f32.mrf.mxu0
    %v513 = vadd.f32 %v475, %v512
    %514 = vdwg.mxu0
    %v515 = vld [vmem:[%s4] sm:$0xf]
    %v516 = vld [vmem:[%s4 + $0x4] sm:$0xf]
    %v517 = vld [vmem:[%s4 + $0x8] sm:$0xf]
    %v518 = vld [vmem:[%s4 + $0xc] sm:$0xf]
    %v519 = vld [vmem:[%s5] sm:$0x1]
    %v521 = vperm.slane %v519, 0
    %v527 = vunpack.c.l.b16 %v515
    %v528 = vunpack.c.l.b16 %v516
    %v529 = vunpack.c.l.b16 %v517
    %v530 = vunpack.c.l.b16 %v518
    %v531 = vpack.c.b16 %v528, %v527
    %v532 = vpack.c.b16 %v530, %v529
    %535 = vmatpush.bf16.msra.mxu0 0
    %536 = vmatpush.bf16.msra.mxu0 0
    %537 = vmatpush.bf16.msra.mxu0 0
    %538 = vmatpush.bf16.msra.mxu0 0
    %539 = vmatpush.bf16.msra.mxu0 0
    %540 = vmatpush.bf16.msra.mxu0 0
    %541 = vmatpush.bf16.msra.mxu0 %v532
    %542 = vmatpush.bf16.msra.mxu0 %v531
    %543 = vmatmul.bf16.gmra.mxu0 %v491
    %v544 = vpop.f32.mrf.mxu0
    %v545 = vadd.f32 %v521, %v544
    %v546 = vpop.f32.mrf.mxu0
    %v547 = vadd.f32 %v521, %v546
    %548 = vmatmul.bf16.gmra.mxu0 %v494
    %v549 = vpop.f32.mrf.mxu0
    %v550 = vadd.f32 %v521, %v549
    %v551 = vpop.f32.mrf.mxu0
    %v552 = vadd.f32 %v521, %v551
    %553 = vdwg.mxu0
    %v554 = vmax.f32 %v545, 0.0
    %v555 = vmax.f32 %v547, 0.0
    %v556 = vmax.f32 %v550, 0.0
    %v557 = vmax.f32 %v552, 0.0
    %v558 = vpack.c.bf16 %v555, %v554
    %v559 = vpack.c.bf16 %v557, %v556
    %v560 = vld [vmem:[%s2] sm:$0xf]
    %v561 = vld [vmem:[%s2 + $0x4] sm:$0xf]
    %v562 = vld [vmem:[%s2 + $0x8] sm:$0xf]
    %v563 = vld [vmem:[%s2 + $0xc] sm:$0xf]
    %v568 = vunpack.c.l.b16 %v560
    %v569 = vunpack.c.l.b16 %v561
    %v570 = vunpack.c.l.b16 %v562
    %v571 = vunpack.c.l.b16 %v563
    %v572 = vpack.c.b16 %v569, %v568
    %v573 = vpack.c.b16 %v571, %v570
    %v575 = vsel %vm489, %v572, 0
    %v578 = vsel %vm489, %v573, 0
    %580 = vmatpush.bf16.msra.mxu0 0
    %581 = vmatpush.bf16.msra.mxu0 0
    %582 = vmatpush.bf16.msra.mxu0 0
    %583 = vmatpush.bf16.msra.mxu0 0
    %584 = vmatpush.bf16.msra.mxu0 0
    %585 = vmatpush.bf16.msra.mxu0 0
    %586 = vmatpush.bf16.msra.mxu0 %v559
    %587 = vmatpush.bf16.msra.mxu0 %v558
    %588 = vmatmul.bf16.gmra.mxu0 %v575
    %v589 = vpop.f32.mrf.mxu0
    %v590 = vadd.f32 0.0, %v589
    %v591 = vpop.f32.mrf.mxu0
    %v592 = vadd.f32 0.0, %v591
    %593 = vmatmul.bf16.gmra.mxu0 %v578
    %v594 = vpop.f32.mrf.mxu0
    %v595 = vadd.f32 0.0, %v594
    %v596 = vpop.f32.mrf.mxu0
    %v597 = vadd.f32 0.0, %v596
    %598 = vdwg.mxu0
    %v599 = vpack.c.bf16 %v592, %v590
    %v600 = vpack.c.bf16 %v597, %v595
    %v601 = vld [vmem:[%s6] sm:$0xf]
    %v602 = vld [vmem:[%s6 + $0x4] sm:$0xf]
    %s603 = scalar_lea.vmem %s2, 16
    %v604 = vld [vmem:[%s603] sm:$0xf]
    %v605 = vld [vmem:[%s603 + $0x4] sm:$0xf]
    %v606 = vld [vmem:[%s603 + $0x8] sm:$0xf]
    %v607 = vld [vmem:[%s603 + $0xc] sm:$0xf]
    %v612 = vunpack.c.l.b16 %v604
    %v613 = vunpack.c.l.b16 %v605
    %v614 = vunpack.c.l.b16 %v606
    %v615 = vunpack.c.l.b16 %v607
    %v616 = vpack.c.b16 %v613, %v612
    %v617 = vpack.c.b16 %v615, %v614
    %v619 = vsel %vm489, %v616, 0
    %v622 = vsel %vm489, %v617, 0
    %624 = vmatpush.bf16.msra.mxu0 0
    %625 = vmatpush.bf16.msra.mxu0 0
    %626 = vmatpush.bf16.msra.mxu0 0
    %627 = vmatpush.bf16.msra.mxu0 0
    %628 = vmatpush.bf16.msra.mxu0 0
    %629 = vmatpush.bf16.msra.mxu0 0
    %630 = vmatpush.bf16.msra.mxu0 %v559
    %631 = vmatpush.bf16.msra.mxu0 %v558
    %632 = vmatmul.bf16.gmra.mxu0 %v619
    %v633 = vpop.f32.mrf.mxu0
    %v634 = vadd.f32 0.0, %v633
    %v635 = vpop.f32.mrf.mxu0
    %v636 = vadd.f32 0.0, %v635
    %637 = vmatmul.bf16.gmra.mxu0 %v622
    %v638 = vpop.f32.mrf.mxu0
    %v639 = vadd.f32 0.0, %v638
    %v640 = vpop.f32.mrf.mxu0
    %v641 = vadd.f32 0.0, %v640
    %642 = vdwg.mxu0
    %v643 = vpack.c.bf16 %v636, %v634
    %v644 = vpack.c.bf16 %v641, %v639
    %s645 = scalar_lea.vmem %s6, 8
    %v646 = vld [vmem:[%s645] sm:$0xf]
    %v647 = vld [vmem:[%s645 + $0x4] sm:$0xf]
    %v650 = vunpack.c.l.b16 %v646
    %v651 = vunpack.c.l.b16 %v647
    %v652 = vpack.c.b16 %v651, %v650
    %vm654 = vcmask 130048
    %v656 = vsel %vm654, %v643, 0
    %v659 = vsel %vm654, %v644, 0
    %661 = vmatpush.bf16.msra.mxu0 0
    %662 = vmatpush.bf16.msra.mxu0 0
    %663 = vmatpush.bf16.msra.mxu0 0
    %664 = vmatpush.bf16.msra.mxu0 0
    %665 = vmatpush.bf16.msra.mxu0 0
    %666 = vmatpush.bf16.msra.mxu0 0
    %667 = vmatpush.bf16.msra.mxu0 0
    %668 = vmatpush.bf16.msra.mxu0 %v652
    %669 = vmatmul.bf16.gmra.mxu0 %v656
    %v670 = vpop.f32.mrf.mxu0
    %v671 = vadd.f32 0.0, %v670
    %v672 = vpop.f32.mrf.mxu0
    %v673 = vadd.f32 0.0, %v672
    %674 = vmatmul.bf16.gmra.mxu0 %v659
    %v675 = vpop.f32.mrf.mxu0
    %v676 = vadd.f32 0.0, %v675
    %v677 = vpop.f32.mrf.mxu0
    %v678 = vadd.f32 0.0, %v677
    %679 = vdwg.mxu0
    %v682 = vunpack.c.l.b16 %v601
    %v683 = vunpack.c.l.b16 %v602
    %v684 = vpack.c.b16 %v683, %v682
    %v687 = vsel %vm654, %v599, 0
    %v690 = vsel %vm654, %v600, 0
    %692 = vmatpush.bf16.msra.mxu0 0
    %693 = vmatpush.bf16.msra.mxu0 0
    %694 = vmatpush.bf16.msra.mxu0 0
    %695 = vmatpush.bf16.msra.mxu0 0
    %696 = vmatpush.bf16.msra.mxu0 0
    %697 = vmatpush.bf16.msra.mxu0 0
    %698 = vmatpush.bf16.msra.mxu0 0
    %699 = vmatpush.bf16.msra.mxu0 %v684
    %700 = vmatmul.bf16.gmra.mxu0 %v687
    %v701 = vpop.f32.mrf.mxu0
    %v702 = vadd.f32 %v671, %v701
    %v703 = vpop.f32.mrf.mxu0
    %v704 = vadd.f32 %v673, %v703
    %705 = vmatmul.bf16.gmra.mxu0 %v690
    %v706 = vpop.f32.mrf.mxu0
    %v707 = vadd.f32 %v676, %v706
    %v708 = vpop.f32.mrf.mxu0
    %v709 = vadd.f32 %v678, %v708
    %710 = vdwg.mxu0
    %s711 = scalar_lea.vmem %s2, 32
    %v712 = vld [vmem:[%s711] sm:$0xf]
    %v713 = vld [vmem:[%s711 + $0x4] sm:$0xf]
    %v714 = vld [vmem:[%s711 + $0x8] sm:$0xf]
    %v715 = vld [vmem:[%s711 + $0xc] sm:$0xf]
    %v720 = vunpack.c.l.b16 %v712
    %v721 = vunpack.c.l.b16 %v713
    %v722 = vunpack.c.l.b16 %v714
    %v723 = vunpack.c.l.b16 %v715
    %v724 = vpack.c.b16 %v721, %v720
    %v725 = vpack.c.b16 %v723, %v722
    %v727 = vsel %vm489, %v724, 0
    %v730 = vsel %vm489, %v725, 0
    %732 = vmatpush.bf16.msra.mxu0 0
    %733 = vmatpush.bf16.msra.mxu0 0
    %734 = vmatpush.bf16.msra.mxu0 0
    %735 = vmatpush.bf16.msra.mxu0 0
    %736 = vmatpush.bf16.msra.mxu0 0
    %737 = vmatpush.bf16.msra.mxu0 0
    %738 = vmatpush.bf16.msra.mxu0 %v559
    %739 = vmatpush.bf16.msra.mxu0 %v558
    %740 = vmatmul.bf16.gmra.mxu0 %v727
    %v741 = vpop.f32.mrf.mxu0
    %v742 = vadd.f32 0.0, %v741
    %v743 = vpop.f32.mrf.mxu0
    %v744 = vadd.f32 0.0, %v743
    %745 = vmatmul.bf16.gmra.mxu0 %v730
    %v746 = vpop.f32.mrf.mxu0
    %v747 = vadd.f32 0.0, %v746
    %v748 = vpop.f32.mrf.mxu0
    %v749 = vadd.f32 0.0, %v748
    %750 = vdwg.mxu0
    %v751 = vpack.c.bf16 %v744, %v742
    %v752 = vpack.c.bf16 %v749, %v747
    %s753 = scalar_lea.vmem %s6, 16
    %v754 = vld [vmem:[%s753] sm:$0xf]
    %v755 = vld [vmem:[%s753 + $0x4] sm:$0xf]
    %v758 = vunpack.c.l.b16 %v754
    %v759 = vunpack.c.l.b16 %v755
    %v760 = vpack.c.b16 %v759, %v758
    %v763 = vsel %vm654, %v751, 0
    %v766 = vsel %vm654, %v752, 0
    %768 = vmatpush.bf16.msra.mxu0 0
    %769 = vmatpush.bf16.msra.mxu0 0
    %770 = vmatpush.bf16.msra.mxu0 0
    %771 = vmatpush.bf16.msra.mxu0 0
    %772 = vmatpush.bf16.msra.mxu0 0
    %773 = vmatpush.bf16.msra.mxu0 0
    %774 = vmatpush.bf16.msra.mxu0 0
    %775 = vmatpush.bf16.msra.mxu0 %v760
    %776 = vmatmul.bf16.gmra.mxu0 %v763
    %v777 = vpop.f32.mrf.mxu0
    %v778 = vadd.f32 0.0, %v777
    %v779 = vpop.f32.mrf.mxu0
    %v780 = vadd.f32 0.0, %v779
    %781 = vmatmul.bf16.gmra.mxu0 %v766
    %v782 = vpop.f32.mrf.mxu0
    %v783 = vadd.f32 0.0, %v782
    %v784 = vpop.f32.mrf.mxu0
    %v785 = vadd.f32 0.0, %v784
    %786 = vdwg.mxu0
    %v787 = vadd.f32 %v702, %v778
    %v788 = vadd.f32 %v704, %v780
    %v789 = vadd.f32 %v707, %v783
    %v790 = vadd.f32 %v709, %v785
    %s791 = scalar_lea.vmem %s2, 48
    %v792 = vld [vmem:[%s791] sm:$0xf]
    %v793 = vld [vmem:[%s791 + $0x4] sm:$0xf]
    %v794 = vld [vmem:[%s791 + $0x8] sm:$0xf]
    %v795 = vld [vmem:[%s791 + $0xc] sm:$0xf]
    %v800 = vunpack.c.l.b16 %v792
    %v801 = vunpack.c.l.b16 %v793
    %v802 = vunpack.c.l.b16 %v794
    %v803 = vunpack.c.l.b16 %v795
    %v804 = vpack.c.b16 %v801, %v800
    %v805 = vpack.c.b16 %v803, %v802
    %v807 = vsel %vm489, %v804, 0
    %v810 = vsel %vm489, %v805, 0
    %812 = vmatpush.bf16.msra.mxu0 0
    %813 = vmatpush.bf16.msra.mxu0 0
    %814 = vmatpush.bf16.msra.mxu0 0
    %815 = vmatpush.bf16.msra.mxu0 0
    %816 = vmatpush.bf16.msra.mxu0 0
    %817 = vmatpush.bf16.msra.mxu0 0
    %818 = vmatpush.bf16.msra.mxu0 %v559
    %819 = vmatpush.bf16.msra.mxu0 %v558
    %820 = vmatmul.bf16.gmra.mxu0 %v807
    %v821 = vpop.f32.mrf.mxu0
    %v822 = vadd.f32 0.0, %v821
    %v823 = vpop.f32.mrf.mxu0
    %v824 = vadd.f32 0.0, %v823
    %825 = vmatmul.bf16.gmra.mxu0 %v810
    %v826 = vpop.f32.mrf.mxu0
    %v827 = vadd.f32 0.0, %v826
    %v828 = vpop.f32.mrf.mxu0
    %v829 = vadd.f32 0.0, %v828
    %830 = vdwg.mxu0
    %v831 = vpack.c.bf16 %v824, %v822
    %v832 = vpack.c.bf16 %v829, %v827
    %s833 = scalar_lea.vmem %s6, 24
    %v834 = vld [vmem:[%s833] sm:$0xf]
    %v835 = vld [vmem:[%s833 + $0x4] sm:$0xf]
    %v838 = vunpack.c.l.b16 %v834
    %v839 = vunpack.c.l.b16 %v835
    %v840 = vpack.c.b16 %v839, %v838
    %v843 = vsel %vm654, %v831, 0
    %v846 = vsel %vm654, %v832, 0
    %848 = vmatpush.bf16.msra.mxu0 0
    %849 = vmatpush.bf16.msra.mxu0 0
    %850 = vmatpush.bf16.msra.mxu0 0
    %851 = vmatpush.bf16.msra.mxu0 0
    %852 = vmatpush.bf16.msra.mxu0 0
    %853 = vmatpush.bf16.msra.mxu0 0
    %854 = vmatpush.bf16.msra.mxu0 0
    %855 = vmatpush.bf16.msra.mxu0 %v840
    %856 = vmatmul.bf16.gmra.mxu0 %v843
    %v857 = vpop.f32.mrf.mxu0
    %v858 = vadd.f32 0.0, %v857
    %v859 = vpop.f32.mrf.mxu0
    %v860 = vadd.f32 0.0, %v859
    %861 = vmatmul.bf16.gmra.mxu0 %v846
    %v862 = vpop.f32.mrf.mxu0
    %v863 = vadd.f32 0.0, %v862
    %v864 = vpop.f32.mrf.mxu0
    %v865 = vadd.f32 0.0, %v864
    %866 = vdwg.mxu0
    %v867 = vadd.f32 %v787, %v858
    %v868 = vadd.f32 %v788, %v860
    %v869 = vadd.f32 %v789, %v863
    %v870 = vadd.f32 %v790, %v865
    %s871 = scalar_lea.vmem %s2, 64
    %v872 = vld [vmem:[%s871] sm:$0xf]
    %v873 = vld [vmem:[%s871 + $0x4] sm:$0xf]
    %v874 = vld [vmem:[%s871 + $0x8] sm:$0xf]
    %v875 = vld [vmem:[%s871 + $0xc] sm:$0xf]
    %v880 = vunpack.c.l.b16 %v872
    %v881 = vunpack.c.l.b16 %v873
    %v882 = vunpack.c.l.b16 %v874
    %v883 = vunpack.c.l.b16 %v875
    %v884 = vpack.c.b16 %v881, %v880
    %v885 = vpack.c.b16 %v883, %v882
    %v887 = vsel %vm489, %v884, 0
    %v890 = vsel %vm489, %v885, 0
    %892 = vmatpush.bf16.msra.mxu0 0
    %893 = vmatpush.bf16.msra.mxu0 0
    %894 = vmatpush.bf16.msra.mxu0 0
    %895 = vmatpush.bf16.msra.mxu0 0
    %896 = vmatpush.bf16.msra.mxu0 0
    %897 = vmatpush.bf16.msra.mxu0 0
    %898 = vmatpush.bf16.msra.mxu0 %v559
    %899 = vmatpush.bf16.msra.mxu0 %v558
    %900 = vmatmul.bf16.gmra.mxu0 %v887
    %v901 = vpop.f32.mrf.mxu0
    %v902 = vadd.f32 0.0, %v901
    %v903 = vpop.f32.mrf.mxu0
    %v904 = vadd.f32 0.0, %v903
    %905 = vmatmul.bf16.gmra.mxu0 %v890
    %v906 = vpop.f32.mrf.mxu0
    %v907 = vadd.f32 0.0, %v906
    %v908 = vpop.f32.mrf.mxu0
    %v909 = vadd.f32 0.0, %v908
    %910 = vdwg.mxu0
    %v911 = vpack.c.bf16 %v904, %v902
    %v912 = vpack.c.bf16 %v909, %v907
    %s913 = scalar_lea.vmem %s6, 32
    %v914 = vld [vmem:[%s913] sm:$0xf]
    %v915 = vld [vmem:[%s913 + $0x4] sm:$0xf]
    %v918 = vunpack.c.l.b16 %v914
    %v919 = vunpack.c.l.b16 %v915
    %v920 = vpack.c.b16 %v919, %v918
    %v923 = vsel %vm654, %v911, 0
    %v926 = vsel %vm654, %v912, 0
    %928 = vmatpush.bf16.msra.mxu0 0
    %929 = vmatpush.bf16.msra.mxu0 0
    %930 = vmatpush.bf16.msra.mxu0 0
    %931 = vmatpush.bf16.msra.mxu0 0
    %932 = vmatpush.bf16.msra.mxu0 0
    %933 = vmatpush.bf16.msra.mxu0 0
    %934 = vmatpush.bf16.msra.mxu0 0
    %935 = vmatpush.bf16.msra.mxu0 %v920
    %936 = vmatmul.bf16.gmra.mxu0 %v923
    %v937 = vpop.f32.mrf.mxu0
    %v938 = vadd.f32 0.0, %v937
    %v939 = vpop.f32.mrf.mxu0
    %v940 = vadd.f32 0.0, %v939
    %941 = vmatmul.bf16.gmra.mxu0 %v926
    %v942 = vpop.f32.mrf.mxu0
    %v943 = vadd.f32 0.0, %v942
    %v944 = vpop.f32.mrf.mxu0
    %v945 = vadd.f32 0.0, %v944
    %946 = vdwg.mxu0
    %v947 = vadd.f32 %v867, %v938
    %v948 = vadd.f32 %v868, %v940
    %v949 = vadd.f32 %v869, %v943
    %v950 = vadd.f32 %v870, %v945
    %s951 = scalar_lea.vmem %s2, 80
    %v952 = vld [vmem:[%s951] sm:$0xf]
    %v953 = vld [vmem:[%s951 + $0x4] sm:$0xf]
    %v954 = vld [vmem:[%s951 + $0x8] sm:$0xf]
    %v955 = vld [vmem:[%s951 + $0xc] sm:$0xf]
    %v960 = vunpack.c.l.b16 %v952
    %v961 = vunpack.c.l.b16 %v953
    %v962 = vunpack.c.l.b16 %v954
    %v963 = vunpack.c.l.b16 %v955
    %v964 = vpack.c.b16 %v961, %v960
    %v965 = vpack.c.b16 %v963, %v962
    %v967 = vsel %vm489, %v964, 0
    %v970 = vsel %vm489, %v965, 0
    %972 = vmatpush.bf16.msra.mxu0 0
    %973 = vmatpush.bf16.msra.mxu0 0
    %974 = vmatpush.bf16.msra.mxu0 0
    %975 = vmatpush.bf16.msra.mxu0 0
    %976 = vmatpush.bf16.msra.mxu0 0
    %977 = vmatpush.bf16.msra.mxu0 0
    %978 = vmatpush.bf16.msra.mxu0 %v559
    %979 = vmatpush.bf16.msra.mxu0 %v558
    %980 = vmatmul.bf16.gmra.mxu0 %v967
    %v981 = vpop.f32.mrf.mxu0
    %v982 = vadd.f32 0.0, %v981
    %v983 = vpop.f32.mrf.mxu0
    %v984 = vadd.f32 0.0, %v983
    %985 = vmatmul.bf16.gmra.mxu0 %v970
    %v986 = vpop.f32.mrf.mxu0
    %v987 = vadd.f32 0.0, %v986
    %v988 = vpop.f32.mrf.mxu0
    %v989 = vadd.f32 0.0, %v988
    %990 = vdwg.mxu0
    %v991 = vpack.c.bf16 %v984, %v982
    %v992 = vpack.c.bf16 %v989, %v987
    %s993 = scalar_lea.vmem %s6, 40
    %v994 = vld [vmem:[%s993] sm:$0xf]
    %v995 = vld [vmem:[%s993 + $0x4] sm:$0xf]
    %v998 = vunpack.c.l.b16 %v994
    %v999 = vunpack.c.l.b16 %v995
    %v1000 = vpack.c.b16 %v999, %v998
    %v1003 = vsel %vm654, %v991, 0
    %v1006 = vsel %vm654, %v992, 0
    %1008 = vmatpush.bf16.msra.mxu0 0
    %1009 = vmatpush.bf16.msra.mxu0 0
    %1010 = vmatpush.bf16.msra.mxu0 0
    %1011 = vmatpush.bf16.msra.mxu0 0
    %1012 = vmatpush.bf16.msra.mxu0 0
    %1013 = vmatpush.bf16.msra.mxu0 0
    %1014 = vmatpush.bf16.msra.mxu0 0
    %1015 = vmatpush.bf16.msra.mxu0 %v1000
    %1016 = vmatmul.bf16.gmra.mxu0 %v1003
    %v1017 = vpop.f32.mrf.mxu0
    %v1018 = vadd.f32 0.0, %v1017
    %v1019 = vpop.f32.mrf.mxu0
    %v1020 = vadd.f32 0.0, %v1019
    %1021 = vmatmul.bf16.gmra.mxu0 %v1006
    %v1022 = vpop.f32.mrf.mxu0
    %v1023 = vadd.f32 0.0, %v1022
    %v1024 = vpop.f32.mrf.mxu0
    %v1025 = vadd.f32 0.0, %v1024
    %1026 = vdwg.mxu0
    %v1027 = vadd.f32 %v947, %v1018
    %v1028 = vadd.f32 %v948, %v1020
    %v1029 = vadd.f32 %v949, %v1023
    %v1030 = vadd.f32 %v950, %v1025
    %s1031 = scalar_lea.vmem %s2, 96
    %v1032 = vld [vmem:[%s1031] sm:$0xf]
    %v1033 = vld [vmem:[%s1031 + $0x4] sm:$0xf]
    %v1034 = vld [vmem:[%s1031 + $0x8] sm:$0xf]
    %v1035 = vld [vmem:[%s1031 + $0xc] sm:$0xf]
    %v1040 = vunpack.c.l.b16 %v1032
    %v1041 = vunpack.c.l.b16 %v1033
    %v1042 = vunpack.c.l.b16 %v1034
    %v1043 = vunpack.c.l.b16 %v1035
    %v1044 = vpack.c.b16 %v1041, %v1040
    %v1045 = vpack.c.b16 %v1043, %v1042
    %v1047 = vsel %vm489, %v1044, 0
    %v1050 = vsel %vm489, %v1045, 0
    %1052 = vmatpush.bf16.msra.mxu0 0
    %1053 = vmatpush.bf16.msra.mxu0 0
    %1054 = vmatpush.bf16.msra.mxu0 0
    %1055 = vmatpush.bf16.msra.mxu0 0
    %1056 = vmatpush.bf16.msra.mxu0 0
    %1057 = vmatpush.bf16.msra.mxu0 0
    %1058 = vmatpush.bf16.msra.mxu0 %v559
    %1059 = vmatpush.bf16.msra.mxu0 %v558
    %1060 = vmatmul.bf16.gmra.mxu0 %v1047
    %v1061 = vpop.f32.mrf.mxu0
    %v1062 = vadd.f32 0.0, %v1061
    %v1063 = vpop.f32.mrf.mxu0
    %v1064 = vadd.f32 0.0, %v1063
    %1065 = vmatmul.bf16.gmra.mxu0 %v1050
    %v1066 = vpop.f32.mrf.mxu0
    %v1067 = vadd.f32 0.0, %v1066
    %v1068 = vpop.f32.mrf.mxu0
    %v1069 = vadd.f32 0.0, %v1068
    %1070 = vdwg.mxu0
    %v1071 = vpack.c.bf16 %v1064, %v1062
    %v1072 = vpack.c.bf16 %v1069, %v1067
    %s1073 = scalar_lea.vmem %s6, 48
    %v1074 = vld [vmem:[%s1073] sm:$0xf]
    %v1075 = vld [vmem:[%s1073 + $0x4] sm:$0xf]
    %v1078 = vunpack.c.l.b16 %v1074
    %v1079 = vunpack.c.l.b16 %v1075
    %v1080 = vpack.c.b16 %v1079, %v1078
    %v1083 = vsel %vm654, %v1071, 0
    %v1086 = vsel %vm654, %v1072, 0
    %1088 = vmatpush.bf16.msra.mxu0 0
    %1089 = vmatpush.bf16.msra.mxu0 0
    %1090 = vmatpush.bf16.msra.mxu0 0
    %1091 = vmatpush.bf16.msra.mxu0 0
    %1092 = vmatpush.bf16.msra.mxu0 0
    %1093 = vmatpush.bf16.msra.mxu0 0
    %1094 = vmatpush.bf16.msra.mxu0 0
    %1095 = vmatpush.bf16.msra.mxu0 %v1080
    %1096 = vmatmul.bf16.gmra.mxu0 %v1083
    %v1097 = vpop.f32.mrf.mxu0
    %v1098 = vadd.f32 0.0, %v1097
    %v1099 = vpop.f32.mrf.mxu0
    %v1100 = vadd.f32 0.0, %v1099
    %1101 = vmatmul.bf16.gmra.mxu0 %v1086
    %v1102 = vpop.f32.mrf.mxu0
    %v1103 = vadd.f32 0.0, %v1102
    %v1104 = vpop.f32.mrf.mxu0
    %v1105 = vadd.f32 0.0, %v1104
    %1106 = vdwg.mxu0
    %v1107 = vadd.f32 %v1027, %v1098
    %v1108 = vadd.f32 %v1028, %v1100
    %v1109 = vadd.f32 %v1029, %v1103
    %v1110 = vadd.f32 %v1030, %v1105
    %s1111 = scalar_lea.vmem %s2, 112
    %v1112 = vld [vmem:[%s1111] sm:$0xf]
    %v1113 = vld [vmem:[%s1111 + $0x4] sm:$0xf]
    %v1114 = vld [vmem:[%s1111 + $0x8] sm:$0xf]
    %v1115 = vld [vmem:[%s1111 + $0xc] sm:$0xf]
    %v1120 = vunpack.c.l.b16 %v1112
    %v1121 = vunpack.c.l.b16 %v1113
    %v1122 = vunpack.c.l.b16 %v1114
    %v1123 = vunpack.c.l.b16 %v1115
    %v1124 = vpack.c.b16 %v1121, %v1120
    %v1125 = vpack.c.b16 %v1123, %v1122
    %v1127 = vsel %vm489, %v1124, 0
    %v1130 = vsel %vm489, %v1125, 0
    %1132 = vmatpush.bf16.msra.mxu0 0
    %1133 = vmatpush.bf16.msra.mxu0 0
    %1134 = vmatpush.bf16.msra.mxu0 0
    %1135 = vmatpush.bf16.msra.mxu0 0
    %1136 = vmatpush.bf16.msra.mxu0 0
    %1137 = vmatpush.bf16.msra.mxu0 0
    %1138 = vmatpush.bf16.msra.mxu0 %v559
    %1139 = vmatpush.bf16.msra.mxu0 %v558
    %1140 = vmatmul.bf16.gmra.mxu0 %v1127
    %v1141 = vpop.f32.mrf.mxu0
    %v1142 = vadd.f32 0.0, %v1141
    %v1143 = vpop.f32.mrf.mxu0
    %v1144 = vadd.f32 0.0, %v1143
    %1145 = vmatmul.bf16.gmra.mxu0 %v1130
    %v1146 = vpop.f32.mrf.mxu0
    %v1147 = vadd.f32 0.0, %v1146
    %v1148 = vpop.f32.mrf.mxu0
    %v1149 = vadd.f32 0.0, %v1148
    %1150 = vdwg.mxu0
    %v1151 = vpack.c.bf16 %v1144, %v1142
    %v1152 = vpack.c.bf16 %v1149, %v1147
    %s1153 = scalar_lea.vmem %s6, 56
    %v1154 = vld [vmem:[%s1153] sm:$0xf]
    %v1155 = vld [vmem:[%s1153 + $0x4] sm:$0xf]
    %v1158 = vunpack.c.l.b16 %v1154
    %v1159 = vunpack.c.l.b16 %v1155
    %v1160 = vpack.c.b16 %v1159, %v1158
    %v1163 = vsel %vm654, %v1151, 0
    %v1166 = vsel %vm654, %v1152, 0
    %1168 = vmatpush.bf16.msra.mxu0 0
    %1169 = vmatpush.bf16.msra.mxu0 0
    %1170 = vmatpush.bf16.msra.mxu0 0
    %1171 = vmatpush.bf16.msra.mxu0 0
    %1172 = vmatpush.bf16.msra.mxu0 0
    %1173 = vmatpush.bf16.msra.mxu0 0
    %1174 = vmatpush.bf16.msra.mxu0 0
    %1175 = vmatpush.bf16.msra.mxu0 %v1160
    %1176 = vmatmul.bf16.gmra.mxu0 %v1163
    %v1177 = vpop.f32.mrf.mxu0
    %v1178 = vadd.f32 0.0, %v1177
    %v1179 = vpop.f32.mrf.mxu0
    %v1180 = vadd.f32 0.0, %v1179
    %1181 = vmatmul.bf16.gmra.mxu0 %v1166
    %v1182 = vpop.f32.mrf.mxu0
    %v1183 = vadd.f32 0.0, %v1182
    %v1184 = vpop.f32.mrf.mxu0
    %v1185 = vadd.f32 0.0, %v1184
    %1186 = vdwg.mxu0
    %v1187 = vadd.f32 %v1107, %v1178
    %v1188 = vadd.f32 %v1108, %v1180
    %v1189 = vadd.f32 %v1109, %v1183
    %v1190 = vadd.f32 %v1110, %v1185
    %s1191 = scalar_lea.vmem %s2, 128
    %v1192 = vld [vmem:[%s1191] sm:$0xf]
    %v1193 = vld [vmem:[%s1191 + $0x4] sm:$0xf]
    %v1194 = vld [vmem:[%s1191 + $0x8] sm:$0xf]
    %v1195 = vld [vmem:[%s1191 + $0xc] sm:$0xf]
    %v1200 = vunpack.c.l.b16 %v1192
    %v1201 = vunpack.c.l.b16 %v1193
    %v1202 = vunpack.c.l.b16 %v1194
    %v1203 = vunpack.c.l.b16 %v1195
    %v1204 = vpack.c.b16 %v1201, %v1200
    %v1205 = vpack.c.b16 %v1203, %v1202
    %v1207 = vsel %vm489, %v1204, 0
    %v1210 = vsel %vm489, %v1205, 0
    %1212 = vmatpush.bf16.msra.mxu0 0
    %1213 = vmatpush.bf16.msra.mxu0 0
    %1214 = vmatpush.bf16.msra.mxu0 0
    %1215 = vmatpush.bf16.msra.mxu0 0
    %1216 = vmatpush.bf16.msra.mxu0 0
    %1217 = vmatpush.bf16.msra.mxu0 0
    %1218 = vmatpush.bf16.msra.mxu0 %v559
    %1219 = vmatpush.bf16.msra.mxu0 %v558
    %1220 = vmatmul.bf16.gmra.mxu0 %v1207
    %v1221 = vpop.f32.mrf.mxu0
    %v1222 = vadd.f32 0.0, %v1221
    %v1223 = vpop.f32.mrf.mxu0
    %v1224 = vadd.f32 0.0, %v1223
    %1225 = vmatmul.bf16.gmra.mxu0 %v1210
    %v1226 = vpop.f32.mrf.mxu0
    %v1227 = vadd.f32 0.0, %v1226
    %v1228 = vpop.f32.mrf.mxu0
    %v1229 = vadd.f32 0.0, %v1228
    %1230 = vdwg.mxu0
    %v1231 = vpack.c.bf16 %v1224, %v1222
    %v1232 = vpack.c.bf16 %v1229, %v1227
    %s1233 = scalar_lea.vmem %s6, 64
    %v1234 = vld [vmem:[%s1233] sm:$0xf]
    %v1235 = vld [vmem:[%s1233 + $0x4] sm:$0xf]
    %v1238 = vunpack.c.l.b16 %v1234
    %v1239 = vunpack.c.l.b16 %v1235
    %v1240 = vpack.c.b16 %v1239, %v1238
    %v1243 = vsel %vm654, %v1231, 0
    %v1246 = vsel %vm654, %v1232, 0
    %1248 = vmatpush.bf16.msra.mxu0 0
    %1249 = vmatpush.bf16.msra.mxu0 0
    %1250 = vmatpush.bf16.msra.mxu0 0
    %1251 = vmatpush.bf16.msra.mxu0 0
    %1252 = vmatpush.bf16.msra.mxu0 0
    %1253 = vmatpush.bf16.msra.mxu0 0
    %1254 = vmatpush.bf16.msra.mxu0 0
    %1255 = vmatpush.bf16.msra.mxu0 %v1240
    %1256 = vmatmul.bf16.gmra.mxu0 %v1243
    %v1257 = vpop.f32.mrf.mxu0
    %v1258 = vadd.f32 0.0, %v1257
    %v1259 = vpop.f32.mrf.mxu0
    %v1260 = vadd.f32 0.0, %v1259
    %1261 = vmatmul.bf16.gmra.mxu0 %v1246
    %v1262 = vpop.f32.mrf.mxu0
    %v1263 = vadd.f32 0.0, %v1262
    %v1264 = vpop.f32.mrf.mxu0
    %v1265 = vadd.f32 0.0, %v1264
    %1266 = vdwg.mxu0
    %v1267 = vadd.f32 %v1187, %v1258
    %v1268 = vadd.f32 %v1188, %v1260
    %v1269 = vadd.f32 %v1189, %v1263
    %v1270 = vadd.f32 %v1190, %v1265
    %v1271 = vld [vmem:[%s7] sm:$0x1]
    %v1273 = vperm.slane %v1271, 0
    %v1275 = vadd.f32 %v1267, %v1273
    %v1276 = vadd.f32 %v1268, %v1273
    %v1277 = vadd.f32 %v1269, %v1273
    %v1278 = vadd.f32 %v1270, %v1273
    %v1279 = vmax.f32 %v1275, 0.0
    %v1280 = vmax.f32 %v1276, 0.0
    %v1281 = vmax.f32 %v1277, 0.0
    %v1282 = vmax.f32 %v1278, 0.0
    %v1283 = vpack.c.bf16 %v1280, %v1279
    %v1284 = vpack.c.bf16 %v1282, %v1281
    %v1285 = vld [vmem:[%s8] sm:$0xf]
    %v1286 = vld [vmem:[%s8 + $0x4] sm:$0xf]
    %v1287 = vld [vmem:[%s9] sm:$0x1]
    %v1289 = vperm.slane %v1287, 0
    %v1293 = vunpack.c.l.b16 %v1285
    %v1294 = vunpack.c.l.b16 %v1286
    %v1295 = vpack.c.b16 %v1294, %v1293
    %v1298 = vsel %vm654, %v1283, 0
    %v1301 = vsel %vm654, %v1284, 0
    %1303 = vmatpush.bf16.msra.mxu0 0
    %1304 = vmatpush.bf16.msra.mxu0 0
    %1305 = vmatpush.bf16.msra.mxu0 0
    %1306 = vmatpush.bf16.msra.mxu0 0
    %1307 = vmatpush.bf16.msra.mxu0 0
    %1308 = vmatpush.bf16.msra.mxu0 0
    %1309 = vmatpush.bf16.msra.mxu0 0
    %1310 = vmatpush.bf16.msra.mxu0 %v1295
    %1311 = vmatmul.bf16.gmra.mxu0 %v1298
    %v1312 = vpop.f32.mrf.mxu0
    %v1313 = vadd.f32 %v1289, %v1312
    %v1314 = vpop.f32.mrf.mxu0
    %v1315 = vadd.f32 %v1289, %v1314
    %1316 = vmatmul.bf16.gmra.mxu0 %v1301
    %v1317 = vpop.f32.mrf.mxu0
    %v1318 = vadd.f32 %v1289, %v1317
    %v1319 = vpop.f32.mrf.mxu0
    %v1320 = vadd.f32 %v1289, %v1319
    %1321 = vdwg.mxu0
    %v1322 = vadd.f32 %v1313, %v506
    %v1323 = vadd.f32 %v1315, %v508
    %v1324 = vadd.f32 %v1318, %v511
    %v1325 = vadd.f32 %v1320, %v513
    %v1326 = vmax.f32 %v1322, 0.0
    %v1327 = vmax.f32 %v1323, 0.0
    %v1328 = vmax.f32 %v1324, 0.0
    %v1329 = vmax.f32 %v1325, 0.0
    %v1330 = vpack.c.bf16 %v1326, %v1326
    %v1331 = vpack.c.bf16 %v1327, %v1327
    %v1332 = vpack.c.bf16 %v1328, %v1328
    %v1333 = vpack.c.bf16 %v1329, %v1329
    %v1334 = vunpack.c.l.bf16 %v1330
    %v1335 = vunpack.c.l.bf16 %v1331
    %v1336 = vunpack.c.l.bf16 %v1332
    %v1337 = vunpack.c.l.bf16 %v1333
    %v1338 = vld [vmem:[%s12] sm:$0xf]
    %v1339 = vld [vmem:[%s12 + $0x4] sm:$0xf]
    %v1340 = vld [vmem:[%s12 + $0x8] sm:$0xf]
    %v1341 = vld [vmem:[%s12 + $0xc] sm:$0xf]
    %v1342 = vld [vmem:[%s12 + $0x10] sm:$0xf]
    %v1343 = vld [vmem:[%s12 + $0x14] sm:$0xf]
    %v1344 = vld [vmem:[%s12 + $0x18] sm:$0xf]
    %v1345 = vld [vmem:[%s12 + $0x1c] sm:$0xf]
    %v1346 = vld [vmem:[%s13] sm:$0x1]
    %v1348 = vperm.slane %v1346, 0
    %v1354 = vunpack.c.l.b16 %v1330
    %v1355 = vunpack.c.l.b16 %v1331
    %v1356 = vunpack.c.l.b16 %v1332
    %v1357 = vunpack.c.l.b16 %v1333
    %v1358 = vpack.c.b16 %v1355, %v1354
    %v1359 = vpack.c.b16 %v1357, %v1356
    %v1368 = vunpack.c.l.b16 %v1338
    %v1369 = vunpack.c.l.b16 %v1339
    %v1370 = vunpack.c.l.b16 %v1340
    %v1371 = vunpack.c.l.b16 %v1341
    %v1372 = vunpack.c.l.b16 %v1342
    %v1373 = vunpack.c.l.b16 %v1343
    %v1374 = vunpack.c.l.b16 %v1344
    %v1375 = vunpack.c.l.b16 %v1345
    %v1376 = vpack.c.b16 %v1369, %v1368
    %v1377 = vpack.c.b16 %v1371, %v1370
    %v1378 = vpack.c.b16 %v1373, %v1372
    %v1379 = vpack.c.b16 %v1375, %v1374
    %vm1384 = vcmask 523264
    %v1386 = vsel %vm1384, %v1358, 0
    %v1389 = vsel %vm1384, %v1359, 0
    %1391 = vmatpush.bf16.msra.mxu0 0
    %1392 = vmatpush.bf16.msra.mxu0 0
    %1393 = vmatpush.bf16.msra.mxu0 0
    %1394 = vmatpush.bf16.msra.mxu0 0
    %1395 = vmatpush.bf16.msra.mxu0 %v1379
    %1396 = vmatpush.bf16.msra.mxu0 %v1378
    %1397 = vmatpush.bf16.msra.mxu0 %v1377
    %1398 = vmatpush.bf16.msra.mxu0 %v1376
    %1399 = vmatmul.bf16.gmra.mxu0 %v1386
    %v1400 = vpop.f32.mrf.mxu0
    %v1401 = vadd.f32 %v1348, %v1400
    %v1402 = vpop.f32.mrf.mxu0
    %v1403 = vadd.f32 %v1348, %v1402
    %1404 = vmatmul.bf16.gmra.mxu0 %v1389
    %v1405 = vpop.f32.mrf.mxu0
    %v1406 = vadd.f32 %v1348, %v1405
    %v1407 = vpop.f32.mrf.mxu0
    %v1408 = vadd.f32 %v1348, %v1407
    %1409 = vdwg.mxu0
    %v1410 = vmax.f32 %v1401, 0.0
    %v1411 = vmax.f32 %v1403, 0.0
    %v1412 = vmax.f32 %v1406, 0.0
    %v1413 = vmax.f32 %v1408, 0.0
    %v1414 = vpack.c.bf16 %v1411, %v1410
    %v1415 = vpack.c.bf16 %v1413, %v1412
    %1416 = vmatpush.bf16.msra.mxu0 0
    %1417 = vmatpush.bf16.msra.mxu0 0
    %1418 = vmatpush.bf16.msra.mxu0 0
    %1419 = vmatpush.bf16.msra.mxu0 0
    %1420 = vmatpush.bf16.msra.mxu0 0
    %1421 = vmatpush.bf16.msra.mxu0 0
    %1422 = vmatpush.bf16.msra.mxu0 %v1415
    %1423 = vmatpush.bf16.msra.mxu0 %v1414
    %1424 = vmatmul.bf16.gmra.mxu0 %v575
    %v1425 = vpop.f32.mrf.mxu0
    %v1426 = vadd.f32 0.0, %v1425
    %v1427 = vpop.f32.mrf.mxu0
    %v1428 = vadd.f32 0.0, %v1427
    %1429 = vmatmul.bf16.gmra.mxu0 %v578
    %v1430 = vpop.f32.mrf.mxu0
    %v1431 = vadd.f32 0.0, %v1430
    %v1432 = vpop.f32.mrf.mxu0
    %v1433 = vadd.f32 0.0, %v1432
    %1434 = vdwg.mxu0
    %v1435 = vpack.c.bf16 %v1428, %v1426
    %v1436 = vpack.c.bf16 %v1433, %v1431
    %v1437 = vld [vmem:[%s14] sm:$0xf]
    %v1438 = vld [vmem:[%s14 + $0x4] sm:$0xf]
    %1439 = vmatpush.bf16.msra.mxu0 0
    %1440 = vmatpush.bf16.msra.mxu0 0
    %1441 = vmatpush.bf16.msra.mxu0 0
    %1442 = vmatpush.bf16.msra.mxu0 0
    %1443 = vmatpush.bf16.msra.mxu0 0
    %1444 = vmatpush.bf16.msra.mxu0 0
    %1445 = vmatpush.bf16.msra.mxu0 %v1415
    %1446 = vmatpush.bf16.msra.mxu0 %v1414
    %1447 = vmatmul.bf16.gmra.mxu0 %v619
    %v1448 = vpop.f32.mrf.mxu0
    %v1449 = vadd.f32 0.0, %v1448
    %v1450 = vpop.f32.mrf.mxu0
    %v1451 = vadd.f32 0.0, %v1450
    %1452 = vmatmul.bf16.gmra.mxu0 %v622
    %v1453 = vpop.f32.mrf.mxu0
    %v1454 = vadd.f32 0.0, %v1453
    %v1455 = vpop.f32.mrf.mxu0
    %v1456 = vadd.f32 0.0, %v1455
    %1457 = vdwg.mxu0
    %v1458 = vpack.c.bf16 %v1451, %v1449
    %v1459 = vpack.c.bf16 %v1456, %v1454
    %s1460 = scalar_lea.vmem %s14, 8
    %v1461 = vld [vmem:[%s1460] sm:$0xf]
    %v1462 = vld [vmem:[%s1460 + $0x4] sm:$0xf]
    %v1465 = vunpack.c.l.b16 %v1461
    %v1466 = vunpack.c.l.b16 %v1462
    %v1467 = vpack.c.b16 %v1466, %v1465
    %v1470 = vsel %vm654, %v1458, 0
    %v1473 = vsel %vm654, %v1459, 0
    %1475 = vmatpush.bf16.msra.mxu0 0
    %1476 = vmatpush.bf16.msra.mxu0 0
    %1477 = vmatpush.bf16.msra.mxu0 0
    %1478 = vmatpush.bf16.msra.mxu0 0
    %1479 = vmatpush.bf16.msra.mxu0 0
    %1480 = vmatpush.bf16.msra.mxu0 0
    %1481 = vmatpush.bf16.msra.mxu0 0
    %1482 = vmatpush.bf16.msra.mxu0 %v1467
    %1483 = vmatmul.bf16.gmra.mxu0 %v1470
    %v1484 = vpop.f32.mrf.mxu0
    %v1485 = vadd.f32 0.0, %v1484
    %v1486 = vpop.f32.mrf.mxu0
    %v1487 = vadd.f32 0.0, %v1486
    %1488 = vmatmul.bf16.gmra.mxu0 %v1473
    %v1489 = vpop.f32.mrf.mxu0
    %v1490 = vadd.f32 0.0, %v1489
    %v1491 = vpop.f32.mrf.mxu0
    %v1492 = vadd.f32 0.0, %v1491
    %1493 = vdwg.mxu0
    %v1496 = vunpack.c.l.b16 %v1437
    %v1497 = vunpack.c.l.b16 %v1438
    %v1498 = vpack.c.b16 %v1497, %v1496
    %v1501 = vsel %vm654, %v1435, 0
    %v1504 = vsel %vm654, %v1436, 0
    %1506 = vmatpush.bf16.msra.mxu0 0
    %1507 = vmatpush.bf16.msra.mxu0 0
    %1508 = vmatpush.bf16.msra.mxu0 0
    %1509 = vmatpush.bf16.msra.mxu0 0
    %1510 = vmatpush.bf16.msra.mxu0 0
    %1511 = vmatpush.bf16.msra.mxu0 0
    %1512 = vmatpush.bf16.msra.mxu0 0
    %1513 = vmatpush.bf16.msra.mxu0 %v1498
    %1514 = vmatmul.bf16.gmra.mxu0 %v1501
    %v1515 = vpop.f32.mrf.mxu0
    %v1516 = vadd.f32 %v1485, %v1515
    %v1517 = vpop.f32.mrf.mxu0
    %v1518 = vadd.f32 %v1487, %v1517
    %1519 = vmatmul.bf16.gmra.mxu0 %v1504
    %v1520 = vpop.f32.mrf.mxu0
    %v1521 = vadd.f32 %v1490, %v1520
    %v1522 = vpop.f32.mrf.mxu0
    %v1523 = vadd.f32 %v1492, %v1522
    %1524 = vdwg.mxu0
    %1525 = vmatpush.bf16.msra.mxu0 0
    %1526 = vmatpush.bf16.msra.mxu0 0
    %1527 = vmatpush.bf16.msra.mxu0 0
    %1528 = vmatpush.bf16.msra.mxu0 0
    %1529 = vmatpush.bf16.msra.mxu0 0
    %1530 = vmatpush.bf16.msra.mxu0 0
    %1531 = vmatpush.bf16.msra.mxu0 %v1415
    %1532 = vmatpush.bf16.msra.mxu0 %v1414
    %1533 = vmatmul.bf16.gmra.mxu0 %v727
    %v1534 = vpop.f32.mrf.mxu0
    %v1535 = vadd.f32 0.0, %v1534
    %v1536 = vpop.f32.mrf.mxu0
    %v1537 = vadd.f32 0.0, %v1536
    %1538 = vmatmul.bf16.gmra.mxu0 %v730
    %v1539 = vpop.f32.mrf.mxu0
    %v1540 = vadd.f32 0.0, %v1539
    %v1541 = vpop.f32.mrf.mxu0
    %v1542 = vadd.f32 0.0, %v1541
    %1543 = vdwg.mxu0
    %v1544 = vpack.c.bf16 %v1537, %v1535
    %v1545 = vpack.c.bf16 %v1542, %v1540
    %s1546 = scalar_lea.vmem %s14, 16
    %v1547 = vld [vmem:[%s1546] sm:$0xf]
    %v1548 = vld [vmem:[%s1546 + $0x4] sm:$0xf]
    %v1551 = vunpack.c.l.b16 %v1547
    %v1552 = vunpack.c.l.b16 %v1548
    %v1553 = vpack.c.b16 %v1552, %v1551
    %v1556 = vsel %vm654, %v1544, 0
    %v1559 = vsel %vm654, %v1545, 0
    %1561 = vmatpush.bf16.msra.mxu0 0
    %1562 = vmatpush.bf16.msra.mxu0 0
    %1563 = vmatpush.bf16.msra.mxu0 0
    %1564 = vmatpush.bf16.msra.mxu0 0
    %1565 = vmatpush.bf16.msra.mxu0 0
    %1566 = vmatpush.bf16.msra.mxu0 0
    %1567 = vmatpush.bf16.msra.mxu0 0
    %1568 = vmatpush.bf16.msra.mxu0 %v1553
    %1569 = vmatmul.bf16.gmra.mxu0 %v1556
    %v1570 = vpop.f32.mrf.mxu0
    %v1571 = vadd.f32 0.0, %v1570
    %v1572 = vpop.f32.mrf.mxu0
    %v1573 = vadd.f32 0.0, %v1572
    %1574 = vmatmul.bf16.gmra.mxu0 %v1559
    %v1575 = vpop.f32.mrf.mxu0
    %v1576 = vadd.f32 0.0, %v1575
    %v1577 = vpop.f32.mrf.mxu0
    %v1578 = vadd.f32 0.0, %v1577
    %1579 = vdwg.mxu0
    %v1580 = vadd.f32 %v1516, %v1571
    %v1581 = vadd.f32 %v1518, %v1573
    %v1582 = vadd.f32 %v1521, %v1576
    %v1583 = vadd.f32 %v1523, %v1578
    %1584 = vmatpush.bf16.msra.mxu0 0
    %1585 = vmatpush.bf16.msra.mxu0 0
    %1586 = vmatpush.bf16.msra.mxu0 0
    %1587 = vmatpush.bf16.msra.mxu0 0
    %1588 = vmatpush.bf16.msra.mxu0 0
    %1589 = vmatpush.bf16.msra.mxu0 0
    %1590 = vmatpush.bf16.msra.mxu0 %v1415
    %1591 = vmatpush.bf16.msra.mxu0 %v1414
    %1592 = vmatmul.bf16.gmra.mxu0 %v807
    %v1593 = vpop.f32.mrf.mxu0
    %v1594 = vadd.f32 0.0, %v1593
    %v1595 = vpop.f32.mrf.mxu0
    %v1596 = vadd.f32 0.0, %v1595
    %1597 = vmatmul.bf16.gmra.mxu0 %v810
    %v1598 = vpop.f32.mrf.mxu0
    %v1599 = vadd.f32 0.0, %v1598
    %v1600 = vpop.f32.mrf.mxu0
    %v1601 = vadd.f32 0.0, %v1600
    %1602 = vdwg.mxu0
    %v1603 = vpack.c.bf16 %v1596, %v1594
    %v1604 = vpack.c.bf16 %v1601, %v1599
    %s1605 = scalar_lea.vmem %s14, 24
    %v1606 = vld [vmem:[%s1605] sm:$0xf]
    %v1607 = vld [vmem:[%s1605 + $0x4] sm:$0xf]
    %v1610 = vunpack.c.l.b16 %v1606
    %v1611 = vunpack.c.l.b16 %v1607
    %v1612 = vpack.c.b16 %v1611, %v1610
    %v1615 = vsel %vm654, %v1603, 0
    %v1618 = vsel %vm654, %v1604, 0
    %1620 = vmatpush.bf16.msra.mxu0 0
    %1621 = vmatpush.bf16.msra.mxu0 0
    %1622 = vmatpush.bf16.msra.mxu0 0
    %1623 = vmatpush.bf16.msra.mxu0 0
    %1624 = vmatpush.bf16.msra.mxu0 0
    %1625 = vmatpush.bf16.msra.mxu0 0
    %1626 = vmatpush.bf16.msra.mxu0 0
    %1627 = vmatpush.bf16.msra.mxu0 %v1612
    %1628 = vmatmul.bf16.gmra.mxu0 %v1615
    %v1629 = vpop.f32.mrf.mxu0
    %v1630 = vadd.f32 0.0, %v1629
    %v1631 = vpop.f32.mrf.mxu0
    %v1632 = vadd.f32 0.0, %v1631
    %1633 = vmatmul.bf16.gmra.mxu0 %v1618
    %v1634 = vpop.f32.mrf.mxu0
    %v1635 = vadd.f32 0.0, %v1634
    %v1636 = vpop.f32.mrf.mxu0
    %v1637 = vadd.f32 0.0, %v1636
    %1638 = vdwg.mxu0
    %v1639 = vadd.f32 %v1580, %v1630
    %v1640 = vadd.f32 %v1581, %v1632
    %v1641 = vadd.f32 %v1582, %v1635
    %v1642 = vadd.f32 %v1583, %v1637
    %1643 = vmatpush.bf16.msra.mxu0 0
    %1644 = vmatpush.bf16.msra.mxu0 0
    %1645 = vmatpush.bf16.msra.mxu0 0
    %1646 = vmatpush.bf16.msra.mxu0 0
    %1647 = vmatpush.bf16.msra.mxu0 0
    %1648 = vmatpush.bf16.msra.mxu0 0
    %1649 = vmatpush.bf16.msra.mxu0 %v1415
    %1650 = vmatpush.bf16.msra.mxu0 %v1414
    %1651 = vmatmul.bf16.gmra.mxu0 %v887
    %v1652 = vpop.f32.mrf.mxu0
    %v1653 = vadd.f32 0.0, %v1652
    %v1654 = vpop.f32.mrf.mxu0
    %v1655 = vadd.f32 0.0, %v1654
    %1656 = vmatmul.bf16.gmra.mxu0 %v890
    %v1657 = vpop.f32.mrf.mxu0
    %v1658 = vadd.f32 0.0, %v1657
    %v1659 = vpop.f32.mrf.mxu0
    %v1660 = vadd.f32 0.0, %v1659
    %1661 = vdwg.mxu0
    %v1662 = vpack.c.bf16 %v1655, %v1653
    %v1663 = vpack.c.bf16 %v1660, %v1658
    %s1664 = scalar_lea.vmem %s14, 32
    %v1665 = vld [vmem:[%s1664] sm:$0xf]
    %v1666 = vld [vmem:[%s1664 + $0x4] sm:$0xf]
    %v1669 = vunpack.c.l.b16 %v1665
    %v1670 = vunpack.c.l.b16 %v1666
    %v1671 = vpack.c.b16 %v1670, %v1669
    %v1674 = vsel %vm654, %v1662, 0
    %v1677 = vsel %vm654, %v1663, 0
    %1679 = vmatpush.bf16.msra.mxu0 0
    %1680 = vmatpush.bf16.msra.mxu0 0
    %1681 = vmatpush.bf16.msra.mxu0 0
    %1682 = vmatpush.bf16.msra.mxu0 0
    %1683 = vmatpush.bf16.msra.mxu0 0
    %1684 = vmatpush.bf16.msra.mxu0 0
    %1685 = vmatpush.bf16.msra.mxu0 0
    %1686 = vmatpush.bf16.msra.mxu0 %v1671
    %1687 = vmatmul.bf16.gmra.mxu0 %v1674
    %v1688 = vpop.f32.mrf.mxu0
    %v1689 = vadd.f32 0.0, %v1688
    %v1690 = vpop.f32.mrf.mxu0
    %v1691 = vadd.f32 0.0, %v1690
    %1692 = vmatmul.bf16.gmra.mxu0 %v1677
    %v1693 = vpop.f32.mrf.mxu0
    %v1694 = vadd.f32 0.0, %v1693
    %v1695 = vpop.f32.mrf.mxu0
    %v1696 = vadd.f32 0.0, %v1695
    %1697 = vdwg.mxu0
    %v1698 = vadd.f32 %v1639, %v1689
    %v1699 = vadd.f32 %v1640, %v1691
    %v1700 = vadd.f32 %v1641, %v1694
    %v1701 = vadd.f32 %v1642, %v1696
    %1702 = vmatpush.bf16.msra.mxu0 0
    %1703 = vmatpush.bf16.msra.mxu0 0
    %1704 = vmatpush.bf16.msra.mxu0 0
    %1705 = vmatpush.bf16.msra.mxu0 0
    %1706 = vmatpush.bf16.msra.mxu0 0
    %1707 = vmatpush.bf16.msra.mxu0 0
    %1708 = vmatpush.bf16.msra.mxu0 %v1415
    %1709 = vmatpush.bf16.msra.mxu0 %v1414
    %1710 = vmatmul.bf16.gmra.mxu0 %v967
    %v1711 = vpop.f32.mrf.mxu0
    %v1712 = vadd.f32 0.0, %v1711
    %v1713 = vpop.f32.mrf.mxu0
    %v1714 = vadd.f32 0.0, %v1713
    %1715 = vmatmul.bf16.gmra.mxu0 %v970
    %v1716 = vpop.f32.mrf.mxu0
    %v1717 = vadd.f32 0.0, %v1716
    %v1718 = vpop.f32.mrf.mxu0
    %v1719 = vadd.f32 0.0, %v1718
    %1720 = vdwg.mxu0
    %v1721 = vpack.c.bf16 %v1714, %v1712
    %v1722 = vpack.c.bf16 %v1719, %v1717
    %s1723 = scalar_lea.vmem %s14, 40
    %v1724 = vld [vmem:[%s1723] sm:$0xf]
    %v1725 = vld [vmem:[%s1723 + $0x4] sm:$0xf]
    %v1728 = vunpack.c.l.b16 %v1724
    %v1729 = vunpack.c.l.b16 %v1725
    %v1730 = vpack.c.b16 %v1729, %v1728
    %v1733 = vsel %vm654, %v1721, 0
    %v1736 = vsel %vm654, %v1722, 0
    %1738 = vmatpush.bf16.msra.mxu0 0
    %1739 = vmatpush.bf16.msra.mxu0 0
    %1740 = vmatpush.bf16.msra.mxu0 0
    %1741 = vmatpush.bf16.msra.mxu0 0
    %1742 = vmatpush.bf16.msra.mxu0 0
    %1743 = vmatpush.bf16.msra.mxu0 0
    %1744 = vmatpush.bf16.msra.mxu0 0
    %1745 = vmatpush.bf16.msra.mxu0 %v1730
    %1746 = vmatmul.bf16.gmra.mxu0 %v1733
    %v1747 = vpop.f32.mrf.mxu0
    %v1748 = vadd.f32 0.0, %v1747
    %v1749 = vpop.f32.mrf.mxu0
    %v1750 = vadd.f32 0.0, %v1749
    %1751 = vmatmul.bf16.gmra.mxu0 %v1736
    %v1752 = vpop.f32.mrf.mxu0
    %v1753 = vadd.f32 0.0, %v1752
    %v1754 = vpop.f32.mrf.mxu0
    %v1755 = vadd.f32 0.0, %v1754
    %1756 = vdwg.mxu0
    %v1757 = vadd.f32 %v1698, %v1748
    %v1758 = vadd.f32 %v1699, %v1750
    %v1759 = vadd.f32 %v1700, %v1753
    %v1760 = vadd.f32 %v1701, %v1755
    %1761 = vmatpush.bf16.msra.mxu0 0
    %1762 = vmatpush.bf16.msra.mxu0 0
    %1763 = vmatpush.bf16.msra.mxu0 0
    %1764 = vmatpush.bf16.msra.mxu0 0
    %1765 = vmatpush.bf16.msra.mxu0 0
    %1766 = vmatpush.bf16.msra.mxu0 0
    %1767 = vmatpush.bf16.msra.mxu0 %v1415
    %1768 = vmatpush.bf16.msra.mxu0 %v1414
    %1769 = vmatmul.bf16.gmra.mxu0 %v1047
    %v1770 = vpop.f32.mrf.mxu0
    %v1771 = vadd.f32 0.0, %v1770
    %v1772 = vpop.f32.mrf.mxu0
    %v1773 = vadd.f32 0.0, %v1772
    %1774 = vmatmul.bf16.gmra.mxu0 %v1050
    %v1775 = vpop.f32.mrf.mxu0
    %v1776 = vadd.f32 0.0, %v1775
    %v1777 = vpop.f32.mrf.mxu0
    %v1778 = vadd.f32 0.0, %v1777
    %1779 = vdwg.mxu0
    %v1780 = vpack.c.bf16 %v1773, %v1771
    %v1781 = vpack.c.bf16 %v1778, %v1776
    %s1782 = scalar_lea.vmem %s14, 48
    %v1783 = vld [vmem:[%s1782] sm:$0xf]
    %v1784 = vld [vmem:[%s1782 + $0x4] sm:$0xf]
    %v1787 = vunpack.c.l.b16 %v1783
    %v1788 = vunpack.c.l.b16 %v1784
    %v1789 = vpack.c.b16 %v1788, %v1787
    %v1792 = vsel %vm654, %v1780, 0
    %v1795 = vsel %vm654, %v1781, 0
    %1797 = vmatpush.bf16.msra.mxu0 0
    %1798 = vmatpush.bf16.msra.mxu0 0
    %1799 = vmatpush.bf16.msra.mxu0 0
    %1800 = vmatpush.bf16.msra.mxu0 0
    %1801 = vmatpush.bf16.msra.mxu0 0
    %1802 = vmatpush.bf16.msra.mxu0 0
    %1803 = vmatpush.bf16.msra.mxu0 0
    %1804 = vmatpush.bf16.msra.mxu0 %v1789
    %1805 = vmatmul.bf16.gmra.mxu0 %v1792
    %v1806 = vpop.f32.mrf.mxu0
    %v1807 = vadd.f32 0.0, %v1806
    %v1808 = vpop.f32.mrf.mxu0
    %v1809 = vadd.f32 0.0, %v1808
    %1810 = vmatmul.bf16.gmra.mxu0 %v1795
    %v1811 = vpop.f32.mrf.mxu0
    %v1812 = vadd.f32 0.0, %v1811
    %v1813 = vpop.f32.mrf.mxu0
    %v1814 = vadd.f32 0.0, %v1813
    %1815 = vdwg.mxu0
    %v1816 = vadd.f32 %v1757, %v1807
    %v1817 = vadd.f32 %v1758, %v1809
    %v1818 = vadd.f32 %v1759, %v1812
    %v1819 = vadd.f32 %v1760, %v1814
    %1820 = vmatpush.bf16.msra.mxu0 0
    %1821 = vmatpush.bf16.msra.mxu0 0
    %1822 = vmatpush.bf16.msra.mxu0 0
    %1823 = vmatpush.bf16.msra.mxu0 0
    %1824 = vmatpush.bf16.msra.mxu0 0
    %1825 = vmatpush.bf16.msra.mxu0 0
    %1826 = vmatpush.bf16.msra.mxu0 %v1415
    %1827 = vmatpush.bf16.msra.mxu0 %v1414
    %1828 = vmatmul.bf16.gmra.mxu0 %v1127
    %v1829 = vpop.f32.mrf.mxu0
    %v1830 = vadd.f32 0.0, %v1829
    %v1831 = vpop.f32.mrf.mxu0
    %v1832 = vadd.f32 0.0, %v1831
    %1833 = vmatmul.bf16.gmra.mxu0 %v1130
    %v1834 = vpop.f32.mrf.mxu0
    %v1835 = vadd.f32 0.0, %v1834
    %v1836 = vpop.f32.mrf.mxu0
    %v1837 = vadd.f32 0.0, %v1836
    %1838 = vdwg.mxu0
    %v1839 = vpack.c.bf16 %v1832, %v1830
    %v1840 = vpack.c.bf16 %v1837, %v1835
    %s1841 = scalar_lea.vmem %s14, 56
    %v1842 = vld [vmem:[%s1841] sm:$0xf]
    %v1843 = vld [vmem:[%s1841 + $0x4] sm:$0xf]
    %v1846 = vunpack.c.l.b16 %v1842
    %v1847 = vunpack.c.l.b16 %v1843
    %v1848 = vpack.c.b16 %v1847, %v1846
    %v1851 = vsel %vm654, %v1839, 0
    %v1854 = vsel %vm654, %v1840, 0
    %1856 = vmatpush.bf16.msra.mxu0 0
    %1857 = vmatpush.bf16.msra.mxu0 0
    %1858 = vmatpush.bf16.msra.mxu0 0
    %1859 = vmatpush.bf16.msra.mxu0 0
    %1860 = vmatpush.bf16.msra.mxu0 0
    %1861 = vmatpush.bf16.msra.mxu0 0
    %1862 = vmatpush.bf16.msra.mxu0 0
    %1863 = vmatpush.bf16.msra.mxu0 %v1848
    %1864 = vmatmul.bf16.gmra.mxu0 %v1851
    %v1865 = vpop.f32.mrf.mxu0
    %v1866 = vadd.f32 0.0, %v1865
    %v1867 = vpop.f32.mrf.mxu0
    %v1868 = vadd.f32 0.0, %v1867
    %1869 = vmatmul.bf16.gmra.mxu0 %v1854
    %v1870 = vpop.f32.mrf.mxu0
    %v1871 = vadd.f32 0.0, %v1870
    %v1872 = vpop.f32.mrf.mxu0
    %v1873 = vadd.f32 0.0, %v1872
    %1874 = vdwg.mxu0
    %v1875 = vadd.f32 %v1816, %v1866
    %v1876 = vadd.f32 %v1817, %v1868
    %v1877 = vadd.f32 %v1818, %v1871
    %v1878 = vadd.f32 %v1819, %v1873
    %1879 = vmatpush.bf16.msra.mxu0 0
    %1880 = vmatpush.bf16.msra.mxu0 0
    %1881 = vmatpush.bf16.msra.mxu0 0
    %1882 = vmatpush.bf16.msra.mxu0 0
    %1883 = vmatpush.bf16.msra.mxu0 0
    %1884 = vmatpush.bf16.msra.mxu0 0
    %1885 = vmatpush.bf16.msra.mxu0 %v1415
    %1886 = vmatpush.bf16.msra.mxu0 %v1414
    %1887 = vmatmul.bf16.gmra.mxu0 %v1207
    %v1888 = vpop.f32.mrf.mxu0
    %v1889 = vadd.f32 0.0, %v1888
    %v1890 = vpop.f32.mrf.mxu0
    %v1891 = vadd.f32 0.0, %v1890
    %1892 = vmatmul.bf16.gmra.mxu0 %v1210
    %v1893 = vpop.f32.mrf.mxu0
    %v1894 = vadd.f32 0.0, %v1893
    %v1895 = vpop.f32.mrf.mxu0
    %v1896 = vadd.f32 0.0, %v1895
    %1897 = vdwg.mxu0
    %v1898 = vpack.c.bf16 %v1891, %v1889
    %v1899 = vpack.c.bf16 %v1896, %v1894
    %s1900 = scalar_lea.vmem %s14, 64
    %v1901 = vld [vmem:[%s1900] sm:$0xf]
    %v1902 = vld [vmem:[%s1900 + $0x4] sm:$0xf]
    %v1905 = vunpack.c.l.b16 %v1901
    %v1906 = vunpack.c.l.b16 %v1902
    %v1907 = vpack.c.b16 %v1906, %v1905
    %v1910 = vsel %vm654, %v1898, 0
    %v1913 = vsel %vm654, %v1899, 0
    %1915 = vmatpush.bf16.msra.mxu0 0
    %1916 = vmatpush.bf16.msra.mxu0 0
    %1917 = vmatpush.bf16.msra.mxu0 0
    %1918 = vmatpush.bf16.msra.mxu0 0
    %1919 = vmatpush.bf16.msra.mxu0 0
    %1920 = vmatpush.bf16.msra.mxu0 0
    %1921 = vmatpush.bf16.msra.mxu0 0
    %1922 = vmatpush.bf16.msra.mxu0 %v1907
    %1923 = vmatmul.bf16.gmra.mxu0 %v1910
    %v1924 = vpop.f32.mrf.mxu0
    %v1925 = vadd.f32 0.0, %v1924
    %v1926 = vpop.f32.mrf.mxu0
    %v1927 = vadd.f32 0.0, %v1926
    %1928 = vmatmul.bf16.gmra.mxu0 %v1913
    %v1929 = vpop.f32.mrf.mxu0
    %v1930 = vadd.f32 0.0, %v1929
    %v1931 = vpop.f32.mrf.mxu0
    %v1932 = vadd.f32 0.0, %v1931
    %1933 = vdwg.mxu0
    %v1934 = vadd.f32 %v1875, %v1925
    %v1935 = vadd.f32 %v1876, %v1927
    %v1936 = vadd.f32 %v1877, %v1930
    %v1937 = vadd.f32 %v1878, %v1932
    %v1938 = vld [vmem:[%s15] sm:$0x1]
    %v1940 = vperm.slane %v1938, 0
    %v1942 = vadd.f32 %v1934, %v1940
    %v1943 = vadd.f32 %v1935, %v1940
    %v1944 = vadd.f32 %v1936, %v1940
    %v1945 = vadd.f32 %v1937, %v1940
    %v1946 = vmax.f32 %v1942, 0.0
    %v1947 = vmax.f32 %v1943, 0.0
    %v1948 = vmax.f32 %v1944, 0.0
    %v1949 = vmax.f32 %v1945, 0.0
    %v1950 = vpack.c.bf16 %v1947, %v1946
    %v1951 = vpack.c.bf16 %v1949, %v1948
    %v1952 = vld [vmem:[%s16] sm:$0xf]
    %v1953 = vld [vmem:[%s16 + $0x4] sm:$0xf]
    %v1954 = vld [vmem:[%s17] sm:$0x1]
    %v1956 = vperm.slane %v1954, 0
    %v1960 = vunpack.c.l.b16 %v1952
    %v1961 = vunpack.c.l.b16 %v1953
    %v1962 = vpack.c.b16 %v1961, %v1960
    %v1965 = vsel %vm654, %v1950, 0
    %v1968 = vsel %vm654, %v1951, 0
    %1970 = vmatpush.bf16.msra.mxu0 0
    %1971 = vmatpush.bf16.msra.mxu0 0
    %1972 = vmatpush.bf16.msra.mxu0 0
    %1973 = vmatpush.bf16.msra.mxu0 0
    %1974 = vmatpush.bf16.msra.mxu0 0
    %1975 = vmatpush.bf16.msra.mxu0 0
    %1976 = vmatpush.bf16.msra.mxu0 0
    %1977 = vmatpush.bf16.msra.mxu0 %v1962
    %1978 = vmatmul.bf16.gmra.mxu0 %v1965
    %v1979 = vpop.f32.mrf.mxu0
    %v1980 = vadd.f32 %v1956, %v1979
    %v1981 = vpop.f32.mrf.mxu0
    %v1982 = vadd.f32 %v1956, %v1981
    %1983 = vmatmul.bf16.gmra.mxu0 %v1968
    %v1984 = vpop.f32.mrf.mxu0
    %v1985 = vadd.f32 %v1956, %v1984
    %v1986 = vpop.f32.mrf.mxu0
    %v1987 = vadd.f32 %v1956, %v1986
    %1988 = vdwg.mxu0
    %v1989 = vadd.f32 %v1980, %v1334
    %v1990 = vadd.f32 %v1982, %v1335
    %v1991 = vadd.f32 %v1985, %v1336
    %v1992 = vadd.f32 %v1987, %v1337
    %v1993 = vmax.f32 %v1989, 0.0
    %v1994 = vmax.f32 %v1990, 0.0
    %v1995 = vmax.f32 %v1991, 0.0
    %v1996 = vmax.f32 %v1992, 0.0
    %v1997 = vpack.c.bf16 %v1993, %v1993
    %v1998 = vpack.c.bf16 %v1994, %v1994
    %v1999 = vpack.c.bf16 %v1995, %v1995
    %v2000 = vpack.c.bf16 %v1996, %v1996
    %v2001 = vunpack.c.l.bf16 %v1997
    %v2002 = vunpack.c.l.bf16 %v1998
    %v2003 = vunpack.c.l.bf16 %v1999
    %v2004 = vunpack.c.l.bf16 %v2000
    %v2005 = vld [vmem:[%s18] sm:$0xf]
    %v2006 = vld [vmem:[%s18 + $0x4] sm:$0xf]
    %v2007 = vld [vmem:[%s18 + $0x8] sm:$0xf]
    %v2008 = vld [vmem:[%s18 + $0xc] sm:$0xf]
    %v2009 = vld [vmem:[%s18 + $0x10] sm:$0xf]
    %v2010 = vld [vmem:[%s18 + $0x14] sm:$0xf]
    %v2011 = vld [vmem:[%s18 + $0x18] sm:$0xf]
    %v2012 = vld [vmem:[%s18 + $0x1c] sm:$0xf]
    %v2013 = vld [vmem:[%s19] sm:$0x1]
    %v2015 = vperm.slane %v2013, 0
    %v2021 = vunpack.c.l.b16 %v1997
    %v2022 = vunpack.c.l.b16 %v1998
    %v2023 = vunpack.c.l.b16 %v1999
    %v2024 = vunpack.c.l.b16 %v2000
    %v2025 = vpack.c.b16 %v2022, %v2021
    %v2026 = vpack.c.b16 %v2024, %v2023
    %v2035 = vunpack.c.l.b16 %v2005
    %v2036 = vunpack.c.l.b16 %v2006
    %v2037 = vunpack.c.l.b16 %v2007
    %v2038 = vunpack.c.l.b16 %v2008
    %v2039 = vunpack.c.l.b16 %v2009
    %v2040 = vunpack.c.l.b16 %v2010
    %v2041 = vunpack.c.l.b16 %v2011
    %v2042 = vunpack.c.l.b16 %v2012
    %v2043 = vpack.c.b16 %v2036, %v2035
    %v2044 = vpack.c.b16 %v2038, %v2037
    %v2045 = vpack.c.b16 %v2040, %v2039
    %v2046 = vpack.c.b16 %v2042, %v2041
    %v2052 = vsel %vm1384, %v2025, 0
    %v2055 = vsel %vm1384, %v2026, 0
    %2057 = vmatpush.bf16.msra.mxu0 0
    %2058 = vmatpush.bf16.msra.mxu0 0
    %2059 = vmatpush.bf16.msra.mxu0 0
    %2060 = vmatpush.bf16.msra.mxu0 0
    %2061 = vmatpush.bf16.msra.mxu0 %v2046
    %2062 = vmatpush.bf16.msra.mxu0 %v2045
    %2063 = vmatpush.bf16.msra.mxu0 %v2044
    %2064 = vmatpush.bf16.msra.mxu0 %v2043
    %2065 = vmatmul.bf16.gmra.mxu0 %v2052
    %v2066 = vpop.f32.mrf.mxu0
    %v2067 = vadd.f32 %v2015, %v2066
    %v2068 = vpop.f32.mrf.mxu0
    %v2069 = vadd.f32 %v2015, %v2068
    %2070 = vmatmul.bf16.gmra.mxu0 %v2055
    %v2071 = vpop.f32.mrf.mxu0
    %v2072 = vadd.f32 %v2015, %v2071
    %v2073 = vpop.f32.mrf.mxu0
    %v2074 = vadd.f32 %v2015, %v2073
    %2075 = vdwg.mxu0
    %v2076 = vmax.f32 %v2067, 0.0
    %v2077 = vmax.f32 %v2069, 0.0
    %v2078 = vmax.f32 %v2072, 0.0
    %v2079 = vmax.f32 %v2074, 0.0
    %v2080 = vpack.c.bf16 %v2077, %v2076
    %v2081 = vpack.c.bf16 %v2079, %v2078
    %2082 = vmatpush.bf16.msra.mxu0 0
    %2083 = vmatpush.bf16.msra.mxu0 0
    %2084 = vmatpush.bf16.msra.mxu0 0
    %2085 = vmatpush.bf16.msra.mxu0 0
    %2086 = vmatpush.bf16.msra.mxu0 0
    %2087 = vmatpush.bf16.msra.mxu0 0
    %2088 = vmatpush.bf16.msra.mxu0 %v2081
    %2089 = vmatpush.bf16.msra.mxu0 %v2080
    %2090 = vmatmul.bf16.gmra.mxu0 %v575
    %v2091 = vpop.f32.mrf.mxu0
    %v2092 = vadd.f32 0.0, %v2091
    %v2093 = vpop.f32.mrf.mxu0
    %v2094 = vadd.f32 0.0, %v2093
    %2095 = vmatmul.bf16.gmra.mxu0 %v578
    %v2096 = vpop.f32.mrf.mxu0
    %v2097 = vadd.f32 0.0, %v2096
    %v2098 = vpop.f32.mrf.mxu0
    %v2099 = vadd.f32 0.0, %v2098
    %2100 = vdwg.mxu0
    %v2101 = vpack.c.bf16 %v2094, %v2092
    %v2102 = vpack.c.bf16 %v2099, %v2097
    %v2103 = vld [vmem:[%s20] sm:$0xf]
    %v2104 = vld [vmem:[%s20 + $0x4] sm:$0xf]
    %2105 = vmatpush.bf16.msra.mxu0 0
    %2106 = vmatpush.bf16.msra.mxu0 0
    %2107 = vmatpush.bf16.msra.mxu0 0
    %2108 = vmatpush.bf16.msra.mxu0 0
    %2109 = vmatpush.bf16.msra.mxu0 0
    %2110 = vmatpush.bf16.msra.mxu0 0
    %2111 = vmatpush.bf16.msra.mxu0 %v2081
    %2112 = vmatpush.bf16.msra.mxu0 %v2080
    %2113 = vmatmul.bf16.gmra.mxu0 %v619
    %v2114 = vpop.f32.mrf.mxu0
    %v2115 = vadd.f32 0.0, %v2114
    %v2116 = vpop.f32.mrf.mxu0
    %v2117 = vadd.f32 0.0, %v2116
    %2118 = vmatmul.bf16.gmra.mxu0 %v622
    %v2119 = vpop.f32.mrf.mxu0
    %v2120 = vadd.f32 0.0, %v2119
    %v2121 = vpop.f32.mrf.mxu0
    %v2122 = vadd.f32 0.0, %v2121
    %2123 = vdwg.mxu0
    %v2124 = vpack.c.bf16 %v2117, %v2115
    %v2125 = vpack.c.bf16 %v2122, %v2120
    %s2126 = scalar_lea.vmem %s20, 8
    %v2127 = vld [vmem:[%s2126] sm:$0xf]
    %v2128 = vld [vmem:[%s2126 + $0x4] sm:$0xf]
    %v2131 = vunpack.c.l.b16 %v2127
    %v2132 = vunpack.c.l.b16 %v2128
    %v2133 = vpack.c.b16 %v2132, %v2131
    %v2136 = vsel %vm654, %v2124, 0
    %v2139 = vsel %vm654, %v2125, 0
    %2141 = vmatpush.bf16.msra.mxu0 0
    %2142 = vmatpush.bf16.msra.mxu0 0
    %2143 = vmatpush.bf16.msra.mxu0 0
    %2144 = vmatpush.bf16.msra.mxu0 0
    %2145 = vmatpush.bf16.msra.mxu0 0
    %2146 = vmatpush.bf16.msra.mxu0 0
    %2147 = vmatpush.bf16.msra.mxu0 0
    %2148 = vmatpush.bf16.msra.mxu0 %v2133
    %2149 = vmatmul.bf16.gmra.mxu0 %v2136
    %v2150 = vpop.f32.mrf.mxu0
    %v2151 = vadd.f32 0.0, %v2150
    %v2152 = vpop.f32.mrf.mxu0
    %v2153 = vadd.f32 0.0, %v2152
    %2154 = vmatmul.bf16.gmra.mxu0 %v2139
    %v2155 = vpop.f32.mrf.mxu0
    %v2156 = vadd.f32 0.0, %v2155
    %v2157 = vpop.f32.mrf.mxu0
    %v2158 = vadd.f32 0.0, %v2157
    %2159 = vdwg.mxu0
    %v2162 = vunpack.c.l.b16 %v2103
    %v2163 = vunpack.c.l.b16 %v2104
    %v2164 = vpack.c.b16 %v2163, %v2162
    %v2167 = vsel %vm654, %v2101, 0
    %v2170 = vsel %vm654, %v2102, 0
    %2172 = vmatpush.bf16.msra.mxu0 0
    %2173 = vmatpush.bf16.msra.mxu0 0
    %2174 = vmatpush.bf16.msra.mxu0 0
    %2175 = vmatpush.bf16.msra.mxu0 0
    %2176 = vmatpush.bf16.msra.mxu0 0
    %2177 = vmatpush.bf16.msra.mxu0 0
    %2178 = vmatpush.bf16.msra.mxu0 0
    %2179 = vmatpush.bf16.msra.mxu0 %v2164
    %2180 = vmatmul.bf16.gmra.mxu0 %v2167
    %v2181 = vpop.f32.mrf.mxu0
    %v2182 = vadd.f32 %v2151, %v2181
    %v2183 = vpop.f32.mrf.mxu0
    %v2184 = vadd.f32 %v2153, %v2183
    %2185 = vmatmul.bf16.gmra.mxu0 %v2170
    %v2186 = vpop.f32.mrf.mxu0
    %v2187 = vadd.f32 %v2156, %v2186
    %v2188 = vpop.f32.mrf.mxu0
    %v2189 = vadd.f32 %v2158, %v2188
    %2190 = vdwg.mxu0
    %2191 = vmatpush.bf16.msra.mxu0 0
    %2192 = vmatpush.bf16.msra.mxu0 0
    %2193 = vmatpush.bf16.msra.mxu0 0
    %2194 = vmatpush.bf16.msra.mxu0 0
    %2195 = vmatpush.bf16.msra.mxu0 0
    %2196 = vmatpush.bf16.msra.mxu0 0
    %2197 = vmatpush.bf16.msra.mxu0 %v2081
    %2198 = vmatpush.bf16.msra.mxu0 %v2080
    %2199 = vmatmul.bf16.gmra.mxu0 %v727
    %v2200 = vpop.f32.mrf.mxu0
    %v2201 = vadd.f32 0.0, %v2200
    %v2202 = vpop.f32.mrf.mxu0
    %v2203 = vadd.f32 0.0, %v2202
    %2204 = vmatmul.bf16.gmra.mxu0 %v730
    %v2205 = vpop.f32.mrf.mxu0
    %v2206 = vadd.f32 0.0, %v2205
    %v2207 = vpop.f32.mrf.mxu0
    %v2208 = vadd.f32 0.0, %v2207
    %2209 = vdwg.mxu0
    %v2210 = vpack.c.bf16 %v2203, %v2201
    %v2211 = vpack.c.bf16 %v2208, %v2206
    %s2212 = scalar_lea.vmem %s20, 16
    %v2213 = vld [vmem:[%s2212] sm:$0xf]
    %v2214 = vld [vmem:[%s2212 + $0x4] sm:$0xf]
    %v2217 = vunpack.c.l.b16 %v2213
    %v2218 = vunpack.c.l.b16 %v2214
    %v2219 = vpack.c.b16 %v2218, %v2217
    %v2222 = vsel %vm654, %v2210, 0
    %v2225 = vsel %vm654, %v2211, 0
    %2227 = vmatpush.bf16.msra.mxu0 0
    %2228 = vmatpush.bf16.msra.mxu0 0
    %2229 = vmatpush.bf16.msra.mxu0 0
    %2230 = vmatpush.bf16.msra.mxu0 0
    %2231 = vmatpush.bf16.msra.mxu0 0
    %2232 = vmatpush.bf16.msra.mxu0 0
    %2233 = vmatpush.bf16.msra.mxu0 0
    %2234 = vmatpush.bf16.msra.mxu0 %v2219
    %2235 = vmatmul.bf16.gmra.mxu0 %v2222
    %v2236 = vpop.f32.mrf.mxu0
    %v2237 = vadd.f32 0.0, %v2236
    %v2238 = vpop.f32.mrf.mxu0
    %v2239 = vadd.f32 0.0, %v2238
    %2240 = vmatmul.bf16.gmra.mxu0 %v2225
    %v2241 = vpop.f32.mrf.mxu0
    %v2242 = vadd.f32 0.0, %v2241
    %v2243 = vpop.f32.mrf.mxu0
    %v2244 = vadd.f32 0.0, %v2243
    %2245 = vdwg.mxu0
    %v2246 = vadd.f32 %v2182, %v2237
    %v2247 = vadd.f32 %v2184, %v2239
    %v2248 = vadd.f32 %v2187, %v2242
    %v2249 = vadd.f32 %v2189, %v2244
    %2250 = vmatpush.bf16.msra.mxu0 0
    %2251 = vmatpush.bf16.msra.mxu0 0
    %2252 = vmatpush.bf16.msra.mxu0 0
    %2253 = vmatpush.bf16.msra.mxu0 0
    %2254 = vmatpush.bf16.msra.mxu0 0
    %2255 = vmatpush.bf16.msra.mxu0 0
    %2256 = vmatpush.bf16.msra.mxu0 %v2081
    %2257 = vmatpush.bf16.msra.mxu0 %v2080
    %2258 = vmatmul.bf16.gmra.mxu0 %v807
    %v2259 = vpop.f32.mrf.mxu0
    %v2260 = vadd.f32 0.0, %v2259
    %v2261 = vpop.f32.mrf.mxu0
    %v2262 = vadd.f32 0.0, %v2261
    %2263 = vmatmul.bf16.gmra.mxu0 %v810
    %v2264 = vpop.f32.mrf.mxu0
    %v2265 = vadd.f32 0.0, %v2264
    %v2266 = vpop.f32.mrf.mxu0
    %v2267 = vadd.f32 0.0, %v2266
    %2268 = vdwg.mxu0
    %v2269 = vpack.c.bf16 %v2262, %v2260
    %v2270 = vpack.c.bf16 %v2267, %v2265
    %s2271 = scalar_lea.vmem %s20, 24
    %v2272 = vld [vmem:[%s2271] sm:$0xf]
    %v2273 = vld [vmem:[%s2271 + $0x4] sm:$0xf]
    %v2276 = vunpack.c.l.b16 %v2272
    %v2277 = vunpack.c.l.b16 %v2273
    %v2278 = vpack.c.b16 %v2277, %v2276
    %v2281 = vsel %vm654, %v2269, 0
    %v2284 = vsel %vm654, %v2270, 0
    %2286 = vmatpush.bf16.msra.mxu0 0
    %2287 = vmatpush.bf16.msra.mxu0 0
    %2288 = vmatpush.bf16.msra.mxu0 0
    %2289 = vmatpush.bf16.msra.mxu0 0
    %2290 = vmatpush.bf16.msra.mxu0 0
    %2291 = vmatpush.bf16.msra.mxu0 0
    %2292 = vmatpush.bf16.msra.mxu0 0
    %2293 = vmatpush.bf16.msra.mxu0 %v2278
    %2294 = vmatmul.bf16.gmra.mxu0 %v2281
    %v2295 = vpop.f32.mrf.mxu0
    %v2296 = vadd.f32 0.0, %v2295
    %v2297 = vpop.f32.mrf.mxu0
    %v2298 = vadd.f32 0.0, %v2297
    %2299 = vmatmul.bf16.gmra.mxu0 %v2284
    %v2300 = vpop.f32.mrf.mxu0
    %v2301 = vadd.f32 0.0, %v2300
    %v2302 = vpop.f32.mrf.mxu0
    %v2303 = vadd.f32 0.0, %v2302
    %2304 = vdwg.mxu0
    %v2305 = vadd.f32 %v2246, %v2296
    %v2306 = vadd.f32 %v2247, %v2298
    %v2307 = vadd.f32 %v2248, %v2301
    %v2308 = vadd.f32 %v2249, %v2303
    %2309 = vmatpush.bf16.msra.mxu0 0
    %2310 = vmatpush.bf16.msra.mxu0 0
    %2311 = vmatpush.bf16.msra.mxu0 0
    %2312 = vmatpush.bf16.msra.mxu0 0
    %2313 = vmatpush.bf16.msra.mxu0 0
    %2314 = vmatpush.bf16.msra.mxu0 0
    %2315 = vmatpush.bf16.msra.mxu0 %v2081
    %2316 = vmatpush.bf16.msra.mxu0 %v2080
    %2317 = vmatmul.bf16.gmra.mxu0 %v887
    %v2318 = vpop.f32.mrf.mxu0
    %v2319 = vadd.f32 0.0, %v2318
    %v2320 = vpop.f32.mrf.mxu0
    %v2321 = vadd.f32 0.0, %v2320
    %2322 = vmatmul.bf16.gmra.mxu0 %v890
    %v2323 = vpop.f32.mrf.mxu0
    %v2324 = vadd.f32 0.0, %v2323
    %v2325 = vpop.f32.mrf.mxu0
    %v2326 = vadd.f32 0.0, %v2325
    %2327 = vdwg.mxu0
    %v2328 = vpack.c.bf16 %v2321, %v2319
    %v2329 = vpack.c.bf16 %v2326, %v2324
    %s2330 = scalar_lea.vmem %s20, 32
    %v2331 = vld [vmem:[%s2330] sm:$0xf]
    %v2332 = vld [vmem:[%s2330 + $0x4] sm:$0xf]
    %v2335 = vunpack.c.l.b16 %v2331
    %v2336 = vunpack.c.l.b16 %v2332
    %v2337 = vpack.c.b16 %v2336, %v2335
    %v2340 = vsel %vm654, %v2328, 0
    %v2343 = vsel %vm654, %v2329, 0
    %2345 = vmatpush.bf16.msra.mxu0 0
    %2346 = vmatpush.bf16.msra.mxu0 0
    %2347 = vmatpush.bf16.msra.mxu0 0
    %2348 = vmatpush.bf16.msra.mxu0 0
    %2349 = vmatpush.bf16.msra.mxu0 0
    %2350 = vmatpush.bf16.msra.mxu0 0
    %2351 = vmatpush.bf16.msra.mxu0 0
    %2352 = vmatpush.bf16.msra.mxu0 %v2337
    %2353 = vmatmul.bf16.gmra.mxu0 %v2340
    %v2354 = vpop.f32.mrf.mxu0
    %v2355 = vadd.f32 0.0, %v2354
    %v2356 = vpop.f32.mrf.mxu0
    %v2357 = vadd.f32 0.0, %v2356
    %2358 = vmatmul.bf16.gmra.mxu0 %v2343
    %v2359 = vpop.f32.mrf.mxu0
    %v2360 = vadd.f32 0.0, %v2359
    %v2361 = vpop.f32.mrf.mxu0
    %v2362 = vadd.f32 0.0, %v2361
    %2363 = vdwg.mxu0
    %v2364 = vadd.f32 %v2305, %v2355
    %v2365 = vadd.f32 %v2306, %v2357
    %v2366 = vadd.f32 %v2307, %v2360
    %v2367 = vadd.f32 %v2308, %v2362
    %2368 = vmatpush.bf16.msra.mxu0 0
    %2369 = vmatpush.bf16.msra.mxu0 0
    %2370 = vmatpush.bf16.msra.mxu0 0
    %2371 = vmatpush.bf16.msra.mxu0 0
    %2372 = vmatpush.bf16.msra.mxu0 0
    %2373 = vmatpush.bf16.msra.mxu0 0
    %2374 = vmatpush.bf16.msra.mxu0 %v2081
    %2375 = vmatpush.bf16.msra.mxu0 %v2080
    %2376 = vmatmul.bf16.gmra.mxu0 %v967
    %v2377 = vpop.f32.mrf.mxu0
    %v2378 = vadd.f32 0.0, %v2377
    %v2379 = vpop.f32.mrf.mxu0
    %v2380 = vadd.f32 0.0, %v2379
    %2381 = vmatmul.bf16.gmra.mxu0 %v970
    %v2382 = vpop.f32.mrf.mxu0
    %v2383 = vadd.f32 0.0, %v2382
    %v2384 = vpop.f32.mrf.mxu0
    %v2385 = vadd.f32 0.0, %v2384
    %2386 = vdwg.mxu0
    %v2387 = vpack.c.bf16 %v2380, %v2378
    %v2388 = vpack.c.bf16 %v2385, %v2383
    %s2389 = scalar_lea.vmem %s20, 40
    %v2390 = vld [vmem:[%s2389] sm:$0xf]
    %v2391 = vld [vmem:[%s2389 + $0x4] sm:$0xf]
    %v2394 = vunpack.c.l.b16 %v2390
    %v2395 = vunpack.c.l.b16 %v2391
    %v2396 = vpack.c.b16 %v2395, %v2394
    %v2399 = vsel %vm654, %v2387, 0
    %v2402 = vsel %vm654, %v2388, 0
    %2404 = vmatpush.bf16.msra.mxu0 0
    %2405 = vmatpush.bf16.msra.mxu0 0
    %2406 = vmatpush.bf16.msra.mxu0 0
    %2407 = vmatpush.bf16.msra.mxu0 0
    %2408 = vmatpush.bf16.msra.mxu0 0
    %2409 = vmatpush.bf16.msra.mxu0 0
    %2410 = vmatpush.bf16.msra.mxu0 0
    %2411 = vmatpush.bf16.msra.mxu0 %v2396
    %2412 = vmatmul.bf16.gmra.mxu0 %v2399
    %v2413 = vpop.f32.mrf.mxu0
    %v2414 = vadd.f32 0.0, %v2413
    %v2415 = vpop.f32.mrf.mxu0
    %v2416 = vadd.f32 0.0, %v2415
    %2417 = vmatmul.bf16.gmra.mxu0 %v2402
    %v2418 = vpop.f32.mrf.mxu0
    %v2419 = vadd.f32 0.0, %v2418
    %v2420 = vpop.f32.mrf.mxu0
    %v2421 = vadd.f32 0.0, %v2420
    %2422 = vdwg.mxu0
    %v2423 = vadd.f32 %v2364, %v2414
    %v2424 = vadd.f32 %v2365, %v2416
    %v2425 = vadd.f32 %v2366, %v2419
    %v2426 = vadd.f32 %v2367, %v2421
    %2427 = vmatpush.bf16.msra.mxu0 0
    %2428 = vmatpush.bf16.msra.mxu0 0
    %2429 = vmatpush.bf16.msra.mxu0 0
    %2430 = vmatpush.bf16.msra.mxu0 0
    %2431 = vmatpush.bf16.msra.mxu0 0
    %2432 = vmatpush.bf16.msra.mxu0 0
    %2433 = vmatpush.bf16.msra.mxu0 %v2081
    %2434 = vmatpush.bf16.msra.mxu0 %v2080
    %2435 = vmatmul.bf16.gmra.mxu0 %v1047
    %v2436 = vpop.f32.mrf.mxu0
    %v2437 = vadd.f32 0.0, %v2436
    %v2438 = vpop.f32.mrf.mxu0
    %v2439 = vadd.f32 0.0, %v2438
    %2440 = vmatmul.bf16.gmra.mxu0 %v1050
    %v2441 = vpop.f32.mrf.mxu0
    %v2442 = vadd.f32 0.0, %v2441
    %v2443 = vpop.f32.mrf.mxu0
    %v2444 = vadd.f32 0.0, %v2443
    %2445 = vdwg.mxu0
    %v2446 = vpack.c.bf16 %v2439, %v2437
    %v2447 = vpack.c.bf16 %v2444, %v2442
    %s2448 = scalar_lea.vmem %s20, 48
    %v2449 = vld [vmem:[%s2448] sm:$0xf]
    %v2450 = vld [vmem:[%s2448 + $0x4] sm:$0xf]
    %v2453 = vunpack.c.l.b16 %v2449
    %v2454 = vunpack.c.l.b16 %v2450
    %v2455 = vpack.c.b16 %v2454, %v2453
    %v2458 = vsel %vm654, %v2446, 0
    %v2461 = vsel %vm654, %v2447, 0
    %2463 = vmatpush.bf16.msra.mxu0 0
    %2464 = vmatpush.bf16.msra.mxu0 0
    %2465 = vmatpush.bf16.msra.mxu0 0
    %2466 = vmatpush.bf16.msra.mxu0 0
    %2467 = vmatpush.bf16.msra.mxu0 0
    %2468 = vmatpush.bf16.msra.mxu0 0
    %2469 = vmatpush.bf16.msra.mxu0 0
    %2470 = vmatpush.bf16.msra.mxu0 %v2455
    %2471 = vmatmul.bf16.gmra.mxu0 %v2458
    %v2472 = vpop.f32.mrf.mxu0
    %v2473 = vadd.f32 0.0, %v2472
    %v2474 = vpop.f32.mrf.mxu0
    %v2475 = vadd.f32 0.0, %v2474
    %2476 = vmatmul.bf16.gmra.mxu0 %v2461
    %v2477 = vpop.f32.mrf.mxu0
    %v2478 = vadd.f32 0.0, %v2477
    %v2479 = vpop.f32.mrf.mxu0
    %v2480 = vadd.f32 0.0, %v2479
    %2481 = vdwg.mxu0
    %v2482 = vadd.f32 %v2423, %v2473
    %v2483 = vadd.f32 %v2424, %v2475
    %v2484 = vadd.f32 %v2425, %v2478
    %v2485 = vadd.f32 %v2426, %v2480
    %2486 = vmatpush.bf16.msra.mxu0 0
    %2487 = vmatpush.bf16.msra.mxu0 0
    %2488 = vmatpush.bf16.msra.mxu0 0
    %2489 = vmatpush.bf16.msra.mxu0 0
    %2490 = vmatpush.bf16.msra.mxu0 0
    %2491 = vmatpush.bf16.msra.mxu0 0
    %2492 = vmatpush.bf16.msra.mxu0 %v2081
    %2493 = vmatpush.bf16.msra.mxu0 %v2080
    %2494 = vmatmul.bf16.gmra.mxu0 %v1127
    %v2495 = vpop.f32.mrf.mxu0
    %v2496 = vadd.f32 0.0, %v2495
    %v2497 = vpop.f32.mrf.mxu0
    %v2498 = vadd.f32 0.0, %v2497
    %2499 = vmatmul.bf16.gmra.mxu0 %v1130
    %v2500 = vpop.f32.mrf.mxu0
    %v2501 = vadd.f32 0.0, %v2500
    %v2502 = vpop.f32.mrf.mxu0
    %v2503 = vadd.f32 0.0, %v2502
    %2504 = vdwg.mxu0
    %v2505 = vpack.c.bf16 %v2498, %v2496
    %v2506 = vpack.c.bf16 %v2503, %v2501
    %s2507 = scalar_lea.vmem %s20, 56
    %v2508 = vld [vmem:[%s2507] sm:$0xf]
    %v2509 = vld [vmem:[%s2507 + $0x4] sm:$0xf]
    %v2512 = vunpack.c.l.b16 %v2508
    %v2513 = vunpack.c.l.b16 %v2509
    %v2514 = vpack.c.b16 %v2513, %v2512
    %v2517 = vsel %vm654, %v2505, 0
    %v2520 = vsel %vm654, %v2506, 0
    %2522 = vmatpush.bf16.msra.mxu0 0
    %2523 = vmatpush.bf16.msra.mxu0 0
    %2524 = vmatpush.bf16.msra.mxu0 0
    %2525 = vmatpush.bf16.msra.mxu0 0
    %2526 = vmatpush.bf16.msra.mxu0 0
    %2527 = vmatpush.bf16.msra.mxu0 0
    %2528 = vmatpush.bf16.msra.mxu0 0
    %2529 = vmatpush.bf16.msra.mxu0 %v2514
    %2530 = vmatmul.bf16.gmra.mxu0 %v2517
    %v2531 = vpop.f32.mrf.mxu0
    %v2532 = vadd.f32 0.0, %v2531
    %v2533 = vpop.f32.mrf.mxu0
    %v2534 = vadd.f32 0.0, %v2533
    %2535 = vmatmul.bf16.gmra.mxu0 %v2520
    %v2536 = vpop.f32.mrf.mxu0
    %v2537 = vadd.f32 0.0, %v2536
    %v2538 = vpop.f32.mrf.mxu0
    %v2539 = vadd.f32 0.0, %v2538
    %2540 = vdwg.mxu0
    %v2541 = vadd.f32 %v2482, %v2532
    %v2542 = vadd.f32 %v2483, %v2534
    %v2543 = vadd.f32 %v2484, %v2537
    %v2544 = vadd.f32 %v2485, %v2539
    %2545 = vmatpush.bf16.msra.mxu0 0
    %2546 = vmatpush.bf16.msra.mxu0 0
    %2547 = vmatpush.bf16.msra.mxu0 0
    %2548 = vmatpush.bf16.msra.mxu0 0
    %2549 = vmatpush.bf16.msra.mxu0 0
    %2550 = vmatpush.bf16.msra.mxu0 0
    %2551 = vmatpush.bf16.msra.mxu0 %v2081
    %2552 = vmatpush.bf16.msra.mxu0 %v2080
    %2553 = vmatmul.bf16.gmra.mxu0 %v1207
    %v2554 = vpop.f32.mrf.mxu0
    %v2555 = vadd.f32 0.0, %v2554
    %v2556 = vpop.f32.mrf.mxu0
    %v2557 = vadd.f32 0.0, %v2556
    %2558 = vmatmul.bf16.gmra.mxu0 %v1210
    %v2559 = vpop.f32.mrf.mxu0
    %v2560 = vadd.f32 0.0, %v2559
    %v2561 = vpop.f32.mrf.mxu0
    %v2562 = vadd.f32 0.0, %v2561
    %2563 = vdwg.mxu0
    %v2564 = vpack.c.bf16 %v2557, %v2555
    %v2565 = vpack.c.bf16 %v2562, %v2560
    %s2566 = scalar_lea.vmem %s20, 64
    %v2567 = vld [vmem:[%s2566] sm:$0xf]
    %v2568 = vld [vmem:[%s2566 + $0x4] sm:$0xf]
    %v2571 = vunpack.c.l.b16 %v2567
    %v2572 = vunpack.c.l.b16 %v2568
    %v2573 = vpack.c.b16 %v2572, %v2571
    %v2576 = vsel %vm654, %v2564, 0
    %v2579 = vsel %vm654, %v2565, 0
    %2581 = vmatpush.bf16.msra.mxu0 0
    %2582 = vmatpush.bf16.msra.mxu0 0
    %2583 = vmatpush.bf16.msra.mxu0 0
    %2584 = vmatpush.bf16.msra.mxu0 0
    %2585 = vmatpush.bf16.msra.mxu0 0
    %2586 = vmatpush.bf16.msra.mxu0 0
    %2587 = vmatpush.bf16.msra.mxu0 0
    %2588 = vmatpush.bf16.msra.mxu0 %v2573
    %2589 = vmatmul.bf16.gmra.mxu0 %v2576
    %v2590 = vpop.f32.mrf.mxu0
    %v2591 = vadd.f32 0.0, %v2590
    %v2592 = vpop.f32.mrf.mxu0
    %v2593 = vadd.f32 0.0, %v2592
    %2594 = vmatmul.bf16.gmra.mxu0 %v2579
    %v2595 = vpop.f32.mrf.mxu0
    %v2596 = vadd.f32 0.0, %v2595
    %v2597 = vpop.f32.mrf.mxu0
    %v2598 = vadd.f32 0.0, %v2597
    %2599 = vdwg.mxu0
    %v2600 = vadd.f32 %v2541, %v2591
    %v2601 = vadd.f32 %v2542, %v2593
    %v2602 = vadd.f32 %v2543, %v2596
    %v2603 = vadd.f32 %v2544, %v2598
    %v2604 = vld [vmem:[%s21] sm:$0x1]
    %v2606 = vperm.slane %v2604, 0
    %v2608 = vadd.f32 %v2600, %v2606
    %v2609 = vadd.f32 %v2601, %v2606
    %v2610 = vadd.f32 %v2602, %v2606
    %v2611 = vadd.f32 %v2603, %v2606
    %v2612 = vmax.f32 %v2608, 0.0
    %v2613 = vmax.f32 %v2609, 0.0
    %v2614 = vmax.f32 %v2610, 0.0
    %v2615 = vmax.f32 %v2611, 0.0
    %v2616 = vpack.c.bf16 %v2613, %v2612
    %v2617 = vpack.c.bf16 %v2615, %v2614
    %v2618 = vld [vmem:[%s22] sm:$0xf]
    %v2619 = vld [vmem:[%s22 + $0x4] sm:$0xf]
    %v2620 = vld [vmem:[%s23] sm:$0x1]
    %v2622 = vperm.slane %v2620, 0
    %v2626 = vunpack.c.l.b16 %v2618
    %v2627 = vunpack.c.l.b16 %v2619
    %v2628 = vpack.c.b16 %v2627, %v2626
    %v2631 = vsel %vm654, %v2616, 0
    %v2634 = vsel %vm654, %v2617, 0
    %2636 = vmatpush.bf16.msra.mxu0 0
    %2637 = vmatpush.bf16.msra.mxu0 0
    %2638 = vmatpush.bf16.msra.mxu0 0
    %2639 = vmatpush.bf16.msra.mxu0 0
    %2640 = vmatpush.bf16.msra.mxu0 0
    %2641 = vmatpush.bf16.msra.mxu0 0
    %2642 = vmatpush.bf16.msra.mxu0 0
    %2643 = vmatpush.bf16.msra.mxu0 %v2628
    %2644 = vmatmul.bf16.gmra.mxu0 %v2631
    %v2645 = vpop.f32.mrf.mxu0
    %v2646 = vadd.f32 %v2622, %v2645
    %v2647 = vpop.f32.mrf.mxu0
    %v2648 = vadd.f32 %v2622, %v2647
    %2649 = vmatmul.bf16.gmra.mxu0 %v2634
    %v2650 = vpop.f32.mrf.mxu0
    %v2651 = vadd.f32 %v2622, %v2650
    %v2652 = vpop.f32.mrf.mxu0
    %v2653 = vadd.f32 %v2622, %v2652
    %2654 = vdwg.mxu0
    %v2655 = vadd.f32 %v2646, %v2001
    %v2656 = vadd.f32 %v2648, %v2002
    %v2657 = vadd.f32 %v2651, %v2003
    %v2658 = vadd.f32 %v2653, %v2004
    %v2659 = vmax.f32 %v2655, 0.0
    %v2660 = vmax.f32 %v2656, 0.0
    %v2661 = vmax.f32 %v2657, 0.0
    %v2662 = vmax.f32 %v2658, 0.0
    %v2663 = vld [vmem:[%s3] sm:$0xff]
    %v2665 = vsel %vm489, %v2663, 0
    %2667 = vmatpush.msra.mxu0 0.0
    %2668 = vmatpush.msra.mxu0 0.0
    %2669 = vmatpush.msra.mxu0 0.0
    %2670 = vmatpush.msra.mxu0 0.0
    %2671 = vmatpush.msra.mxu0 0.0
    %2672 = vmatpush.msra.mxu0 0.0
    %2673 = vmatpush.msra.mxu0 0.0
    %2674 = vmatpush.msra.mxu0 0.0
    %2675 = vmatpush.msra.mxu0 0.0
    %2676 = vmatpush.msra.mxu0 0.0
    %2677 = vmatpush.msra.mxu0 0.0
    %2678 = vmatpush.msra.mxu0 0.0
    %2679 = vmatpush.msra.mxu0 %v2662
    %2680 = vmatpush.msra.mxu0 %v2661
    %2681 = vmatpush.msra.mxu0 %v2660
    %2682 = vmatpush.msra.mxu0 %v2659
    %2683 = vmatmul.f32.gmra.mxu0 %v2665
    %v2684 = vpop.f32.mrf.mxu0
    %v2685 = vadd.f32 0.0, %v2684
    %2686 = vdwg.mxu0
    %v2687 = vld [vmem:[%s24] sm:$0xff]
    %v2688 = vld [vmem:[%s24 + $0x8] sm:$0xff]
    %v2689 = vld [vmem:[%s24 + $0x10] sm:$0xff]
    %v2690 = vld [vmem:[%s24 + $0x18] sm:$0xff]
    %v2691 = vld [vmem:[%s24 + $0x20] sm:$0xff]
    %v2692 = vld [vmem:[%s24 + $0x28] sm:$0xff]
    %v2693 = vld [vmem:[%s24 + $0x30] sm:$0xff]
    %v2694 = vld [vmem:[%s24 + $0x38] sm:$0xff]
    %v2695 = vld [vmem:[%s25] sm:$0x1]
    %v2697 = vperm.slane %v2695, 0
    %v2700 = vsel %vm1384, %v2685, 0
    %2702 = vmatpush.msra.mxu0 0.0
    %2703 = vmatpush.msra.mxu0 0.0
    %2704 = vmatpush.msra.mxu0 0.0
    %2705 = vmatpush.msra.mxu0 0.0
    %2706 = vmatpush.msra.mxu0 0.0
    %2707 = vmatpush.msra.mxu0 0.0
    %2708 = vmatpush.msra.mxu0 0.0
    %2709 = vmatpush.msra.mxu0 0.0
    %2710 = vmatpush.msra.mxu0 %v2694
    %2711 = vmatpush.msra.mxu0 %v2693
    %2712 = vmatpush.msra.mxu0 %v2692
    %2713 = vmatpush.msra.mxu0 %v2691
    %2714 = vmatpush.msra.mxu0 %v2690
    %2715 = vmatpush.msra.mxu0 %v2689
    %2716 = vmatpush.msra.mxu0 %v2688
    %2717 = vmatpush.msra.mxu0 %v2687
    %2718 = vmatmul.f32.gmra.mxu0 %v2700
    %v2719 = vpop.f32.mrf.mxu0
    %v2720 = vadd.f32 %v2697, %v2719
    %2721 = vdwg.mxu0
    %2722 = vst [vmem:[%s26] sm:$0xff] %v2720
    %v2723 = vlaneseq
    %v2724 = vand.u32 %v2723, 127
    %vm2725 = vcmp.lt.s32.totalorder %v2724, 9
    %v2726 = vsel %vm2725, %v2720, -inf
    %2727 = vmax.xlane.f32.xlu0 %v2726
    %v2728 = vpop.xlane.xlu0 %2727
    %v2729 = vsub.f32 %v2726, %v2728
    %v2730 = vmul.f32 %v2729, 1.442695
    %v2731 = vpow.pop %v2730
    %2732 = vadd.xlane.f32.xlu0 %v2731
    %v2733 = vpop.xlane.xlu0 %2732
    %v2734 = vrcp.pop %v2733
    %v2735 = vmul.f32 %v2733, %v2734
    %v2736 = vsub.f32 1.0, %v2735
    %v2737 = vmul.f32 %v2734, %v2736
    %v2738 = vadd.f32 %v2734, %v2737
    %vm2739 = vweird.f32 %v2733
    %vm2740 = vweird.f32 %v2734
    %vm2741 = vmor %vm2739, %vm2740
    %v2742 = vsel %vm2741, %v2734, %v2738
    %v2743 = vand.u32 2147483647, %v2733
    %vm2744 = vcmp.eq.f32.partialorder %v2743, 8.507059e+37
    %v2745 = vand.u32 %v2733, 2147483648
    %v2746 = vor.u32 1.1754944e-38, %v2745
    %v2747 = vsel %vm2744, %v2746, %v2742
    %v2748 = vmul.f32 %v2731, %v2747
    %2749 = vst [vmem:[#allocation2] sm:$0xff] %v2748
    // Predicated region
    $region106: #{res5_roi_heads_forward.1} parent=1 // pred_check
      _
    $region107: #{res5_roi_heads_forward.1} parent=1 // pred_check_branch
      %2751 = sbr.rel (0) target = $region109
    $region108: #{res5_roi_heads_forward.1} parent=1 // pred_region
      _
    $region109: #{res5_roi_heads_forward.1} parent=1 // pred_fallthru
      _
    // Predicated region
    $region110: #{res5_roi_heads_forward.1} parent=1 // pred_check
      _
    $region111: #{res5_roi_heads_forward.1} parent=1 // pred_check_branch
      %2753 = sbr.rel (0) target = $region113
    $region112: #{res5_roi_heads_forward.1} parent=1 // pred_region
      %2755 = vsyncadd [#allocation3], 0
      %s2757 = sshll.u32 [#allocation2], 4
      %s2758 = int_to_ptr.vmem [resolvable:$true] %s2757
      %s2759 = sshll.u32 %s27, 4
      %s2760 = int_to_ptr.hbm [resolvable:$true] %s2759
      %2762 = dma.vmem_to_hbm [thread:$0]  %s2758, 128, %s2760, [#allocation3]
    $region113: #{res5_roi_heads_forward.1} parent=1 // pred_fallthru
      _
    // Predicated region
    $region114: #{res5_roi_heads_forward.1} parent=1 // pred_check
      _
    $region115: #{res5_roi_heads_forward.1} parent=1 // pred_check_branch
      %2764 = sbr.rel (0) target = $region117
    $region116: #{res5_roi_heads_forward.1} parent=1 // pred_region
      _
    $region117: #{res5_roi_heads_forward.1} parent=1 // pred_fallthru
      _
    // Predicated region
    $region118: #{res5_roi_heads_forward.1} parent=1 // pred_check
      _
    $region119: #{res5_roi_heads_forward.1} parent=1 // pred_check_branch
      %2766 = sbr.rel (0) target = $region121
    $region120: #{res5_roi_heads_forward.1} parent=1 // pred_region
      %2768 = dma.done [#allocation3], 128
    $region121: #{res5_roi_heads_forward.1} parent=1 // pred_fallthru
      _
    %2769 = vsyncpa [#allocation3], 1

</llo_original>
